<compile_context>
chip_gen: v7x
topology: tpu7x:2x2x1
jax: 0.10.0
libtpu: 0.0.40
codegen_flags: <defaults>
</compile_context>

<pallas_src>
import functools

import jax
import jax.numpy as jnp
from jax.experimental import pallas as pl
from jax.experimental.pallas import tpu as pltpu

BN_EPS = 1e-5  # torch.nn.BatchNorm2d default


def _basic_block_kernel(*refs, stride, has_proj, H_out, W_out, C_in, C_out):
    if has_proj:
        (x_ref, w1_ref, a1_ref, b1_ref, w2_ref, a2_ref, b2_ref,
         wsc_ref, asc_ref, bsc_ref, o_ref, h1p_ref) = refs
    else:
        (x_ref, w1_ref, a1_ref, b1_ref, w2_ref, a2_ref, b2_ref,
         o_ref, h1p_ref) = refs
        wsc_ref = asc_ref = bsc_ref = None

    s = stride
    M = H_out * W_out

    # ---- conv1: 3x3, stride s, pad 1 -> 9 shifted GEMMs with f32 accumulation ----
    acc1 = jnp.zeros((M, C_out), jnp.float32)
    for ky in range(3):
        for kx in range(3):
            p = (ky % s) * s + (kx % s)        # phase that holds this tap
            oy, ox = ky // s, kx // s          # offset inside that phase
            win = x_ref[0, p, oy:oy + H_out, ox:ox + W_out, :]
            acc1 = acc1 + jnp.dot(win.reshape(M, C_in), w1_ref[ky, kx],
                                  preferred_element_type=jnp.float32)
    # fused BN1 (per-channel scale/shift) + ReLU
    h1 = jnp.maximum(acc1 * a1_ref[...] + b1_ref[...], 0.0)

    # ---- zero-pad h1 spatially (pad = 1) into VMEM scratch for conv2 ----
    h1p_ref[...] = jnp.zeros_like(h1p_ref)
    h1p_ref[1:H_out + 1, 1:W_out + 1, :] = h1.reshape(H_out, W_out, C_out)

    # ---- conv2: 3x3, stride 1, pad 1 ----
    acc2 = jnp.zeros((M, C_out), jnp.float32)
    for ky in range(3):
        for kx in range(3):
            win = h1p_ref[ky:ky + H_out, kx:kx + W_out, :]
            acc2 = acc2 + jnp.dot(win.reshape(M, C_out), w2_ref[ky, kx],
                                  preferred_element_type=jnp.float32)
    out = acc2 * a2_ref[...] + b2_ref[...]     # fused BN2

    # ---- shortcut path ----
    p_sc = (1 % s) * s + (1 % s)
    o_sc = 1 // s
    x_sc = x_ref[0, p_sc, o_sc:o_sc + H_out, o_sc:o_sc + W_out, :].reshape(M, C_in)
    if has_proj:   # 1x1 conv (stride s) + BN on the shortcut
        sc = jnp.dot(x_sc, wsc_ref[...], preferred_element_type=jnp.float32)
        sc = sc * asc_ref[...] + bsc_ref[...]
    else:          # identity shortcut (stride == 1, C_in == C_out)
        sc = x_sc

    out = jnp.maximum(out + sc, 0.0)           # residual add + final ReLU
    o_ref[0] = out.astype(o_ref.dtype)         # lane-dense (M, C_out) writeback


def _make_phase_tensor(x_nhwc, stride, H_out, W_out):
    """Pad spatially by 1 and split into stride x stride phases so every 3x3 tap
    of the strided conv becomes a *contiguous* slice of one phase (no strided
    loads inside the kernel). Total size stays equal to the padded input."""
    N, H, W, C = x_nhwc.shape
    s = stride
    xp = jnp.pad(x_nhwc, ((0, 0), (1, 1), (1, 1), (0, 0)))
    Hp, Wp = H + 2, W + 2
    Hq = max(-(-Hp // s), 2 // s + H_out)
    Wq = max(-(-Wp // s), 2 // s + W_out)
    xp = jnp.pad(xp, ((0, 0), (0, Hq * s - Hp), (0, Wq * s - Wp), (0, 0)))
    xph = xp.reshape(N, Hq, s, Wq, s, C).transpose(0, 2, 4, 1, 3, 5)
    return xph.reshape(N, s * s, Hq, Wq, C), Hq, Wq


def _fold_bn(bn_params):
    # TODO(synk): BatchNorm is applied in inference mode (running stats); training-mode
    # batch statistics are not computed in-kernel.
    gamma, beta, mean, var = bn_params
    scale = gamma / jnp.sqrt(var + BN_EPS)
    shift = beta - mean * scale
    return (scale.reshape(1, -1).astype(jnp.float32),
            shift.reshape(1, -1).astype(jnp.float32))


def basic_block_forward(x_nchw, params, *, stride=1):
    """Forward pass of BasicBlock. x_nchw: (N, C_in, H, W) float32 -> (N, C_out, H_out, W_out)."""
    N, C_in, H, W = x_nchw.shape
    conv1_w = params["conv1_w"]
    C_out = conv1_w.shape[0]
    s = int(stride)
    assert s in (1, 2), "ResNet BasicBlock uses stride 1 or 2"
    has_proj = (s != 1) or (C_in != C_out)

    H_out = (H + 2 - 3) // s + 1
    W_out = (W + 2 - 3) // s + 1
    M = H_out * W_out

    # NCHW -> NHWC (channels in lanes), pad + phase-split for strided taps.
    x_nhwc = jnp.transpose(x_nchw, (0, 2, 3, 1)).astype(jnp.float32)
    xph, Hq, Wq = _make_phase_tensor(x_nhwc, s, H_out, W_out)

    # Weights to (ky, kx, C_in, C_out); BN folded to per-channel scale/shift.
    w1 = jnp.transpose(conv1_w, (2, 3, 1, 0)).astype(jnp.float32)
    a1, b1 = _fold_bn(params["bn1"])
    w2 = jnp.transpose(params["conv2_w"], (2, 3, 1, 0)).astype(jnp.float32)
    a2, b2 = _fold_bn(params["bn2"])

    inputs = [xph, w1, a1, b1, w2, a2, b2]
    in_specs = [
        pl.BlockSpec((1, s * s, Hq, Wq, C_in), lambda n: (n, 0, 0, 0, 0)),
        pl.BlockSpec((3, 3, C_in, C_out), lambda n: (0, 0, 0, 0)),
        pl.BlockSpec((1, C_out), lambda n: (0, 0)),
        pl.BlockSpec((1, C_out), lambda n: (0, 0)),
        pl.BlockSpec((3, 3, C_out, C_out), lambda n: (0, 0, 0, 0)),
        pl.BlockSpec((1, C_out), lambda n: (0, 0)),
        pl.BlockSpec((1, C_out), lambda n: (0, 0)),
    ]
    if has_proj:
        wsc = params["sc_w"][:, :, 0, 0].T.astype(jnp.float32)   # (C_in, C_out)
        asc, bsc = _fold_bn(params["sc_bn"])
        inputs += [wsc, asc, bsc]
        in_specs += [
            pl.BlockSpec((C_in, C_out), lambda n: (0, 0)),
            pl.BlockSpec((1, C_out), lambda n: (0, 0)),
            pl.BlockSpec((1, C_out), lambda n: (0, 0)),
        ]

    kernel = functools.partial(
        _basic_block_kernel, stride=s, has_proj=has_proj,
        H_out=H_out, W_out=W_out, C_in=C_in, C_out=C_out)

    out_flat = pl.pallas_call(
        kernel,
        out_shape=jax.ShapeDtypeStruct((N, M, C_out), jnp.float32),
        grid_spec=pltpu.PrefetchScalarGridSpec(
            num_scalar_prefetch=0,
            grid=(N,),  # one block per image -> pipelined & megacore-shardable
            in_specs=in_specs,
            out_specs=pl.BlockSpec((1, M, C_out), lambda n: (n, 0, 0)),
            scratch_shapes=[pltpu.VMEM((H_out + 2, W_out + 2, C_out), jnp.float32)],
        ),
        compiler_params=pltpu.CompilerParams(
            dimension_semantics=("parallel",),
        ),
    )(*inputs)

    out_nhwc = out_flat.reshape(N, H_out, W_out, C_out)
    return jnp.transpose(out_nhwc, (0, 3, 1, 2))   # back to NCHW like PyTorch


# ----------------------------- reference & init -----------------------------
def reference_forward(x_nchw, params, stride):
    def conv(x, w, s, pad):
        return jax.lax.conv_general_dilated(
            x, w, window_strides=(s, s), padding=pad,
            dimension_numbers=("NCHW", "OIHW", "NCHW"))

    def bn(x, p):
        g, b, m, v = p
        scale = g / jnp.sqrt(v + BN_EPS)
        return ((x - m[None, :, None, None]) * scale[None, :, None, None]
                + b[None, :, None, None])

    out = jnp.maximum(bn(conv(x_nchw, params["conv1_w"], stride, [(1, 1), (1, 1)]),
                         params["bn1"]), 0.0)
    out = bn(conv(out, params["conv2_w"], 1, [(1, 1), (1, 1)]), params["bn2"])
    if "sc_w" in params:
        sc = bn(conv(x_nchw, params["sc_w"], stride, [(0, 0), (0, 0)]), params["sc_bn"])
    else:
        sc = x_nchw
    return jnp.maximum(out + sc, 0.0)


def init_params(key, c_in, c_out, stride):
    has_proj = stride != 1 or c_in != c_out
    ks = jax.random.split(key, 12)

    def conv_w(k, co, ci, kh, kw):
        fan_in = ci * kh * kw
        return jax.random.normal(k, (co, ci, kh, kw), jnp.float32) * jnp.sqrt(2.0 / fan_in)

    def bn_p(kg, kb, km, kv, c):
        gamma = 1.0 + 0.1 * jax.random.normal(kg, (c,), jnp.float32)
        beta = 0.1 * jax.random.normal(kb, (c,), jnp.float32)
        mean = 0.1 * jax.random.normal(km, (c,), jnp.float32)
        var = jax.random.uniform(kv, (c,), jnp.float32, 0.5, 1.5)
        return gamma, beta, mean, var

    params = {
        "conv1_w": conv_w(ks[0], c_out, c_in, 3, 3),
        "bn1": bn_p(ks[1], ks[2], ks[3], ks[4], c_out),
        "conv2_w": conv_w(ks[5], c_out, c_out, 3, 3),
        "bn2": bn_p(ks[6], ks[7], ks[8], ks[9], c_out),
    }
    if has_proj:
        params["sc_w"] = conv_w(ks[10], c_out, c_in, 1, 1)
        kk = jax.random.split(ks[11], 4)
        params["sc_bn"] = bn_p(kk[0], kk[1], kk[2], kk[3], c_out)
    return params


if __name__ == "__main__":
    key = jax.random.PRNGKey(0)
    kx, kp1, kp2 = jax.random.split(key, 3)

    x = jax.random.normal(kx, (2, 4, 16, 16), jnp.float32)   # (N, C, H, W)

    # Case 1: downsampling block with projection shortcut (stride=2, 4 -> 8 channels).
    p1 = init_params(kp1, 4, 8, stride=2)
    out1 = jax.block_until_ready(basic_block_forward(x, p1, stride=2))
    ref1 = reference_forward(x, p1, 2)
    assert out1.shape == (2, 8, 8, 8)
    assert jnp.allclose(out1, ref1, atol=1e-3, rtol=1e-3), "stride-2 block mismatch"

    # Case 2: identity-shortcut block (stride=1, 4 -> 4 channels).
    p2 = init_params(kp2, 4, 4, stride=1)
    out2 = jax.block_until_ready(basic_block_forward(x, p2, stride=1))
    ref2 = reference_forward(x, p2, 1)
    assert out2.shape == (2, 4, 16, 16)
    assert jnp.allclose(out2, ref2, atol=1e-3, rtol=1e-3), "stride-1 block mismatch"

    print("KERNEL_OK")
</pallas_src>

<mosaic_0001>
module attributes {stable_mosaic.version = 11 : i64} {
  func.func @_basic_block_kernel(%arg0: i32, %arg1: memref<1x4x9x9x4xf32, #tpu.memory_space<vmem>>, %arg2: memref<3x3x4x8xf32, #tpu.memory_space<vmem>>, %arg3: memref<1x8xf32, #tpu.memory_space<vmem>>, %arg4: memref<1x8xf32, #tpu.memory_space<vmem>>, %arg5: memref<3x3x8x8xf32, #tpu.memory_space<vmem>>, %arg6: memref<1x8xf32, #tpu.memory_space<vmem>>, %arg7: memref<1x8xf32, #tpu.memory_space<vmem>>, %arg8: memref<4x8xf32, #tpu.memory_space<vmem>>, %arg9: memref<1x8xf32, #tpu.memory_space<vmem>>, %arg10: memref<1x8xf32, #tpu.memory_space<vmem>>, %arg11: memref<1x64x8xf32, #tpu.memory_space<vmem>>, %arg12: memref<10x10x8xf32, #tpu.memory_space<vmem>>) attributes {dimension_semantics = [#tpu.dimension_semantics<parallel>], iteration_bounds = array<i64: 2>, scalar_prefetch = 0 : i64, scratch_operands = 1 : i64, tpu.core_type = #tpu.core_type<tc>, window_params = [{transform_indices = @transform_0, window_bounds = array<i64: 1, 4, 9, 9, 4>}, {pipeline_mode = #tpu.pipeline_mode<synchronous>, transform_indices = @transform_1, window_bounds = array<i64: 3, 3, 4, 8>}, {pipeline_mode = #tpu.pipeline_mode<synchronous>, transform_indices = @transform_2, window_bounds = array<i64: 1, 8>}, {pipeline_mode = #tpu.pipeline_mode<synchronous>, transform_indices = @transform_3, window_bounds = array<i64: 1, 8>}, {pipeline_mode = #tpu.pipeline_mode<synchronous>, transform_indices = @transform_4, window_bounds = array<i64: 3, 3, 8, 8>}, {pipeline_mode = #tpu.pipeline_mode<synchronous>, transform_indices = @transform_5, window_bounds = array<i64: 1, 8>}, {pipeline_mode = #tpu.pipeline_mode<synchronous>, transform_indices = @transform_6, window_bounds = array<i64: 1, 8>}, {pipeline_mode = #tpu.pipeline_mode<synchronous>, transform_indices = @transform_7, window_bounds = array<i64: 4, 8>}, {pipeline_mode = #tpu.pipeline_mode<synchronous>, transform_indices = @transform_8, window_bounds = array<i64: 1, 8>}, {pipeline_mode = #tpu.pipeline_mode<synchronous>, transform_indices = @transform_9, window_bounds = array<i64: 1, 8>}, {transform_indices = @transform_10, window_bounds = array<i64: 1, 64, 8>}]} {
    %cst = arith.constant 0.000000e+00 : f32
    %0 = vector.broadcast %cst : f32 to vector<64x8xf32>
    %c0 = arith.constant 0 : index
    %c0_0 = arith.constant 0 : index
    %c0_1 = arith.constant 0 : index
    %c0_2 = arith.constant 0 : index
    %c0_3 = arith.constant 0 : index
    %1 = vector.load %arg1[%c0, %c0_0, %c0_1, %c0_2, %c0_3] : memref<1x4x9x9x4xf32, #tpu.memory_space<vmem>>, vector<1x1x8x8x4xf32>
    %2 = vector.shape_cast %1 : vector<1x1x8x8x4xf32> to vector<8x8x4xf32>
    %3 = vector.shape_cast %2 : vector<8x8x4xf32> to vector<64x4xf32>
    %c0_4 = arith.constant 0 : index
    %c0_5 = arith.constant 0 : index
    %c0_6 = arith.constant 0 : index
    %c0_7 = arith.constant 0 : index
    %4 = vector.load %arg2[%c0_4, %c0_5, %c0_6, %c0_7] : memref<3x3x4x8xf32, #tpu.memory_space<vmem>>, vector<1x1x4x8xf32>
    %5 = vector.shape_cast %4 : vector<1x1x4x8xf32> to vector<4x8xf32>
    %cst_8 = arith.constant dense<0.000000e+00> : vector<64x8xf32>
    %6 = tpu.matmul %3, %5, %cst_8 {dimension_numbers = #tpu.dot_dimension_numbers<[1], [0], [0], [1], [0, 0, 1, 1], [], []>} : vector<64x4xf32>, vector<4x8xf32>, vector<64x8xf32> -> vector<64x8xf32>
    %7 = arith.addf %0, %6 : vector<64x8xf32>
    %c0_9 = arith.constant 0 : index
    %c1 = arith.constant 1 : index
    %c0_10 = arith.constant 0 : index
    %c0_11 = arith.constant 0 : index
    %c0_12 = arith.constant 0 : index
    %8 = vector.load %arg1[%c0_9, %c1, %c0_10, %c0_11, %c0_12] : memref<1x4x9x9x4xf32, #tpu.memory_space<vmem>>, vector<1x1x8x8x4xf32>
    %9 = vector.shape_cast %8 : vector<1x1x8x8x4xf32> to vector<8x8x4xf32>
    %10 = vector.shape_cast %9 : vector<8x8x4xf32> to vector<64x4xf32>
    %c0_13 = arith.constant 0 : index
    %c1_14 = arith.constant 1 : index
    %c0_15 = arith.constant 0 : index
    %c0_16 = arith.constant 0 : index
    %11 = vector.load %arg2[%c0_13, %c1_14, %c0_15, %c0_16] : memref<3x3x4x8xf32, #tpu.memory_space<vmem>>, vector<1x1x4x8xf32>
    %12 = vector.shape_cast %11 : vector<1x1x4x8xf32> to vector<4x8xf32>
    %cst_17 = arith.constant dense<0.000000e+00> : vector<64x8xf32>
    %13 = tpu.matmul %10, %12, %cst_17 {dimension_numbers = #tpu.dot_dimension_numbers<[1], [0], [0], [1], [0, 0, 1, 1], [], []>} : vector<64x4xf32>, vector<4x8xf32>, vector<64x8xf32> -> vector<64x8xf32>
    %14 = arith.addf %7, %13 : vector<64x8xf32>
    %c0_18 = arith.constant 0 : index
    %c0_19 = arith.constant 0 : index
    %c0_20 = arith.constant 0 : index
    %c1_21 = arith.constant 1 : index
    %c0_22 = arith.constant 0 : index
    %15 = vector.load %arg1[%c0_18, %c0_19, %c0_20, %c1_21, %c0_22] : memref<1x4x9x9x4xf32, #tpu.memory_space<vmem>>, vector<1x1x8x8x4xf32>
    %16 = vector.shape_cast %15 : vector<1x1x8x8x4xf32> to vector<8x8x4xf32>
    %17 = vector.shape_cast %16 : vector<8x8x4xf32> to vector<64x4xf32>
    %c0_23 = arith.constant 0 : index
    %c2 = arith.constant 2 : index
    %c0_24 = arith.constant 0 : index
    %c0_25 = arith.constant 0 : index
    %18 = vector.load %arg2[%c0_23, %c2, %c0_24, %c0_25] : memref<3x3x4x8xf32, #tpu.memory_space<vmem>>, vector<1x1x4x8xf32>
    %19 = vector.shape_cast %18 : vector<1x1x4x8xf32> to vector<4x8xf32>
    %cst_26 = arith.constant dense<0.000000e+00> : vector<64x8xf32>
    %20 = tpu.matmul %17, %19, %cst_26 {dimension_numbers = #tpu.dot_dimension_numbers<[1], [0], [0], [1], [0, 0, 1, 1], [], []>} : vector<64x4xf32>, vector<4x8xf32>, vector<64x8xf32> -> vector<64x8xf32>
    %21 = arith.addf %14, %20 : vector<64x8xf32>
    %c0_27 = arith.constant 0 : index
    %c2_28 = arith.constant 2 : index
    %c0_29 = arith.constant 0 : index
    %c0_30 = arith.constant 0 : index
    %c0_31 = arith.constant 0 : index
    %22 = vector.load %arg1[%c0_27, %c2_28, %c0_29, %c0_30, %c0_31] : memref<1x4x9x9x4xf32, #tpu.memory_space<vmem>>, vector<1x1x8x8x4xf32>
    %23 = vector.shape_cast %22 : vector<1x1x8x8x4xf32> to vector<8x8x4xf32>
    %24 = vector.shape_cast %23 : vector<8x8x4xf32> to vector<64x4xf32>
    %c1_32 = arith.constant 1 : index
    %c0_33 = arith.constant 0 : index
    %c0_34 = arith.constant 0 : index
    %c0_35 = arith.constant 0 : index
    %25 = vector.load %arg2[%c1_32, %c0_33, %c0_34, %c0_35] : memref<3x3x4x8xf32, #tpu.memory_space<vmem>>, vector<1x1x4x8xf32>
    %26 = vector.shape_cast %25 : vector<1x1x4x8xf32> to vector<4x8xf32>
    %cst_36 = arith.constant dense<0.000000e+00> : vector<64x8xf32>
    %27 = tpu.matmul %24, %26, %cst_36 {dimension_numbers = #tpu.dot_dimension_numbers<[1], [0], [0], [1], [0, 0, 1, 1], [], []>} : vector<64x4xf32>, vector<4x8xf32>, vector<64x8xf32> -> vector<64x8xf32>
    %28 = arith.addf %21, %27 : vector<64x8xf32>
    %c0_37 = arith.constant 0 : index
    %c3 = arith.constant 3 : index
    %c0_38 = arith.constant 0 : index
    %c0_39 = arith.constant 0 : index
    %c0_40 = arith.constant 0 : index
    %29 = vector.load %arg1[%c0_37, %c3, %c0_38, %c0_39, %c0_40] : memref<1x4x9x9x4xf32, #tpu.memory_space<vmem>>, vector<1x1x8x8x4xf32>
    %30 = vector.shape_cast %29 : vector<1x1x8x8x4xf32> to vector<8x8x4xf32>
    %31 = vector.shape_cast %30 : vector<8x8x4xf32> to vector<64x4xf32>
    %c1_41 = arith.constant 1 : index
    %c1_42 = arith.constant 1 : index
    %c0_43 = arith.constant 0 : index
    %c0_44 = arith.constant 0 : index
    %32 = vector.load %arg2[%c1_41, %c1_42, %c0_43, %c0_44] : memref<3x3x4x8xf32, #tpu.memory_space<vmem>>, vector<1x1x4x8xf32>
    %33 = vector.shape_cast %32 : vector<1x1x4x8xf32> to vector<4x8xf32>
    %cst_45 = arith.constant dense<0.000000e+00> : vector<64x8xf32>
    %34 = tpu.matmul %31, %33, %cst_45 {dimension_numbers = #tpu.dot_dimension_numbers<[1], [0], [0], [1], [0, 0, 1, 1], [], []>} : vector<64x4xf32>, vector<4x8xf32>, vector<64x8xf32> -> vector<64x8xf32>
    %35 = arith.addf %28, %34 : vector<64x8xf32>
    %c0_46 = arith.constant 0 : index
    %c2_47 = arith.constant 2 : index
    %c0_48 = arith.constant 0 : index
    %c1_49 = arith.constant 1 : index
    %c0_50 = arith.constant 0 : index
    %36 = vector.load %arg1[%c0_46, %c2_47, %c0_48, %c1_49, %c0_50] : memref<1x4x9x9x4xf32, #tpu.memory_space<vmem>>, vector<1x1x8x8x4xf32>
    %37 = vector.shape_cast %36 : vector<1x1x8x8x4xf32> to vector<8x8x4xf32>
    %38 = vector.shape_cast %37 : vector<8x8x4xf32> to vector<64x4xf32>
    %c1_51 = arith.constant 1 : index
    %c2_52 = arith.constant 2 : index
    %c0_53 = arith.constant 0 : index
    %c0_54 = arith.constant 0 : index
    %39 = vector.load %arg2[%c1_51, %c2_52, %c0_53, %c0_54] : memref<3x3x4x8xf32, #tpu.memory_space<vmem>>, vector<1x1x4x8xf32>
    %40 = vector.shape_cast %39 : vector<1x1x4x8xf32> to vector<4x8xf32>
    %cst_55 = arith.constant dense<0.000000e+00> : vector<64x8xf32>
    %41 = tpu.matmul %38, %40, %cst_55 {dimension_numbers = #tpu.dot_dimension_numbers<[1], [0], [0], [1], [0, 0, 1, 1], [], []>} : vector<64x4xf32>, vector<4x8xf32>, vector<64x8xf32> -> vector<64x8xf32>
    %42 = arith.addf %35, %41 : vector<64x8xf32>
    %c0_56 = arith.constant 0 : index
    %c0_57 = arith.constant 0 : index
    %c1_58 = arith.constant 1 : index
    %c0_59 = arith.constant 0 : index
    %c0_60 = arith.constant 0 : index
    %43 = vector.load %arg1[%c0_56, %c0_57, %c1_58, %c0_59, %c0_60] : memref<1x4x9x9x4xf32, #tpu.memory_space<vmem>>, vector<1x1x8x8x4xf32>
    %44 = vector.shape_cast %43 : vector<1x1x8x8x4xf32> to vector<8x8x4xf32>
    %45 = vector.shape_cast %44 : vector<8x8x4xf32> to vector<64x4xf32>
    %c2_61 = arith.constant 2 : index
    %c0_62 = arith.constant 0 : index
    %c0_63 = arith.constant 0 : index
    %c0_64 = arith.constant 0 : index
    %46 = vector.load %arg2[%c2_61, %c0_62, %c0_63, %c0_64] : memref<3x3x4x8xf32, #tpu.memory_space<vmem>>, vector<1x1x4x8xf32>
    %47 = vector.shape_cast %46 : vector<1x1x4x8xf32> to vector<4x8xf32>
    %cst_65 = arith.constant dense<0.000000e+00> : vector<64x8xf32>
    %48 = tpu.matmul %45, %47, %cst_65 {dimension_numbers = #tpu.dot_dimension_numbers<[1], [0], [0], [1], [0, 0, 1, 1], [], []>} : vector<64x4xf32>, vector<4x8xf32>, vector<64x8xf32> -> vector<64x8xf32>
    %49 = arith.addf %42, %48 : vector<64x8xf32>
    %c0_66 = arith.constant 0 : index
    %c1_67 = arith.constant 1 : index
    %c1_68 = arith.constant 1 : index
    %c0_69 = arith.constant 0 : index
    %c0_70 = arith.constant 0 : index
    %50 = vector.load %arg1[%c0_66, %c1_67, %c1_68, %c0_69, %c0_70] : memref<1x4x9x9x4xf32, #tpu.memory_space<vmem>>, vector<1x1x8x8x4xf32>
    %51 = vector.shape_cast %50 : vector<1x1x8x8x4xf32> to vector<8x8x4xf32>
    %52 = vector.shape_cast %51 : vector<8x8x4xf32> to vector<64x4xf32>
    %c2_71 = arith.constant 2 : index
    %c1_72 = arith.constant 1 : index
    %c0_73 = arith.constant 0 : index
    %c0_74 = arith.constant 0 : index
    %53 = vector.load %arg2[%c2_71, %c1_72, %c0_73, %c0_74] : memref<3x3x4x8xf32, #tpu.memory_space<vmem>>, vector<1x1x4x8xf32>
    %54 = vector.shape_cast %53 : vector<1x1x4x8xf32> to vector<4x8xf32>
    %cst_75 = arith.constant dense<0.000000e+00> : vector<64x8xf32>
    %55 = tpu.matmul %52, %54, %cst_75 {dimension_numbers = #tpu.dot_dimension_numbers<[1], [0], [0], [1], [0, 0, 1, 1], [], []>} : vector<64x4xf32>, vector<4x8xf32>, vector<64x8xf32> -> vector<64x8xf32>
    %56 = arith.addf %49, %55 : vector<64x8xf32>
    %c0_76 = arith.constant 0 : index
    %c0_77 = arith.constant 0 : index
    %c1_78 = arith.constant 1 : index
    %c1_79 = arith.constant 1 : index
    %c0_80 = arith.constant 0 : index
    %57 = vector.load %arg1[%c0_76, %c0_77, %c1_78, %c1_79, %c0_80] : memref<1x4x9x9x4xf32, #tpu.memory_space<vmem>>, vector<1x1x8x8x4xf32>
    %58 = vector.shape_cast %57 : vector<1x1x8x8x4xf32> to vector<8x8x4xf32>
    %59 = vector.shape_cast %58 : vector<8x8x4xf32> to vector<64x4xf32>
    %c2_81 = arith.constant 2 : index
    %c2_82 = arith.constant 2 : index
    %c0_83 = arith.constant 0 : index
    %c0_84 = arith.constant 0 : index
    %60 = vector.load %arg2[%c2_81, %c2_82, %c0_83, %c0_84] : memref<3x3x4x8xf32, #tpu.memory_space<vmem>>, vector<1x1x4x8xf32>
    %61 = vector.shape_cast %60 : vector<1x1x4x8xf32> to vector<4x8xf32>
    %cst_85 = arith.constant dense<0.000000e+00> : vector<64x8xf32>
    %62 = tpu.matmul %59, %61, %cst_85 {dimension_numbers = #tpu.dot_dimension_numbers<[1], [0], [0], [1], [0, 0, 1, 1], [], []>} : vector<64x4xf32>, vector<4x8xf32>, vector<64x8xf32> -> vector<64x8xf32>
    %63 = arith.addf %56, %62 : vector<64x8xf32>
    %c0_86 = arith.constant 0 : index
    %c0_87 = arith.constant 0 : index
    %64 = vector.load %arg3[%c0_86, %c0_87] : memref<1x8xf32, #tpu.memory_space<vmem>>, vector<1x8xf32>
    %65 = vector.broadcast %64 : vector<1x8xf32> to vector<64x8xf32>
    %66 = arith.mulf %63, %65 : vector<64x8xf32>
    %c0_88 = arith.constant 0 : index
    %c0_89 = arith.constant 0 : index
    %67 = vector.load %arg4[%c0_88, %c0_89] : memref<1x8xf32, #tpu.memory_space<vmem>>, vector<1x8xf32>
    %68 = vector.broadcast %67 : vector<1x8xf32> to vector<64x8xf32>
    %69 = arith.addf %66, %68 : vector<64x8xf32>
    %cst_90 = arith.constant 0.000000e+00 : f32
    %70 = vector.broadcast %cst_90 : f32 to vector<64x8xf32>
    %71 = arith.maximumf %69, %70 : vector<64x8xf32>
    %cst_91 = arith.constant 0.000000e+00 : f32
    %72 = vector.broadcast %cst_91 : f32 to vector<10x10x8xf32>
    %c0_92 = arith.constant 0 : index
    %c0_93 = arith.constant 0 : index
    %c0_94 = arith.constant 0 : index
    %73 = vector.load %arg12[%c0_92, %c0_93, %c0_94] : memref<10x10x8xf32, #tpu.memory_space<vmem>>, vector<10x10x8xf32>
    tpu.vector_store %arg12[%c0_92, %c0_93, %c0_94], %72 {strides = array<i32>} : memref<10x10x8xf32, #tpu.memory_space<vmem>>, vector<10x10x8xf32>,
    %74 = vector.shape_cast %71 : vector<64x8xf32> to vector<8x8x8xf32>
    %c1_95 = arith.constant 1 : index
    %c1_96 = arith.constant 1 : index
    %c0_97 = arith.constant 0 : index
    %75 = vector.load %arg12[%c1_95, %c1_96, %c0_97] : memref<10x10x8xf32, #tpu.memory_space<vmem>>, vector<8x8x8xf32>
    tpu.vector_store %arg12[%c1_95, %c1_96, %c0_97], %74 {strides = array<i32>} : memref<10x10x8xf32, #tpu.memory_space<vmem>>, vector<8x8x8xf32>,
    %cst_98 = arith.constant 0.000000e+00 : f32
    %76 = vector.broadcast %cst_98 : f32 to vector<64x8xf32>
    %c0_99 = arith.constant 0 : index
    %c0_100 = arith.constant 0 : index
    %c0_101 = arith.constant 0 : index
    %77 = vector.load %arg12[%c0_99, %c0_100, %c0_101] : memref<10x10x8xf32, #tpu.memory_space<vmem>>, vector<8x8x8xf32>
    %78 = vector.shape_cast %77 : vector<8x8x8xf32> to vector<64x8xf32>
    %c0_102 = arith.constant 0 : index
    %c0_103 = arith.constant 0 : index
    %c0_104 = arith.constant 0 : index
    %c0_105 = arith.constant 0 : index
    %79 = vector.load %arg5[%c0_102, %c0_103, %c0_104, %c0_105] : memref<3x3x8x8xf32, #tpu.memory_space<vmem>>, vector<1x1x8x8xf32>
    %80 = vector.shape_cast %79 : vector<1x1x8x8xf32> to vector<8x8xf32>
    %cst_106 = arith.constant dense<0.000000e+00> : vector<64x8xf32>
    %81 = tpu.matmul %78, %80, %cst_106 {dimension_numbers = #tpu.dot_dimension_numbers<[1], [0], [0], [1], [0, 0, 1, 1], [], []>} : vector<64x8xf32>, vector<8x8xf32>, vector<64x8xf32> -> vector<64x8xf32>
    %82 = arith.addf %76, %81 : vector<64x8xf32>
    %c0_107 = arith.constant 0 : index
    %c1_108 = arith.constant 1 : index
    %c0_109 = arith.constant 0 : index
    %83 = vector.load %arg12[%c0_107, %c1_108, %c0_109] : memref<10x10x8xf32, #tpu.memory_space<vmem>>, vector<8x8x8xf32>
    %84 = vector.shape_cast %83 : vector<8x8x8xf32> to vector<64x8xf32>
    %c0_110 = arith.constant 0 : index
    %c1_111 = arith.constant 1 : index
    %c0_112 = arith.constant 0 : index
    %c0_113 = arith.constant 0 : index
    %85 = vector.load %arg5[%c0_110, %c1_111, %c0_112, %c0_113] : memref<3x3x8x8xf32, #tpu.memory_space<vmem>>, vector<1x1x8x8xf32>
    %86 = vector.shape_cast %85 : vector<1x1x8x8xf32> to vector<8x8xf32>
    %cst_114 = arith.constant dense<0.000000e+00> : vector<64x8xf32>
    %87 = tpu.matmul %84, %86, %cst_114 {dimension_numbers = #tpu.dot_dimension_numbers<[1], [0], [0], [1], [0, 0, 1, 1], [], []>} : vector<64x8xf32>, vector<8x8xf32>, vector<64x8xf32> -> vector<64x8xf32>
    %88 = arith.addf %82, %87 : vector<64x8xf32>
    %c0_115 = arith.constant 0 : index
    %c2_116 = arith.constant 2 : index
    %c0_117 = arith.constant 0 : index
    %89 = vector.load %arg12[%c0_115, %c2_116, %c0_117] : memref<10x10x8xf32, #tpu.memory_space<vmem>>, vector<8x8x8xf32>
    %90 = vector.shape_cast %89 : vector<8x8x8xf32> to vector<64x8xf32>
    %c0_118 = arith.constant 0 : index
    %c2_119 = arith.constant 2 : index
    %c0_120 = arith.constant 0 : index
    %c0_121 = arith.constant 0 : index
    %91 = vector.load %arg5[%c0_118, %c2_119, %c0_120, %c0_121] : memref<3x3x8x8xf32, #tpu.memory_space<vmem>>, vector<1x1x8x8xf32>
    %92 = vector.shape_cast %91 : vector<1x1x8x8xf32> to vector<8x8xf32>
    %cst_122 = arith.constant dense<0.000000e+00> : vector<64x8xf32>
    %93 = tpu.matmul %90, %92, %cst_122 {dimension_numbers = #tpu.dot_dimension_numbers<[1], [0], [0], [1], [0, 0, 1, 1], [], []>} : vector<64x8xf32>, vector<8x8xf32>, vector<64x8xf32> -> vector<64x8xf32>
    %94 = arith.addf %88, %93 : vector<64x8xf32>
    %c1_123 = arith.constant 1 : index
    %c0_124 = arith.constant 0 : index
    %c0_125 = arith.constant 0 : index
    %95 = vector.load %arg12[%c1_123, %c0_124, %c0_125] : memref<10x10x8xf32, #tpu.memory_space<vmem>>, vector<8x8x8xf32>
    %96 = vector.shape_cast %95 : vector<8x8x8xf32> to vector<64x8xf32>
    %c1_126 = arith.constant 1 : index
    %c0_127 = arith.constant 0 : index
    %c0_128 = arith.constant 0 : index
    %c0_129 = arith.constant 0 : index
    %97 = vector.load %arg5[%c1_126, %c0_127, %c0_128, %c0_129] : memref<3x3x8x8xf32, #tpu.memory_space<vmem>>, vector<1x1x8x8xf32>
    %98 = vector.shape_cast %97 : vector<1x1x8x8xf32> to vector<8x8xf32>
    %cst_130 = arith.constant dense<0.000000e+00> : vector<64x8xf32>
    %99 = tpu.matmul %96, %98, %cst_130 {dimension_numbers = #tpu.dot_dimension_numbers<[1], [0], [0], [1], [0, 0, 1, 1], [], []>} : vector<64x8xf32>, vector<8x8xf32>, vector<64x8xf32> -> vector<64x8xf32>
    %100 = arith.addf %94, %99 : vector<64x8xf32>
    %c1_131 = arith.constant 1 : index
    %c1_132 = arith.constant 1 : index
    %c0_133 = arith.constant 0 : index
    %101 = vector.load %arg12[%c1_131, %c1_132, %c0_133] : memref<10x10x8xf32, #tpu.memory_space<vmem>>, vector<8x8x8xf32>
    %102 = vector.shape_cast %101 : vector<8x8x8xf32> to vector<64x8xf32>
    %c1_134 = arith.constant 1 : index
    %c1_135 = arith.constant 1 : index
    %c0_136 = arith.constant 0 : index
    %c0_137 = arith.constant 0 : index
    %103 = vector.load %arg5[%c1_134, %c1_135, %c0_136, %c0_137] : memref<3x3x8x8xf32, #tpu.memory_space<vmem>>, vector<1x1x8x8xf32>
    %104 = vector.shape_cast %103 : vector<1x1x8x8xf32> to vector<8x8xf32>
    %cst_138 = arith.constant dense<0.000000e+00> : vector<64x8xf32>
    %105 = tpu.matmul %102, %104, %cst_138 {dimension_numbers = #tpu.dot_dimension_numbers<[1], [0], [0], [1], [0, 0, 1, 1], [], []>} : vector<64x8xf32>, vector<8x8xf32>, vector<64x8xf32> -> vector<64x8xf32>
    %106 = arith.addf %100, %105 : vector<64x8xf32>
    %c1_139 = arith.constant 1 : index
    %c2_140 = arith.constant 2 : index
    %c0_141 = arith.constant 0 : index
    %107 = vector.load %arg12[%c1_139, %c2_140, %c0_141] : memref<10x10x8xf32, #tpu.memory_space<vmem>>, vector<8x8x8xf32>
    %108 = vector.shape_cast %107 : vector<8x8x8xf32> to vector<64x8xf32>
    %c1_142 = arith.constant 1 : index
    %c2_143 = arith.constant 2 : index
    %c0_144 = arith.constant 0 : index
    %c0_145 = arith.constant 0 : index
    %109 = vector.load %arg5[%c1_142, %c2_143, %c0_144, %c0_145] : memref<3x3x8x8xf32, #tpu.memory_space<vmem>>, vector<1x1x8x8xf32>
    %110 = vector.shape_cast %109 : vector<1x1x8x8xf32> to vector<8x8xf32>
    %cst_146 = arith.constant dense<0.000000e+00> : vector<64x8xf32>
    %111 = tpu.matmul %108, %110, %cst_146 {dimension_numbers = #tpu.dot_dimension_numbers<[1], [0], [0], [1], [0, 0, 1, 1], [], []>} : vector<64x8xf32>, vector<8x8xf32>, vector<64x8xf32> -> vector<64x8xf32>
    %112 = arith.addf %106, %111 : vector<64x8xf32>
    %c2_147 = arith.constant 2 : index
    %c0_148 = arith.constant 0 : index
    %c0_149 = arith.constant 0 : index
    %113 = vector.load %arg12[%c2_147, %c0_148, %c0_149] : memref<10x10x8xf32, #tpu.memory_space<vmem>>, vector<8x8x8xf32>
    %114 = vector.shape_cast %113 : vector<8x8x8xf32> to vector<64x8xf32>
    %c2_150 = arith.constant 2 : index
    %c0_151 = arith.constant 0 : index
    %c0_152 = arith.constant 0 : index
    %c0_153 = arith.constant 0 : index
    %115 = vector.load %arg5[%c2_150, %c0_151, %c0_152, %c0_153] : memref<3x3x8x8xf32, #tpu.memory_space<vmem>>, vector<1x1x8x8xf32>
    %116 = vector.shape_cast %115 : vector<1x1x8x8xf32> to vector<8x8xf32>
    %cst_154 = arith.constant dense<0.000000e+00> : vector<64x8xf32>
    %117 = tpu.matmul %114, %116, %cst_154 {dimension_numbers = #tpu.dot_dimension_numbers<[1], [0], [0], [1], [0, 0, 1, 1], [], []>} : vector<64x8xf32>, vector<8x8xf32>, vector<64x8xf32> -> vector<64x8xf32>
    %118 = arith.addf %112, %117 : vector<64x8xf32>
    %c2_155 = arith.constant 2 : index
    %c1_156 = arith.constant 1 : index
    %c0_157 = arith.constant 0 : index
    %119 = vector.load %arg12[%c2_155, %c1_156, %c0_157] : memref<10x10x8xf32, #tpu.memory_space<vmem>>, vector<8x8x8xf32>
    %120 = vector.shape_cast %119 : vector<8x8x8xf32> to vector<64x8xf32>
    %c2_158 = arith.constant 2 : index
    %c1_159 = arith.constant 1 : index
    %c0_160 = arith.constant 0 : index
    %c0_161 = arith.constant 0 : index
    %121 = vector.load %arg5[%c2_158, %c1_159, %c0_160, %c0_161] : memref<3x3x8x8xf32, #tpu.memory_space<vmem>>, vector<1x1x8x8xf32>
    %122 = vector.shape_cast %121 : vector<1x1x8x8xf32> to vector<8x8xf32>
    %cst_162 = arith.constant dense<0.000000e+00> : vector<64x8xf32>
    %123 = tpu.matmul %120, %122, %cst_162 {dimension_numbers = #tpu.dot_dimension_numbers<[1], [0], [0], [1], [0, 0, 1, 1], [], []>} : vector<64x8xf32>, vector<8x8xf32>, vector<64x8xf32> -> vector<64x8xf32>
    %124 = arith.addf %118, %123 : vector<64x8xf32>
    %c2_163 = arith.constant 2 : index
    %c2_164 = arith.constant 2 : index
    %c0_165 = arith.constant 0 : index
    %125 = vector.load %arg12[%c2_163, %c2_164, %c0_165] : memref<10x10x8xf32, #tpu.memory_space<vmem>>, vector<8x8x8xf32>
    %126 = vector.shape_cast %125 : vector<8x8x8xf32> to vector<64x8xf32>
    %c2_166 = arith.constant 2 : index
    %c2_167 = arith.constant 2 : index
    %c0_168 = arith.constant 0 : index
    %c0_169 = arith.constant 0 : index
    %127 = vector.load %arg5[%c2_166, %c2_167, %c0_168, %c0_169] : memref<3x3x8x8xf32, #tpu.memory_space<vmem>>, vector<1x1x8x8xf32>
    %128 = vector.shape_cast %127 : vector<1x1x8x8xf32> to vector<8x8xf32>
    %cst_170 = arith.constant dense<0.000000e+00> : vector<64x8xf32>
    %129 = tpu.matmul %126, %128, %cst_170 {dimension_numbers = #tpu.dot_dimension_numbers<[1], [0], [0], [1], [0, 0, 1, 1], [], []>} : vector<64x8xf32>, vector<8x8xf32>, vector<64x8xf32> -> vector<64x8xf32>
    %130 = arith.addf %124, %129 : vector<64x8xf32>
    %c0_171 = arith.constant 0 : index
    %c0_172 = arith.constant 0 : index
    %131 = vector.load %arg6[%c0_171, %c0_172] : memref<1x8xf32, #tpu.memory_space<vmem>>, vector<1x8xf32>
    %132 = vector.broadcast %131 : vector<1x8xf32> to vector<64x8xf32>
    %133 = arith.mulf %130, %132 : vector<64x8xf32>
    %c0_173 = arith.constant 0 : index
    %c0_174 = arith.constant 0 : index
    %134 = vector.load %arg7[%c0_173, %c0_174] : memref<1x8xf32, #tpu.memory_space<vmem>>, vector<1x8xf32>
    %135 = vector.broadcast %134 : vector<1x8xf32> to vector<64x8xf32>
    %136 = arith.addf %133, %135 : vector<64x8xf32>
    %c0_175 = arith.constant 0 : index
    %c3_176 = arith.constant 3 : index
    %c0_177 = arith.constant 0 : index
    %c0_178 = arith.constant 0 : index
    %c0_179 = arith.constant 0 : index
    %137 = vector.load %arg1[%c0_175, %c3_176, %c0_177, %c0_178, %c0_179] : memref<1x4x9x9x4xf32, #tpu.memory_space<vmem>>, vector<1x1x8x8x4xf32>
    %138 = vector.shape_cast %137 : vector<1x1x8x8x4xf32> to vector<8x8x4xf32>
    %139 = vector.shape_cast %138 : vector<8x8x4xf32> to vector<64x4xf32>
    %c0_180 = arith.constant 0 : index
    %c0_181 = arith.constant 0 : index
    %140 = vector.load %arg8[%c0_180, %c0_181] : memref<4x8xf32, #tpu.memory_space<vmem>>, vector<4x8xf32>
    %cst_182 = arith.constant dense<0.000000e+00> : vector<64x8xf32>
    %141 = tpu.matmul %139, %140, %cst_182 {dimension_numbers = #tpu.dot_dimension_numbers<[1], [0], [0], [1], [0, 0, 1, 1], [], []>} : vector<64x4xf32>, vector<4x8xf32>, vector<64x8xf32> -> vector<64x8xf32>
    %c0_183 = arith.constant 0 : index
    %c0_184 = arith.constant 0 : index
    %142 = vector.load %arg9[%c0_183, %c0_184] : memref<1x8xf32, #tpu.memory_space<vmem>>, vector<1x8xf32>
    %143 = vector.broadcast %142 : vector<1x8xf32> to vector<64x8xf32>
    %144 = arith.mulf %141, %143 : vector<64x8xf32>
    %c0_185 = arith.constant 0 : index
    %c0_186 = arith.constant 0 : index
    %145 = vector.load %arg10[%c0_185, %c0_186] : memref<1x8xf32, #tpu.memory_space<vmem>>, vector<1x8xf32>
    %146 = vector.broadcast %145 : vector<1x8xf32> to vector<64x8xf32>
    %147 = arith.addf %144, %146 : vector<64x8xf32>
    %148 = arith.addf %136, %147 : vector<64x8xf32>
    %cst_187 = arith.constant 0.000000e+00 : f32
    %149 = vector.broadcast %cst_187 : f32 to vector<64x8xf32>
    %150 = arith.maximumf %148, %149 : vector<64x8xf32>
    %c0_188 = arith.constant 0 : index
    %c0_189 = arith.constant 0 : index
    %c0_190 = arith.constant 0 : index
    %151 = vector.load %arg11[%c0_188, %c0_189, %c0_190] : memref<1x64x8xf32, #tpu.memory_space<vmem>>, vector<1x64x8xf32>
    %152 = vector.shape_cast %151 : vector<1x64x8xf32> to vector<64x8xf32>
    %153 = vector.shape_cast %150 : vector<64x8xf32> to vector<1x64x8xf32>
    tpu.vector_store %arg11[%c0_188, %c0_189, %c0_190], %153 {strides = array<i32>} : memref<1x64x8xf32, #tpu.memory_space<vmem>>, vector<1x64x8xf32>,
    return
  }
  func.func @transform_0(%arg0: i32) -> (i32, i32, i32, i32, i32) {
    %c0_i32 = arith.constant 0 : i32
    %c0_i32_0 = arith.constant 0 : i32
    %c0_i32_1 = arith.constant 0 : i32
    %c0_i32_2 = arith.constant 0 : i32
    %c0_i32_3 = arith.constant 0 : i32
    return %arg0, %c0_i32, %c0_i32_0, %c0_i32_1, %c0_i32_2 : i32, i32, i32, i32, i32
  }
  func.func @transform_1(%arg0: i32) -> (i32, i32, i32, i32) {
    %c0_i32 = arith.constant 0 : i32
    %c0_i32_0 = arith.constant 0 : i32
    %c0_i32_1 = arith.constant 0 : i32
    %c0_i32_2 = arith.constant 0 : i32
    %c0_i32_3 = arith.constant 0 : i32
    return %c0_i32, %c0_i32_0, %c0_i32_1, %c0_i32_2 : i32, i32, i32, i32
  }
  func.func @transform_2(%arg0: i32) -> (i32, i32) {
    %c0_i32 = arith.constant 0 : i32
    %c0_i32_0 = arith.constant 0 : i32
    %c0_i32_1 = arith.constant 0 : i32
    return %c0_i32, %c0_i32_0 : i32, i32
  }
  func.func @transform_3(%arg0: i32) -> (i32, i32) {
    %c0_i32 = arith.constant 0 : i32
    %c0_i32_0 = arith.constant 0 : i32
    %c0_i32_1 = arith.constant 0 : i32
    return %c0_i32, %c0_i32_0 : i32, i32
  }
  func.func @transform_4(%arg0: i32) -> (i32, i32, i32, i32) {
    %c0_i32 = arith.constant 0 : i32
    %c0_i32_0 = arith.constant 0 : i32
    %c0_i32_1 = arith.constant 0 : i32
    %c0_i32_2 = arith.constant 0 : i32
    %c0_i32_3 = arith.constant 0 : i32
    return %c0_i32, %c0_i32_0, %c0_i32_1, %c0_i32_2 : i32, i32, i32, i32
  }
  func.func @transform_5(%arg0: i32) -> (i32, i32) {
    %c0_i32 = arith.constant 0 : i32
    %c0_i32_0 = arith.constant 0 : i32
    %c0_i32_1 = arith.constant 0 : i32
    return %c0_i32, %c0_i32_0 : i32, i32
  }
  func.func @transform_6(%arg0: i32) -> (i32, i32) {
    %c0_i32 = arith.constant 0 : i32
    %c0_i32_0 = arith.constant 0 : i32
    %c0_i32_1 = arith.constant 0 : i32
    return %c0_i32, %c0_i32_0 : i32, i32
  }
  func.func @transform_7(%arg0: i32) -> (i32, i32) {
    %c0_i32 = arith.constant 0 : i32
    %c0_i32_0 = arith.constant 0 : i32
    %c0_i32_1 = arith.constant 0 : i32
    return %c0_i32, %c0_i32_0 : i32, i32
  }
  func.func @transform_8(%arg0: i32) -> (i32, i32) {
    %c0_i32 = arith.constant 0 : i32
    %c0_i32_0 = arith.constant 0 : i32
    %c0_i32_1 = arith.constant 0 : i32
    return %c0_i32, %c0_i32_0 : i32, i32
  }
  func.func @transform_9(%arg0: i32) -> (i32, i32) {
    %c0_i32 = arith.constant 0 : i32
    %c0_i32_0 = arith.constant 0 : i32
    %c0_i32_1 = arith.constant 0 : i32
    return %c0_i32, %c0_i32_0 : i32, i32
  }
  func.func @transform_10(%arg0: i32) -> (i32, i32, i32) {
    %c0_i32 = arith.constant 0 : i32
    %c0_i32_0 = arith.constant 0 : i32
    %c0_i32_1 = arith.constant 0 : i32
    return %arg0, %c0_i32, %c0_i32_0 : i32, i32, i32
  }
}

</mosaic_0001>

<llo_original>
// kernel: tpu_custom_call.1
$region0: #{tpu_custom_call.1}
  #allocation0 [shape = 'u32[]', space=smem, size = 0x4, offset = 0x4, fixed_abs, tag = 'smem constant byte address 0x4 - core index']
  #allocation1 [shape = 'u32[144,128]{1,0:T(1,128)}', space=vmem, size = 0x12000, scoped, tag = 'internal scratch']
  #allocation2 [shape = 'f32[10,10,8]{2,1,0:T(8,128)}', space=vmem, size = 0x14000, scoped, tag = 'scratch operand']
  %s0 = inlined_call_operand.vmem [shape: f32[2,4,9,9,4], index: 0, kind: input, shape index: {}]
  %s1 = inlined_call_operand.vmem [shape: f32[3,3,4,8], index: 1, kind: input, shape index: {}]
  %s2 = inlined_call_operand.vmem [shape: f32[1,8], index: 2, kind: input, shape index: {}]
  %s3 = inlined_call_operand.vmem [shape: f32[1,8], index: 3, kind: input, shape index: {}]
  %s4 = inlined_call_operand.vmem [shape: f32[3,3,8,8], index: 4, kind: input, shape index: {}]
  %s5 = inlined_call_operand.vmem [shape: f32[1,8], index: 5, kind: input, shape index: {}]
  %s6 = inlined_call_operand.vmem [shape: f32[1,8], index: 6, kind: input, shape index: {}]
  %s7 = inlined_call_operand.vmem [shape: f32[4,8], index: 7, kind: input, shape index: {}]
  %s8 = inlined_call_operand.vmem [shape: f32[1,8], index: 8, kind: input, shape index: {}]
  %s9 = inlined_call_operand.vmem [shape: f32[1,8], index: 9, kind: input, shape index: {}]
  %s10 = inlined_call_operand.vmem [shape: f32[2,64,8], index: 10, kind: output, shape index: {}]
  %s11 = sld [smem:[#allocation0]]
  $region73: #{tpu_custom_call.1} parent=0
    _
  %s13 = ssub.s32 1, %s11
  %s14 = scalar_select 0, %s13, %s11
  loop: start=0, step=1, limit=4
  $region2: #{tpu_custom_call.1} parent=0 // loop_pre_header
    _
  $region3: #{tpu_custom_call.1} parent=0 // loop_header
    %s16 = sphi 0, %s20
    %p17 = scmp.ge.s32.totalorder %s16, 4
    %s26 = sphi 0, %s28
    %s29 = sphi 0, %s26
    %s30 = sphi 0, %s29
    %s46 = sphi 0, %s30
    %s50 = sphi 0, %s50
    %s52 = sphi 0, %s50
    %s53 = sphi 0, %s52
    %s67 = sphi 0, %s53
    %s71 = sphi 0, %s71
    %s73 = sphi 0, %s71
    %s74 = sphi 0, %s73
    %s88 = sphi 0, %s74
    %s92 = sphi 0, %s92
    %s94 = sphi 0, %s92
    %s95 = sphi 0, %s94
    %s109 = sphi 0, %s95
    %s113 = sphi 0, %s113
    %s115 = sphi 0, %s113
    %s116 = sphi 0, %s115
    %s130 = sphi 0, %s116
    %s134 = sphi 0, %s134
    %s136 = sphi 0, %s134
    %s137 = sphi 0, %s136
    %s151 = sphi 0, %s137
    %s155 = sphi 0, %s155
    %s157 = sphi 0, %s155
    %s158 = sphi 0, %s157
    %s172 = sphi 0, %s158
    %s176 = sphi 0, %s176
    %s178 = sphi 0, %s176
    %s179 = sphi 0, %s178
    %s193 = sphi 0, %s179
    %s197 = sphi 0, %s197
    %s199 = sphi 0, %s197
    %s200 = sphi 0, %s199
    %s214 = sphi 0, %s200
    %s218 = sphi 0, %s218
    %s220 = sphi 0, %s218
    %s221 = sphi 0, %s220
    %s235 = sphi 0, %s221
    %s241 = sphi 0, %s243
    %s244 = sphi 0, %s241
    %s245 = sphi 0, %s244
    %s261 = sphi 0, %s245
  $region4: #{tpu_custom_call.1} parent=0 // loop_header_branch
    %19 = sbr.rel (%p17) target = $region8
  $region5: #{tpu_custom_call.1} parent=0 // loop_body
    %s21 = ssub.s32 %s16, 1
    %s22 = ssub.s32 %s16, 2
    %s23 = sadd.s32 %s16, 1
    %s24 = ssub.s32 %s16, %s23
    %p25 = scmp.eq.s32.totalorder %s24, 0
    %s27 = sadd.s32 %s26, 1
    %s28 = scalar_select %p25, %s26, %s27
    %p31 = pneg %p25
    %p32 = scmp.eq.s32.totalorder %s16, 1
    %p33 = por %p31, %p32
    %p34 = scmp.ne.s32.totalorder %s26, %s29
    %p35 = scmp.eq.s32.totalorder %s16, 0
    %p36 = por %p34, %p35
    %p37 = scmp.ne.s32.totalorder %s26, %s29
    %p38 = scmp.eq.s32.totalorder %s21, 1
    %p39 = por %p37, %p38
    %p40 = scmp.ne.s32.totalorder %s29, %s30
    %p41 = scmp.eq.s32.totalorder %s21, 0
    %p42 = por %p40, %p41
    %p43 = scmp.ne.s32.totalorder %s29, %s30
    %p44 = scmp.eq.s32.totalorder %s22, 1
    %p45 = por %p43, %p44
    %p47 = scmp.ne.s32.totalorder %s30, %s46
    %p48 = scmp.eq.s32.totalorder %s22, 0
    %p49 = por %p47, %p48
    %s51 = sadd.s32 %s50, 1
    %p54 = scmp.eq.s32.totalorder %s16, 1
    %p55 = scmp.ne.s32.totalorder %s50, %s52
    %p56 = scmp.eq.s32.totalorder %s16, 0
    %p57 = por %p55, %p56
    %p58 = scmp.ne.s32.totalorder %s50, %s52
    %p59 = scmp.eq.s32.totalorder %s21, 1
    %p60 = por %p58, %p59
    %p61 = scmp.ne.s32.totalorder %s52, %s53
    %p62 = scmp.eq.s32.totalorder %s21, 0
    %p63 = por %p61, %p62
    %p64 = scmp.ne.s32.totalorder %s52, %s53
    %p65 = scmp.eq.s32.totalorder %s22, 1
    %p66 = por %p64, %p65
    %p68 = scmp.ne.s32.totalorder %s53, %s67
    %p69 = scmp.eq.s32.totalorder %s22, 0
    %p70 = por %p68, %p69
    %s72 = sadd.s32 %s71, 1
    %p75 = scmp.eq.s32.totalorder %s16, 1
    %p76 = scmp.ne.s32.totalorder %s71, %s73
    %p77 = scmp.eq.s32.totalorder %s16, 0
    %p78 = por %p76, %p77
    %p79 = scmp.ne.s32.totalorder %s71, %s73
    %p80 = scmp.eq.s32.totalorder %s21, 1
    %p81 = por %p79, %p80
    %p82 = scmp.ne.s32.totalorder %s73, %s74
    %p83 = scmp.eq.s32.totalorder %s21, 0
    %p84 = por %p82, %p83
    %p85 = scmp.ne.s32.totalorder %s73, %s74
    %p86 = scmp.eq.s32.totalorder %s22, 1
    %p87 = por %p85, %p86
    %p89 = scmp.ne.s32.totalorder %s74, %s88
    %p90 = scmp.eq.s32.totalorder %s22, 0
    %p91 = por %p89, %p90
    %s93 = sadd.s32 %s92, 1
    %p96 = scmp.eq.s32.totalorder %s16, 1
    %p97 = scmp.ne.s32.totalorder %s92, %s94
    %p98 = scmp.eq.s32.totalorder %s16, 0
    %p99 = por %p97, %p98
    %p100 = scmp.ne.s32.totalorder %s92, %s94
    %p101 = scmp.eq.s32.totalorder %s21, 1
    %p102 = por %p100, %p101
    %p103 = scmp.ne.s32.totalorder %s94, %s95
    %p104 = scmp.eq.s32.totalorder %s21, 0
    %p105 = por %p103, %p104
    %p106 = scmp.ne.s32.totalorder %s94, %s95
    %p107 = scmp.eq.s32.totalorder %s22, 1
    %p108 = por %p106, %p107
    %p110 = scmp.ne.s32.totalorder %s95, %s109
    %p111 = scmp.eq.s32.totalorder %s22, 0
    %p112 = por %p110, %p111
    %s114 = sadd.s32 %s113, 1
    %p117 = scmp.eq.s32.totalorder %s16, 1
    %p118 = scmp.ne.s32.totalorder %s113, %s115
    %p119 = scmp.eq.s32.totalorder %s16, 0
    %p120 = por %p118, %p119
    %p121 = scmp.ne.s32.totalorder %s113, %s115
    %p122 = scmp.eq.s32.totalorder %s21, 1
    %p123 = por %p121, %p122
    %p124 = scmp.ne.s32.totalorder %s115, %s116
    %p125 = scmp.eq.s32.totalorder %s21, 0
    %p126 = por %p124, %p125
    %p127 = scmp.ne.s32.totalorder %s115, %s116
    %p128 = scmp.eq.s32.totalorder %s22, 1
    %p129 = por %p127, %p128
    %p131 = scmp.ne.s32.totalorder %s116, %s130
    %p132 = scmp.eq.s32.totalorder %s22, 0
    %p133 = por %p131, %p132
    %s135 = sadd.s32 %s134, 1
    %p138 = scmp.eq.s32.totalorder %s16, 1
    %p139 = scmp.ne.s32.totalorder %s134, %s136
    %p140 = scmp.eq.s32.totalorder %s16, 0
    %p141 = por %p139, %p140
    %p142 = scmp.ne.s32.totalorder %s134, %s136
    %p143 = scmp.eq.s32.totalorder %s21, 1
    %p144 = por %p142, %p143
    %p145 = scmp.ne.s32.totalorder %s136, %s137
    %p146 = scmp.eq.s32.totalorder %s21, 0
    %p147 = por %p145, %p146
    %p148 = scmp.ne.s32.totalorder %s136, %s137
    %p149 = scmp.eq.s32.totalorder %s22, 1
    %p150 = por %p148, %p149
    %p152 = scmp.ne.s32.totalorder %s137, %s151
    %p153 = scmp.eq.s32.totalorder %s22, 0
    %p154 = por %p152, %p153
    %s156 = sadd.s32 %s155, 1
    %p159 = scmp.eq.s32.totalorder %s16, 1
    %p160 = scmp.ne.s32.totalorder %s155, %s157
    %p161 = scmp.eq.s32.totalorder %s16, 0
    %p162 = por %p160, %p161
    %p163 = scmp.ne.s32.totalorder %s155, %s157
    %p164 = scmp.eq.s32.totalorder %s21, 1
    %p165 = por %p163, %p164
    %p166 = scmp.ne.s32.totalorder %s157, %s158
    %p167 = scmp.eq.s32.totalorder %s21, 0
    %p168 = por %p166, %p167
    %p169 = scmp.ne.s32.totalorder %s157, %s158
    %p170 = scmp.eq.s32.totalorder %s22, 1
    %p171 = por %p169, %p170
    %p173 = scmp.ne.s32.totalorder %s158, %s172
    %p174 = scmp.eq.s32.totalorder %s22, 0
    %p175 = por %p173, %p174
    %s177 = sadd.s32 %s176, 1
    %p180 = scmp.eq.s32.totalorder %s16, 1
    %p181 = scmp.ne.s32.totalorder %s176, %s178
    %p182 = scmp.eq.s32.totalorder %s16, 0
    %p183 = por %p181, %p182
    %p184 = scmp.ne.s32.totalorder %s176, %s178
    %p185 = scmp.eq.s32.totalorder %s21, 1
    %p186 = por %p184, %p185
    %p187 = scmp.ne.s32.totalorder %s178, %s179
    %p188 = scmp.eq.s32.totalorder %s21, 0
    %p189 = por %p187, %p188
    %p190 = scmp.ne.s32.totalorder %s178, %s179
    %p191 = scmp.eq.s32.totalorder %s22, 1
    %p192 = por %p190, %p191
    %p194 = scmp.ne.s32.totalorder %s179, %s193
    %p195 = scmp.eq.s32.totalorder %s22, 0
    %p196 = por %p194, %p195
    %s198 = sadd.s32 %s197, 1
    %p201 = scmp.eq.s32.totalorder %s16, 1
    %p202 = scmp.ne.s32.totalorder %s197, %s199
    %p203 = scmp.eq.s32.totalorder %s16, 0
    %p204 = por %p202, %p203
    %p205 = scmp.ne.s32.totalorder %s197, %s199
    %p206 = scmp.eq.s32.totalorder %s21, 1
    %p207 = por %p205, %p206
    %p208 = scmp.ne.s32.totalorder %s199, %s200
    %p209 = scmp.eq.s32.totalorder %s21, 0
    %p210 = por %p208, %p209
    %p211 = scmp.ne.s32.totalorder %s199, %s200
    %p212 = scmp.eq.s32.totalorder %s22, 1
    %p213 = por %p211, %p212
    %p215 = scmp.ne.s32.totalorder %s200, %s214
    %p216 = scmp.eq.s32.totalorder %s22, 0
    %p217 = por %p215, %p216
    %s219 = sadd.s32 %s218, 1
    %p222 = scmp.eq.s32.totalorder %s16, 1
    %p223 = scmp.ne.s32.totalorder %s218, %s220
    %p224 = scmp.eq.s32.totalorder %s16, 0
    %p225 = por %p223, %p224
    %p226 = scmp.ne.s32.totalorder %s218, %s220
    %p227 = scmp.eq.s32.totalorder %s21, 1
    %p228 = por %p226, %p227
    %p229 = scmp.ne.s32.totalorder %s220, %s221
    %p230 = scmp.eq.s32.totalorder %s21, 0
    %p231 = por %p229, %p230
    %p232 = scmp.ne.s32.totalorder %s220, %s221
    %p233 = scmp.eq.s32.totalorder %s22, 1
    %p234 = por %p232, %p233
    %p236 = scmp.ne.s32.totalorder %s221, %s235
    %p237 = scmp.eq.s32.totalorder %s22, 0
    %p238 = por %p236, %p237
    %s239 = ssub.s32 %s16, %s23
    %p240 = scmp.eq.s32.totalorder %s239, 0
    %s242 = sadd.s32 %s241, 1
    %s243 = scalar_select %p240, %s241, %s242
    %p246 = pneg %p240
    %p247 = scmp.eq.s32.totalorder %s16, 1
    %p248 = por %p246, %p247
    %p249 = scmp.ne.s32.totalorder %s241, %s244
    %p250 = scmp.eq.s32.totalorder %s16, 0
    %p251 = por %p249, %p250
    %p252 = scmp.ne.s32.totalorder %s241, %s244
    %p253 = scmp.eq.s32.totalorder %s21, 1
    %p254 = por %p252, %p253
    %p255 = scmp.ne.s32.totalorder %s244, %s245
    %p256 = scmp.eq.s32.totalorder %s21, 0
    %p257 = por %p255, %p256
    %p258 = scmp.ne.s32.totalorder %s244, %s245
    %p259 = scmp.eq.s32.totalorder %s22, 1
    %p260 = por %p258, %p259
    %p262 = scmp.ne.s32.totalorder %s245, %s261
    %p263 = scmp.eq.s32.totalorder %s22, 0
    %p264 = por %p262, %p263
    %p265 = scmp.le.s32.totalorder 1, %s16
    %p266 = scmp.lt.s32.totalorder %s16, 3
    %p267 = pnand %p265, %p266
    %p268 = pneg %p267
    // Predicated region
    $region9: #{tpu_custom_call.1} parent=5 // pred_check
      _
    $region10: #{tpu_custom_call.1} parent=5 // pred_check_branch
      %270 = sbr.rel (%p267) target = $region12
    $region11: #{tpu_custom_call.1} parent=5 // pred_region
      %s271 = ssub.s32 %s16, 1
      // Predicated region
      $region13: #{tpu_custom_call.1} parent=11 // pred_check
        %p272 = pneg %p63
      $region14: #{tpu_custom_call.1} parent=11 // pred_check_branch
        %274 = sbr.rel (%p272) target = $region16
      $region15: #{tpu_custom_call.1} parent=11 // pred_region
        _
      $region16: #{tpu_custom_call.1} parent=11 // pred_fallthru
        _
      // Predicated region
      $region17: #{tpu_custom_call.1} parent=11 // pred_check
        %p275 = pneg %p84
      $region18: #{tpu_custom_call.1} parent=11 // pred_check_branch
        %277 = sbr.rel (%p275) target = $region20
      $region19: #{tpu_custom_call.1} parent=11 // pred_region
        _
      $region20: #{tpu_custom_call.1} parent=11 // pred_fallthru
        _
      // Predicated region
      $region21: #{tpu_custom_call.1} parent=11 // pred_check
        %p278 = pneg %p105
      $region22: #{tpu_custom_call.1} parent=11 // pred_check_branch
        %280 = sbr.rel (%p278) target = $region24
      $region23: #{tpu_custom_call.1} parent=11 // pred_region
        _
      $region24: #{tpu_custom_call.1} parent=11 // pred_fallthru
        _
      // Predicated region
      $region25: #{tpu_custom_call.1} parent=11 // pred_check
        %p281 = pneg %p126
      $region26: #{tpu_custom_call.1} parent=11 // pred_check_branch
        %283 = sbr.rel (%p281) target = $region28
      $region27: #{tpu_custom_call.1} parent=11 // pred_region
        _
      $region28: #{tpu_custom_call.1} parent=11 // pred_fallthru
        _
      // Predicated region
      $region29: #{tpu_custom_call.1} parent=11 // pred_check
        %p284 = pneg %p147
      $region30: #{tpu_custom_call.1} parent=11 // pred_check_branch
        %286 = sbr.rel (%p284) target = $region32
      $region31: #{tpu_custom_call.1} parent=11 // pred_region
        _
      $region32: #{tpu_custom_call.1} parent=11 // pred_fallthru
        _
      // Predicated region
      $region33: #{tpu_custom_call.1} parent=11 // pred_check
        %p287 = pneg %p168
      $region34: #{tpu_custom_call.1} parent=11 // pred_check_branch
        %289 = sbr.rel (%p287) target = $region36
      $region35: #{tpu_custom_call.1} parent=11 // pred_region
        _
      $region36: #{tpu_custom_call.1} parent=11 // pred_fallthru
        _
      // Predicated region
      $region37: #{tpu_custom_call.1} parent=11 // pred_check
        %p290 = pneg %p189
      $region38: #{tpu_custom_call.1} parent=11 // pred_check_branch
        %292 = sbr.rel (%p290) target = $region40
      $region39: #{tpu_custom_call.1} parent=11 // pred_region
        _
      $region40: #{tpu_custom_call.1} parent=11 // pred_fallthru
        _
      // Predicated region
      $region41: #{tpu_custom_call.1} parent=11 // pred_check
        %p293 = pneg %p210
      $region42: #{tpu_custom_call.1} parent=11 // pred_check_branch
        %295 = sbr.rel (%p293) target = $region44
      $region43: #{tpu_custom_call.1} parent=11 // pred_region
        _
      $region44: #{tpu_custom_call.1} parent=11 // pred_fallthru
        _
      // Predicated region
      $region45: #{tpu_custom_call.1} parent=11 // pred_check
        %p296 = pneg %p231
      $region46: #{tpu_custom_call.1} parent=11 // pred_check_branch
        %298 = sbr.rel (%p296) target = $region48
      $region47: #{tpu_custom_call.1} parent=11 // pred_region
        _
      $region48: #{tpu_custom_call.1} parent=11 // pred_fallthru
        _
    $region12: #{tpu_custom_call.1} parent=5 // pred_fallthru
      _
    %p299 = scmp.lt.s32.totalorder %s16, 2
    // Predicated region
    $region49: #{tpu_custom_call.1} parent=5 // pred_check
      %p300 = pneg %p299
    $region50: #{tpu_custom_call.1} parent=5 // pred_check_branch
      %302 = sbr.rel (%p300) target = $region52
    $region51: #{tpu_custom_call.1} parent=5 // pred_region
      // Predicated region
      $region53: #{tpu_custom_call.1} parent=51 // pred_check
        %p303 = pneg %p36
      $region54: #{tpu_custom_call.1} parent=51 // pred_check_branch
        %305 = sbr.rel (%p303) target = $region56
      $region55: #{tpu_custom_call.1} parent=51 // pred_region
        %p306 = scmp.lt.s32.totalorder %s16, 1
        %s307 = scalar_select %p306, %s16, 1
        %s308 = smul.addr %s307, 72
        %s309 = smul.addr %s308, 8
        %s310 = scalar_lea.vmem %s0, %s309
      $region56: #{tpu_custom_call.1} parent=51 // pred_fallthru
        _
    $region52: #{tpu_custom_call.1} parent=5 // pred_fallthru
      _
    %p311 = scmp.le.s32.totalorder 1, %s16
    %p312 = scmp.lt.s32.totalorder %s16, 3
    %p313 = pnand %p311, %p312
    %p314 = pneg %p313
    // Predicated region
    $region57: #{tpu_custom_call.1} parent=5 // pred_check
      _
    $region58: #{tpu_custom_call.1} parent=5 // pred_check_branch
      %316 = sbr.rel (%p313) target = $region60
    $region59: #{tpu_custom_call.1} parent=5 // pred_region
      %s317 = ssub.s32 %s16, 1
      %p318 = scmp.lt.s32.totalorder %s21, 1
      %s319 = scalar_select %p318, %s21, 1
      %s320 = smul.addr %s319, 72
      %s321 = smul.addr %s320, 8
      %s322 = scalar_lea.vmem %s0, %s321
      %p323 = pneg %p42
      %p324 = pneg %p39
      %p325 = pneg %p63
      %p326 = pneg %p60
      %p327 = pneg %p84
      %p328 = pneg %p81
      %p329 = pneg %p105
      %p330 = pneg %p102
      %p331 = pneg %p126
      %p332 = pneg %p123
      %p333 = pneg %p147
      %p334 = pneg %p144
      %p335 = pneg %p168
      %p336 = pneg %p165
      %p337 = pneg %p189
      %p338 = pneg %p186
      %p339 = pneg %p210
      %p340 = pneg %p207
      %p341 = pneg %p231
      %p342 = pneg %p228
      %p343 = pneg %p257
      %p344 = pneg %p254
      %p345 = scmp.lt.s32.totalorder %s21, 1
      %s346 = scalar_select %p345, %s21, 1
      %s347 = smul.addr %s346, 8
      %s348 = smul.addr %s347, 8
      %s349 = scalar_lea.vmem %s10, %s348
      %p350 = scmp.lt.s32.totalorder %s21, 1
      %s351 = scalar_select %p350, %s21, 1
      %s352 = smul.addr %s351, 72
      %s353 = smul.addr %s352, 8
      %s354 = scalar_lea.vmem %s0, %s353
      %p355 = scmp.lt.s32.totalorder %s21, 1
      %s356 = scalar_select %p355, %s21, 1
      %s357 = smul.addr %s356, 8
      %s358 = smul.addr %s357, 8
      %s359 = scalar_lea.vmem %s10, %s358
      %v360 = vld [vmem:[%s354] sm:$0xff]
      %v361 = vld [vmem:[%s354 + $0x10] sm:$0xff]
      %v362 = vld [vmem:[%s354 + $0x20] sm:$0xff]
      %v363 = vld [vmem:[%s354 + $0x30] sm:$0xff]
      %v364 = vld [vmem:[%s354 + $0x40] sm:$0xff]
      %v365 = vld [vmem:[%s354 + $0x50] sm:$0xff]
      %v366 = vld [vmem:[%s354 + $0x60] sm:$0xff]
      %v367 = vld [vmem:[%s354 + $0x70] sm:$0xff]
      %v368 = vld [vmem:[%s1] sm:$0xf]
      %s369 = scalar_lea.vmem %s354, 144
      %v370 = vld [vmem:[%s369] sm:$0xff]
      %v371 = vld [vmem:[%s369 + $0x10] sm:$0xff]
      %v372 = vld [vmem:[%s369 + $0x20] sm:$0xff]
      %v373 = vld [vmem:[%s369 + $0x30] sm:$0xff]
      %v374 = vld [vmem:[%s369 + $0x40] sm:$0xff]
      %v375 = vld [vmem:[%s369 + $0x50] sm:$0xff]
      %v376 = vld [vmem:[%s369 + $0x60] sm:$0xff]
      %v377 = vld [vmem:[%s369 + $0x70] sm:$0xff]
      %s378 = scalar_lea.vmem %s1, 4
      %v379 = vld [vmem:[%s378] sm:$0xf]
      %vm380 = vcmask 31744
      %v382 = vsel %vm380, %v370, 0
      %v385 = vsel %vm380, %v371, 0
      %v388 = vsel %vm380, %v372, 0
      %v391 = vsel %vm380, %v373, 0
      %v394 = vsel %vm380, %v374, 0
      %v397 = vsel %vm380, %v375, 0
      %v400 = vsel %vm380, %v376, 0
      %v403 = vsel %vm380, %v377, 0
      %vm405 = vcmask 1043456
      %v407 = vsel %vm405, %v379, 0
      %409 = vmatprep.subr.mxu0 0.0
      %410 = vmatpush1.msra.mxu0 %v407
      %411 = vmatprep.subr.mxu0 0.0
      %412 = vmatpush1.msra.mxu0 0.0
      %413 = vmatprep.subr.mxu0 0.0
      %414 = vmatpush1.msra.mxu0 0.0
      %415 = vmatprep.subr.mxu0 0.0
      %416 = vmatpush1.msra.mxu0 0.0
      %417 = vmatprep.subr.mxu0 0.0
      %418 = vmatpush1.msra.mxu0 0.0
      %419 = vmatprep.subr.mxu0 0.0
      %420 = vmatpush1.msra.mxu0 0.0
      %421 = vmatprep.subr.mxu0 0.0
      %422 = vmatpush1.msra.mxu0 0.0
      %423 = vmatprep.subr.mxu0 0.0
      %424 = vmatpush1.msra.mxu0 0.0
      %425 = vmatprep.subr.mxu0 0.0
      %426 = vmatpush1.msra.mxu0 0.0
      %427 = vmatprep.subr.mxu0 0.0
      %428 = vmatpush1.msra.mxu0 0.0
      %429 = vmatprep.subr.mxu0 0.0
      %430 = vmatpush1.msra.mxu0 0.0
      %431 = vmatprep.subr.mxu0 0.0
      %432 = vmatpush1.msra.mxu0 0.0
      %433 = vmatprep.subr.mxu0 0.0
      %434 = vmatpush1.msra.mxu0 0.0
      %435 = vmatprep.subr.mxu0 0.0
      %436 = vmatpush1.msra.mxu0 0.0
      %437 = vmatprep.subr.mxu0 0.0
      %438 = vmatpush1.msra.mxu0 0.0
      %439 = vmatprep.subr.mxu0 0.0
      %440 = vmatpush1.msra.mxu0 0.0
      %441 = vmatprep.subr.mxu0 0.0
      %442 = vmatpush1.msra.mxu0 0.0
      %443 = vmatprep.subr.mxu0 0.0
      %444 = vmatpush1.msra.mxu0 0.0
      %445 = vmatprep.subr.mxu0 0.0
      %446 = vmatpush1.msra.mxu0 0.0
      %447 = vmatprep.subr.mxu0 0.0
      %448 = vmatpush1.msra.mxu0 0.0
      %449 = vmatprep.subr.mxu0 0.0
      %450 = vmatpush1.msra.mxu0 0.0
      %451 = vmatprep.subr.mxu0 0.0
      %452 = vmatpush1.msra.mxu0 0.0
      %453 = vmatprep.subr.mxu0 0.0
      %454 = vmatpush1.msra.mxu0 0.0
      %455 = vmatprep.subr.mxu0 0.0
      %456 = vmatpush1.msra.mxu0 0.0
      %457 = vmatprep.subr.mxu0 0.0
      %458 = vmatpush1.msra.mxu0 0.0
      %459 = vmatprep.subr.mxu0 0.0
      %460 = vmatpush1.msra.mxu0 0.0
      %461 = vmatprep.subr.mxu0 0.0
      %462 = vmatpush1.msra.mxu0 0.0
      %463 = vmatprep.subr.mxu0 0.0
      %464 = vmatpush1.msra.mxu0 0.0
      %465 = vmatprep.subr.mxu0 0.0
      %466 = vmatpush1.msra.mxu0 0.0
      %467 = vmatprep.subr.mxu0 0.0
      %468 = vmatpush1.msra.mxu0 0.0
      %469 = vmatprep.subr.mxu0 0.0
      %470 = vmatpush1.msra.mxu0 0.0
      %471 = vmatprep.subr.mxu0 0.0
      %472 = vmatpush1.msra.mxu0 0.0
      %473 = vmatprep.mubr.f32.mxu0 0.0
      %474 = vmatmul.mubr.f32.gmra.mrb[0].mxu0 %v382
      %v475 = vpop.f32.mrb[0].mxu0
      %v476 = vadd.f32 0.0, %v475
      %v477 = vpop.f32.mrb[0].mxu0
      %478 = vmatprep.mubr.f32.mxu0 0.0
      %479 = vmatmul.mubr.f32.gmra.mrb[0].mxu0 %v385
      %v480 = vpop.f32.mrb[0].mxu0
      %v481 = vadd.f32 0.0, %v480
      %v482 = vpop.f32.mrb[0].mxu0
      %483 = vmatprep.mubr.f32.mxu0 0.0
      %484 = vmatmul.mubr.f32.gmra.mrb[0].mxu0 %v388
      %v485 = vpop.f32.mrb[0].mxu0
      %v486 = vadd.f32 0.0, %v485
      %v487 = vpop.f32.mrb[0].mxu0
      %488 = vmatprep.mubr.f32.mxu0 0.0
      %489 = vmatmul.mubr.f32.gmra.mrb[0].mxu0 %v391
      %v490 = vpop.f32.mrb[0].mxu0
      %v491 = vadd.f32 0.0, %v490
      %v492 = vpop.f32.mrb[0].mxu0
      %493 = vmatprep.mubr.f32.mxu0 0.0
      %494 = vmatmul.mubr.f32.gmra.mrb[0].mxu0 %v394
      %v495 = vpop.f32.mrb[0].mxu0
      %v496 = vadd.f32 0.0, %v495
      %v497 = vpop.f32.mrb[0].mxu0
      %498 = vmatprep.mubr.f32.mxu0 0.0
      %499 = vmatmul.mubr.f32.gmra.mrb[0].mxu0 %v397
      %v500 = vpop.f32.mrb[0].mxu0
      %v501 = vadd.f32 0.0, %v500
      %v502 = vpop.f32.mrb[0].mxu0
      %503 = vmatprep.mubr.f32.mxu0 0.0
      %504 = vmatmul.mubr.f32.gmra.mrb[0].mxu0 %v400
      %v505 = vpop.f32.mrb[0].mxu0
      %v506 = vadd.f32 0.0, %v505
      %v507 = vpop.f32.mrb[0].mxu0
      %508 = vmatprep.mubr.f32.mxu0 0.0
      %509 = vmatmul.mubr.f32.gmra.mrb[0].mxu0 %v403
      %v510 = vpop.f32.mrb[0].mxu0
      %v511 = vadd.f32 0.0, %v510
      %v512 = vpop.f32.mrb[0].mxu0
      %513 = vdwg.mxu0
      %v515 = vsel %vm380, %v360, 0
      %v518 = vsel %vm380, %v361, 0
      %v521 = vsel %vm380, %v362, 0
      %v524 = vsel %vm380, %v363, 0
      %v527 = vsel %vm380, %v364, 0
      %v530 = vsel %vm380, %v365, 0
      %v533 = vsel %vm380, %v366, 0
      %v536 = vsel %vm380, %v367, 0
      %v539 = vsel %vm405, %v368, 0
      %541 = vmatprep.subr.mxu0 0.0
      %542 = vmatpush1.msra.mxu0 %v539
      %543 = vmatprep.subr.mxu0 0.0
      %544 = vmatpush1.msra.mxu0 0.0
      %545 = vmatprep.subr.mxu0 0.0
      %546 = vmatpush1.msra.mxu0 0.0
      %547 = vmatprep.subr.mxu0 0.0
      %548 = vmatpush1.msra.mxu0 0.0
      %549 = vmatprep.subr.mxu0 0.0
      %550 = vmatpush1.msra.mxu0 0.0
      %551 = vmatprep.subr.mxu0 0.0
      %552 = vmatpush1.msra.mxu0 0.0
      %553 = vmatprep.subr.mxu0 0.0
      %554 = vmatpush1.msra.mxu0 0.0
      %555 = vmatprep.subr.mxu0 0.0
      %556 = vmatpush1.msra.mxu0 0.0
      %557 = vmatprep.subr.mxu0 0.0
      %558 = vmatpush1.msra.mxu0 0.0
      %559 = vmatprep.subr.mxu0 0.0
      %560 = vmatpush1.msra.mxu0 0.0
      %561 = vmatprep.subr.mxu0 0.0
      %562 = vmatpush1.msra.mxu0 0.0
      %563 = vmatprep.subr.mxu0 0.0
      %564 = vmatpush1.msra.mxu0 0.0
      %565 = vmatprep.subr.mxu0 0.0
      %566 = vmatpush1.msra.mxu0 0.0
      %567 = vmatprep.subr.mxu0 0.0
      %568 = vmatpush1.msra.mxu0 0.0
      %569 = vmatprep.subr.mxu0 0.0
      %570 = vmatpush1.msra.mxu0 0.0
      %571 = vmatprep.subr.mxu0 0.0
      %572 = vmatpush1.msra.mxu0 0.0
      %573 = vmatprep.subr.mxu0 0.0
      %574 = vmatpush1.msra.mxu0 0.0
      %575 = vmatprep.subr.mxu0 0.0
      %576 = vmatpush1.msra.mxu0 0.0
      %577 = vmatprep.subr.mxu0 0.0
      %578 = vmatpush1.msra.mxu0 0.0
      %579 = vmatprep.subr.mxu0 0.0
      %580 = vmatpush1.msra.mxu0 0.0
      %581 = vmatprep.subr.mxu0 0.0
      %582 = vmatpush1.msra.mxu0 0.0
      %583 = vmatprep.subr.mxu0 0.0
      %584 = vmatpush1.msra.mxu0 0.0
      %585 = vmatprep.subr.mxu0 0.0
      %586 = vmatpush1.msra.mxu0 0.0
      %587 = vmatprep.subr.mxu0 0.0
      %588 = vmatpush1.msra.mxu0 0.0
      %589 = vmatprep.subr.mxu0 0.0
      %590 = vmatpush1.msra.mxu0 0.0
      %591 = vmatprep.subr.mxu0 0.0
      %592 = vmatpush1.msra.mxu0 0.0
      %593 = vmatprep.subr.mxu0 0.0
      %594 = vmatpush1.msra.mxu0 0.0
      %595 = vmatprep.subr.mxu0 0.0
      %596 = vmatpush1.msra.mxu0 0.0
      %597 = vmatprep.subr.mxu0 0.0
      %598 = vmatpush1.msra.mxu0 0.0
      %599 = vmatprep.subr.mxu0 0.0
      %600 = vmatpush1.msra.mxu0 0.0
      %601 = vmatprep.subr.mxu0 0.0
      %602 = vmatpush1.msra.mxu0 0.0
      %603 = vmatprep.subr.mxu0 0.0
      %604 = vmatpush1.msra.mxu0 0.0
      %605 = vmatprep.mubr.f32.mxu0 0.0
      %606 = vmatmul.mubr.f32.gmra.mrb[0].mxu0 %v515
      %v607 = vpop.f32.mrb[0].mxu0
      %v608 = vadd.f32 %v476, %v607
      %v609 = vpop.f32.mrb[0].mxu0
      %610 = vmatprep.mubr.f32.mxu0 0.0
      %611 = vmatmul.mubr.f32.gmra.mrb[0].mxu0 %v518
      %v612 = vpop.f32.mrb[0].mxu0
      %v613 = vadd.f32 %v481, %v612
      %v614 = vpop.f32.mrb[0].mxu0
      %615 = vmatprep.mubr.f32.mxu0 0.0
      %616 = vmatmul.mubr.f32.gmra.mrb[0].mxu0 %v521
      %v617 = vpop.f32.mrb[0].mxu0
      %v618 = vadd.f32 %v486, %v617
      %v619 = vpop.f32.mrb[0].mxu0
      %620 = vmatprep.mubr.f32.mxu0 0.0
      %621 = vmatmul.mubr.f32.gmra.mrb[0].mxu0 %v524
      %v622 = vpop.f32.mrb[0].mxu0
      %v623 = vadd.f32 %v491, %v622
      %v624 = vpop.f32.mrb[0].mxu0
      %625 = vmatprep.mubr.f32.mxu0 0.0
      %626 = vmatmul.mubr.f32.gmra.mrb[0].mxu0 %v527
      %v627 = vpop.f32.mrb[0].mxu0
      %v628 = vadd.f32 %v496, %v627
      %v629 = vpop.f32.mrb[0].mxu0
      %630 = vmatprep.mubr.f32.mxu0 0.0
      %631 = vmatmul.mubr.f32.gmra.mrb[0].mxu0 %v530
      %v632 = vpop.f32.mrb[0].mxu0
      %v633 = vadd.f32 %v501, %v632
      %v634 = vpop.f32.mrb[0].mxu0
      %635 = vmatprep.mubr.f32.mxu0 0.0
      %636 = vmatmul.mubr.f32.gmra.mrb[0].mxu0 %v533
      %v637 = vpop.f32.mrb[0].mxu0
      %v638 = vadd.f32 %v506, %v637
      %v639 = vpop.f32.mrb[0].mxu0
      %640 = vmatprep.mubr.f32.mxu0 0.0
      %641 = vmatmul.mubr.f32.gmra.mrb[0].mxu0 %v536
      %v642 = vpop.f32.mrb[0].mxu0
      %v643 = vadd.f32 %v511, %v642
      %v644 = vpop.f32.mrb[0].mxu0
      %645 = vdwg.mxu0
      %v646 = vld [vmem:[%s354 + $0x1] sm:$0xff]
      %v647 = vld [vmem:[%s354 + $0x11] sm:$0xff]
      %v648 = vld [vmem:[%s354 + $0x21] sm:$0xff]
      %v649 = vld [vmem:[%s354 + $0x31] sm:$0xff]
      %v650 = vld [vmem:[%s354 + $0x41] sm:$0xff]
      %v651 = vld [vmem:[%s354 + $0x51] sm:$0xff]
      %v652 = vld [vmem:[%s354 + $0x61] sm:$0xff]
      %v653 = vld [vmem:[%s354 + $0x71] sm:$0xff]
      %s654 = scalar_lea.vmem %s1, 8
      %v655 = vld [vmem:[%s654] sm:$0xf]
      %v657 = vsel %vm380, %v646, 0
      %v660 = vsel %vm380, %v647, 0
      %v663 = vsel %vm380, %v648, 0
      %v666 = vsel %vm380, %v649, 0
      %v669 = vsel %vm380, %v650, 0
      %v672 = vsel %vm380, %v651, 0
      %v675 = vsel %vm380, %v652, 0
      %v678 = vsel %vm380, %v653, 0
      %v681 = vsel %vm405, %v655, 0
      %683 = vmatprep.subr.mxu0 0.0
      %684 = vmatpush1.msra.mxu0 %v681
      %685 = vmatprep.subr.mxu0 0.0
      %686 = vmatpush1.msra.mxu0 0.0
      %687 = vmatprep.subr.mxu0 0.0
      %688 = vmatpush1.msra.mxu0 0.0
      %689 = vmatprep.subr.mxu0 0.0
      %690 = vmatpush1.msra.mxu0 0.0
      %691 = vmatprep.subr.mxu0 0.0
      %692 = vmatpush1.msra.mxu0 0.0
      %693 = vmatprep.subr.mxu0 0.0
      %694 = vmatpush1.msra.mxu0 0.0
      %695 = vmatprep.subr.mxu0 0.0
      %696 = vmatpush1.msra.mxu0 0.0
      %697 = vmatprep.subr.mxu0 0.0
      %698 = vmatpush1.msra.mxu0 0.0
      %699 = vmatprep.subr.mxu0 0.0
      %700 = vmatpush1.msra.mxu0 0.0
      %701 = vmatprep.subr.mxu0 0.0
      %702 = vmatpush1.msra.mxu0 0.0
      %703 = vmatprep.subr.mxu0 0.0
      %704 = vmatpush1.msra.mxu0 0.0
      %705 = vmatprep.subr.mxu0 0.0
      %706 = vmatpush1.msra.mxu0 0.0
      %707 = vmatprep.subr.mxu0 0.0
      %708 = vmatpush1.msra.mxu0 0.0
      %709 = vmatprep.subr.mxu0 0.0
      %710 = vmatpush1.msra.mxu0 0.0
      %711 = vmatprep.subr.mxu0 0.0
      %712 = vmatpush1.msra.mxu0 0.0
      %713 = vmatprep.subr.mxu0 0.0
      %714 = vmatpush1.msra.mxu0 0.0
      %715 = vmatprep.subr.mxu0 0.0
      %716 = vmatpush1.msra.mxu0 0.0
      %717 = vmatprep.subr.mxu0 0.0
      %718 = vmatpush1.msra.mxu0 0.0
      %719 = vmatprep.subr.mxu0 0.0
      %720 = vmatpush1.msra.mxu0 0.0
      %721 = vmatprep.subr.mxu0 0.0
      %722 = vmatpush1.msra.mxu0 0.0
      %723 = vmatprep.subr.mxu0 0.0
      %724 = vmatpush1.msra.mxu0 0.0
      %725 = vmatprep.subr.mxu0 0.0
      %726 = vmatpush1.msra.mxu0 0.0
      %727 = vmatprep.subr.mxu0 0.0
      %728 = vmatpush1.msra.mxu0 0.0
      %729 = vmatprep.subr.mxu0 0.0
      %730 = vmatpush1.msra.mxu0 0.0
      %731 = vmatprep.subr.mxu0 0.0
      %732 = vmatpush1.msra.mxu0 0.0
      %733 = vmatprep.subr.mxu0 0.0
      %734 = vmatpush1.msra.mxu0 0.0
      %735 = vmatprep.subr.mxu0 0.0
      %736 = vmatpush1.msra.mxu0 0.0
      %737 = vmatprep.subr.mxu0 0.0
      %738 = vmatpush1.msra.mxu0 0.0
      %739 = vmatprep.subr.mxu0 0.0
      %740 = vmatpush1.msra.mxu0 0.0
      %741 = vmatprep.subr.mxu0 0.0
      %742 = vmatpush1.msra.mxu0 0.0
      %743 = vmatprep.subr.mxu0 0.0
      %744 = vmatpush1.msra.mxu0 0.0
      %745 = vmatprep.subr.mxu0 0.0
      %746 = vmatpush1.msra.mxu0 0.0
      %747 = vmatprep.mubr.f32.mxu0 0.0
      %748 = vmatmul.mubr.f32.gmra.mrb[0].mxu0 %v657
      %v749 = vpop.f32.mrb[0].mxu0
      %v750 = vadd.f32 0.0, %v749
      %v751 = vpop.f32.mrb[0].mxu0
      %752 = vmatprep.mubr.f32.mxu0 0.0
      %753 = vmatmul.mubr.f32.gmra.mrb[0].mxu0 %v660
      %v754 = vpop.f32.mrb[0].mxu0
      %v755 = vadd.f32 0.0, %v754
      %v756 = vpop.f32.mrb[0].mxu0
      %757 = vmatprep.mubr.f32.mxu0 0.0
      %758 = vmatmul.mubr.f32.gmra.mrb[0].mxu0 %v663
      %v759 = vpop.f32.mrb[0].mxu0
      %v760 = vadd.f32 0.0, %v759
      %v761 = vpop.f32.mrb[0].mxu0
      %762 = vmatprep.mubr.f32.mxu0 0.0
      %763 = vmatmul.mubr.f32.gmra.mrb[0].mxu0 %v666
      %v764 = vpop.f32.mrb[0].mxu0
      %v765 = vadd.f32 0.0, %v764
      %v766 = vpop.f32.mrb[0].mxu0
      %767 = vmatprep.mubr.f32.mxu0 0.0
      %768 = vmatmul.mubr.f32.gmra.mrb[0].mxu0 %v669
      %v769 = vpop.f32.mrb[0].mxu0
      %v770 = vadd.f32 0.0, %v769
      %v771 = vpop.f32.mrb[0].mxu0
      %772 = vmatprep.mubr.f32.mxu0 0.0
      %773 = vmatmul.mubr.f32.gmra.mrb[0].mxu0 %v672
      %v774 = vpop.f32.mrb[0].mxu0
      %v775 = vadd.f32 0.0, %v774
      %v776 = vpop.f32.mrb[0].mxu0
      %777 = vmatprep.mubr.f32.mxu0 0.0
      %778 = vmatmul.mubr.f32.gmra.mrb[0].mxu0 %v675
      %v779 = vpop.f32.mrb[0].mxu0
      %v780 = vadd.f32 0.0, %v779
      %v781 = vpop.f32.mrb[0].mxu0
      %782 = vmatprep.mubr.f32.mxu0 0.0
      %783 = vmatmul.mubr.f32.gmra.mrb[0].mxu0 %v678
      %v784 = vpop.f32.mrb[0].mxu0
      %v785 = vadd.f32 0.0, %v784
      %v786 = vpop.f32.mrb[0].mxu0
      %787 = vdwg.mxu0
      %v788 = vadd.f32 %v608, %v750
      %v789 = vadd.f32 %v613, %v755
      %v790 = vadd.f32 %v618, %v760
      %v791 = vadd.f32 %v623, %v765
      %v792 = vadd.f32 %v628, %v770
      %v793 = vadd.f32 %v633, %v775
      %v794 = vadd.f32 %v638, %v780
      %v795 = vadd.f32 %v643, %v785
      %s796 = scalar_lea.vmem %s354, 288
      %v797 = vld [vmem:[%s796] sm:$0xff]
      %v798 = vld [vmem:[%s796 + $0x10] sm:$0xff]
      %v799 = vld [vmem:[%s796 + $0x20] sm:$0xff]
      %v800 = vld [vmem:[%s796 + $0x30] sm:$0xff]
      %v801 = vld [vmem:[%s796 + $0x40] sm:$0xff]
      %v802 = vld [vmem:[%s796 + $0x50] sm:$0xff]
      %v803 = vld [vmem:[%s796 + $0x60] sm:$0xff]
      %v804 = vld [vmem:[%s796 + $0x70] sm:$0xff]
      %s805 = scalar_lea.vmem %s1, 12
      %v806 = vld [vmem:[%s805] sm:$0xf]
      %v808 = vsel %vm380, %v797, 0
      %v811 = vsel %vm380, %v798, 0
      %v814 = vsel %vm380, %v799, 0
      %v817 = vsel %vm380, %v800, 0
      %v820 = vsel %vm380, %v801, 0
      %v823 = vsel %vm380, %v802, 0
      %v826 = vsel %vm380, %v803, 0
      %v829 = vsel %vm380, %v804, 0
      %v832 = vsel %vm405, %v806, 0
      %834 = vmatprep.subr.mxu0 0.0
      %835 = vmatpush1.msra.mxu0 %v832
      %836 = vmatprep.subr.mxu0 0.0
      %837 = vmatpush1.msra.mxu0 0.0
      %838 = vmatprep.subr.mxu0 0.0
      %839 = vmatpush1.msra.mxu0 0.0
      %840 = vmatprep.subr.mxu0 0.0
      %841 = vmatpush1.msra.mxu0 0.0
      %842 = vmatprep.subr.mxu0 0.0
      %843 = vmatpush1.msra.mxu0 0.0
      %844 = vmatprep.subr.mxu0 0.0
      %845 = vmatpush1.msra.mxu0 0.0
      %846 = vmatprep.subr.mxu0 0.0
      %847 = vmatpush1.msra.mxu0 0.0
      %848 = vmatprep.subr.mxu0 0.0
      %849 = vmatpush1.msra.mxu0 0.0
      %850 = vmatprep.subr.mxu0 0.0
      %851 = vmatpush1.msra.mxu0 0.0
      %852 = vmatprep.subr.mxu0 0.0
      %853 = vmatpush1.msra.mxu0 0.0
      %854 = vmatprep.subr.mxu0 0.0
      %855 = vmatpush1.msra.mxu0 0.0
      %856 = vmatprep.subr.mxu0 0.0
      %857 = vmatpush1.msra.mxu0 0.0
      %858 = vmatprep.subr.mxu0 0.0
      %859 = vmatpush1.msra.mxu0 0.0
      %860 = vmatprep.subr.mxu0 0.0
      %861 = vmatpush1.msra.mxu0 0.0
      %862 = vmatprep.subr.mxu0 0.0
      %863 = vmatpush1.msra.mxu0 0.0
      %864 = vmatprep.subr.mxu0 0.0
      %865 = vmatpush1.msra.mxu0 0.0
      %866 = vmatprep.subr.mxu0 0.0
      %867 = vmatpush1.msra.mxu0 0.0
      %868 = vmatprep.subr.mxu0 0.0
      %869 = vmatpush1.msra.mxu0 0.0
      %870 = vmatprep.subr.mxu0 0.0
      %871 = vmatpush1.msra.mxu0 0.0
      %872 = vmatprep.subr.mxu0 0.0
      %873 = vmatpush1.msra.mxu0 0.0
      %874 = vmatprep.subr.mxu0 0.0
      %875 = vmatpush1.msra.mxu0 0.0
      %876 = vmatprep.subr.mxu0 0.0
      %877 = vmatpush1.msra.mxu0 0.0
      %878 = vmatprep.subr.mxu0 0.0
      %879 = vmatpush1.msra.mxu0 0.0
      %880 = vmatprep.subr.mxu0 0.0
      %881 = vmatpush1.msra.mxu0 0.0
      %882 = vmatprep.subr.mxu0 0.0
      %883 = vmatpush1.msra.mxu0 0.0
      %884 = vmatprep.subr.mxu0 0.0
      %885 = vmatpush1.msra.mxu0 0.0
      %886 = vmatprep.subr.mxu0 0.0
      %887 = vmatpush1.msra.mxu0 0.0
      %888 = vmatprep.subr.mxu0 0.0
      %889 = vmatpush1.msra.mxu0 0.0
      %890 = vmatprep.subr.mxu0 0.0
      %891 = vmatpush1.msra.mxu0 0.0
      %892 = vmatprep.subr.mxu0 0.0
      %893 = vmatpush1.msra.mxu0 0.0
      %894 = vmatprep.subr.mxu0 0.0
      %895 = vmatpush1.msra.mxu0 0.0
      %896 = vmatprep.subr.mxu0 0.0
      %897 = vmatpush1.msra.mxu0 0.0
      %898 = vmatprep.mubr.f32.mxu0 0.0
      %899 = vmatmul.mubr.f32.gmra.mrb[0].mxu0 %v808
      %v900 = vpop.f32.mrb[0].mxu0
      %v901 = vadd.f32 0.0, %v900
      %v902 = vpop.f32.mrb[0].mxu0
      %903 = vmatprep.mubr.f32.mxu0 0.0
      %904 = vmatmul.mubr.f32.gmra.mrb[0].mxu0 %v811
      %v905 = vpop.f32.mrb[0].mxu0
      %v906 = vadd.f32 0.0, %v905
      %v907 = vpop.f32.mrb[0].mxu0
      %908 = vmatprep.mubr.f32.mxu0 0.0
      %909 = vmatmul.mubr.f32.gmra.mrb[0].mxu0 %v814
      %v910 = vpop.f32.mrb[0].mxu0
      %v911 = vadd.f32 0.0, %v910
      %v912 = vpop.f32.mrb[0].mxu0
      %913 = vmatprep.mubr.f32.mxu0 0.0
      %914 = vmatmul.mubr.f32.gmra.mrb[0].mxu0 %v817
      %v915 = vpop.f32.mrb[0].mxu0
      %v916 = vadd.f32 0.0, %v915
      %v917 = vpop.f32.mrb[0].mxu0
      %918 = vmatprep.mubr.f32.mxu0 0.0
      %919 = vmatmul.mubr.f32.gmra.mrb[0].mxu0 %v820
      %v920 = vpop.f32.mrb[0].mxu0
      %v921 = vadd.f32 0.0, %v920
      %v922 = vpop.f32.mrb[0].mxu0
      %923 = vmatprep.mubr.f32.mxu0 0.0
      %924 = vmatmul.mubr.f32.gmra.mrb[0].mxu0 %v823
      %v925 = vpop.f32.mrb[0].mxu0
      %v926 = vadd.f32 0.0, %v925
      %v927 = vpop.f32.mrb[0].mxu0
      %928 = vmatprep.mubr.f32.mxu0 0.0
      %929 = vmatmul.mubr.f32.gmra.mrb[0].mxu0 %v826
      %v930 = vpop.f32.mrb[0].mxu0
      %v931 = vadd.f32 0.0, %v930
      %v932 = vpop.f32.mrb[0].mxu0
      %933 = vmatprep.mubr.f32.mxu0 0.0
      %934 = vmatmul.mubr.f32.gmra.mrb[0].mxu0 %v829
      %v935 = vpop.f32.mrb[0].mxu0
      %v936 = vadd.f32 0.0, %v935
      %v937 = vpop.f32.mrb[0].mxu0
      %938 = vdwg.mxu0
      %v939 = vadd.f32 %v788, %v901
      %v940 = vadd.f32 %v789, %v906
      %v941 = vadd.f32 %v790, %v911
      %v942 = vadd.f32 %v791, %v916
      %v943 = vadd.f32 %v792, %v921
      %v944 = vadd.f32 %v793, %v926
      %v945 = vadd.f32 %v794, %v931
      %v946 = vadd.f32 %v795, %v936
      %s947 = scalar_lea.vmem %s354, 432
      %v948 = vld [vmem:[%s947] sm:$0xff]
      %v949 = vld [vmem:[%s947 + $0x10] sm:$0xff]
      %v950 = vld [vmem:[%s947 + $0x20] sm:$0xff]
      %v951 = vld [vmem:[%s947 + $0x30] sm:$0xff]
      %v952 = vld [vmem:[%s947 + $0x40] sm:$0xff]
      %v953 = vld [vmem:[%s947 + $0x50] sm:$0xff]
      %v954 = vld [vmem:[%s947 + $0x60] sm:$0xff]
      %v955 = vld [vmem:[%s947 + $0x70] sm:$0xff]
      %s956 = scalar_lea.vmem %s1, 16
      %v957 = vld [vmem:[%s956] sm:$0xf]
      %v959 = vsel %vm380, %v948, 0
      %v962 = vsel %vm380, %v949, 0
      %v965 = vsel %vm380, %v950, 0
      %v968 = vsel %vm380, %v951, 0
      %v971 = vsel %vm380, %v952, 0
      %v974 = vsel %vm380, %v953, 0
      %v977 = vsel %vm380, %v954, 0
      %v980 = vsel %vm380, %v955, 0
      %v983 = vsel %vm405, %v957, 0
      %985 = vmatprep.subr.mxu0 0.0
      %986 = vmatpush1.msra.mxu0 %v983
      %987 = vmatprep.subr.mxu0 0.0
      %988 = vmatpush1.msra.mxu0 0.0
      %989 = vmatprep.subr.mxu0 0.0
      %990 = vmatpush1.msra.mxu0 0.0
      %991 = vmatprep.subr.mxu0 0.0
      %992 = vmatpush1.msra.mxu0 0.0
      %993 = vmatprep.subr.mxu0 0.0
      %994 = vmatpush1.msra.mxu0 0.0
      %995 = vmatprep.subr.mxu0 0.0
      %996 = vmatpush1.msra.mxu0 0.0
      %997 = vmatprep.subr.mxu0 0.0
      %998 = vmatpush1.msra.mxu0 0.0
      %999 = vmatprep.subr.mxu0 0.0
      %1000 = vmatpush1.msra.mxu0 0.0
      %1001 = vmatprep.subr.mxu0 0.0
      %1002 = vmatpush1.msra.mxu0 0.0
      %1003 = vmatprep.subr.mxu0 0.0
      %1004 = vmatpush1.msra.mxu0 0.0
      %1005 = vmatprep.subr.mxu0 0.0
      %1006 = vmatpush1.msra.mxu0 0.0
      %1007 = vmatprep.subr.mxu0 0.0
      %1008 = vmatpush1.msra.mxu0 0.0
      %1009 = vmatprep.subr.mxu0 0.0
      %1010 = vmatpush1.msra.mxu0 0.0
      %1011 = vmatprep.subr.mxu0 0.0
      %1012 = vmatpush1.msra.mxu0 0.0
      %1013 = vmatprep.subr.mxu0 0.0
      %1014 = vmatpush1.msra.mxu0 0.0
      %1015 = vmatprep.subr.mxu0 0.0
      %1016 = vmatpush1.msra.mxu0 0.0
      %1017 = vmatprep.subr.mxu0 0.0
      %1018 = vmatpush1.msra.mxu0 0.0
      %1019 = vmatprep.subr.mxu0 0.0
      %1020 = vmatpush1.msra.mxu0 0.0
      %1021 = vmatprep.subr.mxu0 0.0
      %1022 = vmatpush1.msra.mxu0 0.0
      %1023 = vmatprep.subr.mxu0 0.0
      %1024 = vmatpush1.msra.mxu0 0.0
      %1025 = vmatprep.subr.mxu0 0.0
      %1026 = vmatpush1.msra.mxu0 0.0
      %1027 = vmatprep.subr.mxu0 0.0
      %1028 = vmatpush1.msra.mxu0 0.0
      %1029 = vmatprep.subr.mxu0 0.0
      %1030 = vmatpush1.msra.mxu0 0.0
      %1031 = vmatprep.subr.mxu0 0.0
      %1032 = vmatpush1.msra.mxu0 0.0
      %1033 = vmatprep.subr.mxu0 0.0
      %1034 = vmatpush1.msra.mxu0 0.0
      %1035 = vmatprep.subr.mxu0 0.0
      %1036 = vmatpush1.msra.mxu0 0.0
      %1037 = vmatprep.subr.mxu0 0.0
      %1038 = vmatpush1.msra.mxu0 0.0
      %1039 = vmatprep.subr.mxu0 0.0
      %1040 = vmatpush1.msra.mxu0 0.0
      %1041 = vmatprep.subr.mxu0 0.0
      %1042 = vmatpush1.msra.mxu0 0.0
      %1043 = vmatprep.subr.mxu0 0.0
      %1044 = vmatpush1.msra.mxu0 0.0
      %1045 = vmatprep.subr.mxu0 0.0
      %1046 = vmatpush1.msra.mxu0 0.0
      %1047 = vmatprep.subr.mxu0 0.0
      %1048 = vmatpush1.msra.mxu0 0.0
      %1049 = vmatprep.mubr.f32.mxu0 0.0
      %1050 = vmatmul.mubr.f32.gmra.mrb[0].mxu0 %v959
      %v1051 = vpop.f32.mrb[0].mxu0
      %v1052 = vadd.f32 0.0, %v1051
      %v1053 = vpop.f32.mrb[0].mxu0
      %1054 = vmatprep.mubr.f32.mxu0 0.0
      %1055 = vmatmul.mubr.f32.gmra.mrb[0].mxu0 %v962
      %v1056 = vpop.f32.mrb[0].mxu0
      %v1057 = vadd.f32 0.0, %v1056
      %v1058 = vpop.f32.mrb[0].mxu0
      %1059 = vmatprep.mubr.f32.mxu0 0.0
      %1060 = vmatmul.mubr.f32.gmra.mrb[0].mxu0 %v965
      %v1061 = vpop.f32.mrb[0].mxu0
      %v1062 = vadd.f32 0.0, %v1061
      %v1063 = vpop.f32.mrb[0].mxu0
      %1064 = vmatprep.mubr.f32.mxu0 0.0
      %1065 = vmatmul.mubr.f32.gmra.mrb[0].mxu0 %v968
      %v1066 = vpop.f32.mrb[0].mxu0
      %v1067 = vadd.f32 0.0, %v1066
      %v1068 = vpop.f32.mrb[0].mxu0
      %1069 = vmatprep.mubr.f32.mxu0 0.0
      %1070 = vmatmul.mubr.f32.gmra.mrb[0].mxu0 %v971
      %v1071 = vpop.f32.mrb[0].mxu0
      %v1072 = vadd.f32 0.0, %v1071
      %v1073 = vpop.f32.mrb[0].mxu0
      %1074 = vmatprep.mubr.f32.mxu0 0.0
      %1075 = vmatmul.mubr.f32.gmra.mrb[0].mxu0 %v974
      %v1076 = vpop.f32.mrb[0].mxu0
      %v1077 = vadd.f32 0.0, %v1076
      %v1078 = vpop.f32.mrb[0].mxu0
      %1079 = vmatprep.mubr.f32.mxu0 0.0
      %1080 = vmatmul.mubr.f32.gmra.mrb[0].mxu0 %v977
      %v1081 = vpop.f32.mrb[0].mxu0
      %v1082 = vadd.f32 0.0, %v1081
      %v1083 = vpop.f32.mrb[0].mxu0
      %1084 = vmatprep.mubr.f32.mxu0 0.0
      %1085 = vmatmul.mubr.f32.gmra.mrb[0].mxu0 %v980
      %v1086 = vpop.f32.mrb[0].mxu0
      %v1087 = vadd.f32 0.0, %v1086
      %v1088 = vpop.f32.mrb[0].mxu0
      %1089 = vdwg.mxu0
      %v1090 = vadd.f32 %v939, %v1052
      %v1091 = vadd.f32 %v940, %v1057
      %v1092 = vadd.f32 %v941, %v1062
      %v1093 = vadd.f32 %v942, %v1067
      %v1094 = vadd.f32 %v943, %v1072
      %v1095 = vadd.f32 %v944, %v1077
      %v1096 = vadd.f32 %v945, %v1082
      %v1097 = vadd.f32 %v946, %v1087
      %v1098 = vld [vmem:[%s796 + $0x1] sm:$0xff]
      %v1099 = vld [vmem:[%s796 + $0x11] sm:$0xff]
      %v1100 = vld [vmem:[%s796 + $0x21] sm:$0xff]
      %v1101 = vld [vmem:[%s796 + $0x31] sm:$0xff]
      %v1102 = vld [vmem:[%s796 + $0x41] sm:$0xff]
      %v1103 = vld [vmem:[%s796 + $0x51] sm:$0xff]
      %v1104 = vld [vmem:[%s796 + $0x61] sm:$0xff]
      %v1105 = vld [vmem:[%s796 + $0x71] sm:$0xff]
      %s1106 = scalar_lea.vmem %s1, 20
      %v1107 = vld [vmem:[%s1106] sm:$0xf]
      %v1109 = vsel %vm380, %v1098, 0
      %v1112 = vsel %vm380, %v1099, 0
      %v1115 = vsel %vm380, %v1100, 0
      %v1118 = vsel %vm380, %v1101, 0
      %v1121 = vsel %vm380, %v1102, 0
      %v1124 = vsel %vm380, %v1103, 0
      %v1127 = vsel %vm380, %v1104, 0
      %v1130 = vsel %vm380, %v1105, 0
      %v1133 = vsel %vm405, %v1107, 0
      %1135 = vmatprep.subr.mxu0 0.0
      %1136 = vmatpush1.msra.mxu0 %v1133
      %1137 = vmatprep.subr.mxu0 0.0
      %1138 = vmatpush1.msra.mxu0 0.0
      %1139 = vmatprep.subr.mxu0 0.0
      %1140 = vmatpush1.msra.mxu0 0.0
      %1141 = vmatprep.subr.mxu0 0.0
      %1142 = vmatpush1.msra.mxu0 0.0
      %1143 = vmatprep.subr.mxu0 0.0
      %1144 = vmatpush1.msra.mxu0 0.0
      %1145 = vmatprep.subr.mxu0 0.0
      %1146 = vmatpush1.msra.mxu0 0.0
      %1147 = vmatprep.subr.mxu0 0.0
      %1148 = vmatpush1.msra.mxu0 0.0
      %1149 = vmatprep.subr.mxu0 0.0
      %1150 = vmatpush1.msra.mxu0 0.0
      %1151 = vmatprep.subr.mxu0 0.0
      %1152 = vmatpush1.msra.mxu0 0.0
      %1153 = vmatprep.subr.mxu0 0.0
      %1154 = vmatpush1.msra.mxu0 0.0
      %1155 = vmatprep.subr.mxu0 0.0
      %1156 = vmatpush1.msra.mxu0 0.0
      %1157 = vmatprep.subr.mxu0 0.0
      %1158 = vmatpush1.msra.mxu0 0.0
      %1159 = vmatprep.subr.mxu0 0.0
      %1160 = vmatpush1.msra.mxu0 0.0
      %1161 = vmatprep.subr.mxu0 0.0
      %1162 = vmatpush1.msra.mxu0 0.0
      %1163 = vmatprep.subr.mxu0 0.0
      %1164 = vmatpush1.msra.mxu0 0.0
      %1165 = vmatprep.subr.mxu0 0.0
      %1166 = vmatpush1.msra.mxu0 0.0
      %1167 = vmatprep.subr.mxu0 0.0
      %1168 = vmatpush1.msra.mxu0 0.0
      %1169 = vmatprep.subr.mxu0 0.0
      %1170 = vmatpush1.msra.mxu0 0.0
      %1171 = vmatprep.subr.mxu0 0.0
      %1172 = vmatpush1.msra.mxu0 0.0
      %1173 = vmatprep.subr.mxu0 0.0
      %1174 = vmatpush1.msra.mxu0 0.0
      %1175 = vmatprep.subr.mxu0 0.0
      %1176 = vmatpush1.msra.mxu0 0.0
      %1177 = vmatprep.subr.mxu0 0.0
      %1178 = vmatpush1.msra.mxu0 0.0
      %1179 = vmatprep.subr.mxu0 0.0
      %1180 = vmatpush1.msra.mxu0 0.0
      %1181 = vmatprep.subr.mxu0 0.0
      %1182 = vmatpush1.msra.mxu0 0.0
      %1183 = vmatprep.subr.mxu0 0.0
      %1184 = vmatpush1.msra.mxu0 0.0
      %1185 = vmatprep.subr.mxu0 0.0
      %1186 = vmatpush1.msra.mxu0 0.0
      %1187 = vmatprep.subr.mxu0 0.0
      %1188 = vmatpush1.msra.mxu0 0.0
      %1189 = vmatprep.subr.mxu0 0.0
      %1190 = vmatpush1.msra.mxu0 0.0
      %1191 = vmatprep.subr.mxu0 0.0
      %1192 = vmatpush1.msra.mxu0 0.0
      %1193 = vmatprep.subr.mxu0 0.0
      %1194 = vmatpush1.msra.mxu0 0.0
      %1195 = vmatprep.subr.mxu0 0.0
      %1196 = vmatpush1.msra.mxu0 0.0
      %1197 = vmatprep.subr.mxu0 0.0
      %1198 = vmatpush1.msra.mxu0 0.0
      %1199 = vmatprep.mubr.f32.mxu0 0.0
      %1200 = vmatmul.mubr.f32.gmra.mrb[0].mxu0 %v1109
      %v1201 = vpop.f32.mrb[0].mxu0
      %v1202 = vadd.f32 0.0, %v1201
      %v1203 = vpop.f32.mrb[0].mxu0
      %1204 = vmatprep.mubr.f32.mxu0 0.0
      %1205 = vmatmul.mubr.f32.gmra.mrb[0].mxu0 %v1112
      %v1206 = vpop.f32.mrb[0].mxu0
      %v1207 = vadd.f32 0.0, %v1206
      %v1208 = vpop.f32.mrb[0].mxu0
      %1209 = vmatprep.mubr.f32.mxu0 0.0
      %1210 = vmatmul.mubr.f32.gmra.mrb[0].mxu0 %v1115
      %v1211 = vpop.f32.mrb[0].mxu0
      %v1212 = vadd.f32 0.0, %v1211
      %v1213 = vpop.f32.mrb[0].mxu0
      %1214 = vmatprep.mubr.f32.mxu0 0.0
      %1215 = vmatmul.mubr.f32.gmra.mrb[0].mxu0 %v1118
      %v1216 = vpop.f32.mrb[0].mxu0
      %v1217 = vadd.f32 0.0, %v1216
      %v1218 = vpop.f32.mrb[0].mxu0
      %1219 = vmatprep.mubr.f32.mxu0 0.0
      %1220 = vmatmul.mubr.f32.gmra.mrb[0].mxu0 %v1121
      %v1221 = vpop.f32.mrb[0].mxu0
      %v1222 = vadd.f32 0.0, %v1221
      %v1223 = vpop.f32.mrb[0].mxu0
      %1224 = vmatprep.mubr.f32.mxu0 0.0
      %1225 = vmatmul.mubr.f32.gmra.mrb[0].mxu0 %v1124
      %v1226 = vpop.f32.mrb[0].mxu0
      %v1227 = vadd.f32 0.0, %v1226
      %v1228 = vpop.f32.mrb[0].mxu0
      %1229 = vmatprep.mubr.f32.mxu0 0.0
      %1230 = vmatmul.mubr.f32.gmra.mrb[0].mxu0 %v1127
      %v1231 = vpop.f32.mrb[0].mxu0
      %v1232 = vadd.f32 0.0, %v1231
      %v1233 = vpop.f32.mrb[0].mxu0
      %1234 = vmatprep.mubr.f32.mxu0 0.0
      %1235 = vmatmul.mubr.f32.gmra.mrb[0].mxu0 %v1130
      %v1236 = vpop.f32.mrb[0].mxu0
      %v1237 = vadd.f32 0.0, %v1236
      %v1238 = vpop.f32.mrb[0].mxu0
      %1239 = vdwg.mxu0
      %v1240 = vadd.f32 %v1090, %v1202
      %v1241 = vadd.f32 %v1091, %v1207
      %v1242 = vadd.f32 %v1092, %v1212
      %v1243 = vadd.f32 %v1093, %v1217
      %v1244 = vadd.f32 %v1094, %v1222
      %v1245 = vadd.f32 %v1095, %v1227
      %v1246 = vadd.f32 %v1096, %v1232
      %v1247 = vadd.f32 %v1097, %v1237
      %s1248 = scalar_lea.vmem %s354, 16
      %v1249 = vld [vmem:[%s1248] sm:$0xff]
      %v1250 = vld [vmem:[%s1248 + $0x10] sm:$0xff]
      %v1251 = vld [vmem:[%s1248 + $0x20] sm:$0xff]
      %v1252 = vld [vmem:[%s1248 + $0x30] sm:$0xff]
      %v1253 = vld [vmem:[%s1248 + $0x40] sm:$0xff]
      %v1254 = vld [vmem:[%s1248 + $0x50] sm:$0xff]
      %v1255 = vld [vmem:[%s1248 + $0x60] sm:$0xff]
      %v1256 = vld [vmem:[%s1248 + $0x70] sm:$0xff]
      %s1257 = scalar_lea.vmem %s1, 24
      %v1258 = vld [vmem:[%s1257] sm:$0xf]
      %v1260 = vsel %vm380, %v1249, 0
      %v1263 = vsel %vm380, %v1250, 0
      %v1266 = vsel %vm380, %v1251, 0
      %v1269 = vsel %vm380, %v1252, 0
      %v1272 = vsel %vm380, %v1253, 0
      %v1275 = vsel %vm380, %v1254, 0
      %v1278 = vsel %vm380, %v1255, 0
      %v1281 = vsel %vm380, %v1256, 0
      %v1284 = vsel %vm405, %v1258, 0
      %1286 = vmatprep.subr.mxu0 0.0
      %1287 = vmatpush1.msra.mxu0 %v1284
      %1288 = vmatprep.subr.mxu0 0.0
      %1289 = vmatpush1.msra.mxu0 0.0
      %1290 = vmatprep.subr.mxu0 0.0
      %1291 = vmatpush1.msra.mxu0 0.0
      %1292 = vmatprep.subr.mxu0 0.0
      %1293 = vmatpush1.msra.mxu0 0.0
      %1294 = vmatprep.subr.mxu0 0.0
      %1295 = vmatpush1.msra.mxu0 0.0
      %1296 = vmatprep.subr.mxu0 0.0
      %1297 = vmatpush1.msra.mxu0 0.0
      %1298 = vmatprep.subr.mxu0 0.0
      %1299 = vmatpush1.msra.mxu0 0.0
      %1300 = vmatprep.subr.mxu0 0.0
      %1301 = vmatpush1.msra.mxu0 0.0
      %1302 = vmatprep.subr.mxu0 0.0
      %1303 = vmatpush1.msra.mxu0 0.0
      %1304 = vmatprep.subr.mxu0 0.0
      %1305 = vmatpush1.msra.mxu0 0.0
      %1306 = vmatprep.subr.mxu0 0.0
      %1307 = vmatpush1.msra.mxu0 0.0
      %1308 = vmatprep.subr.mxu0 0.0
      %1309 = vmatpush1.msra.mxu0 0.0
      %1310 = vmatprep.subr.mxu0 0.0
      %1311 = vmatpush1.msra.mxu0 0.0
      %1312 = vmatprep.subr.mxu0 0.0
      %1313 = vmatpush1.msra.mxu0 0.0
      %1314 = vmatprep.subr.mxu0 0.0
      %1315 = vmatpush1.msra.mxu0 0.0
      %1316 = vmatprep.subr.mxu0 0.0
      %1317 = vmatpush1.msra.mxu0 0.0
      %1318 = vmatprep.subr.mxu0 0.0
      %1319 = vmatpush1.msra.mxu0 0.0
      %1320 = vmatprep.subr.mxu0 0.0
      %1321 = vmatpush1.msra.mxu0 0.0
      %1322 = vmatprep.subr.mxu0 0.0
      %1323 = vmatpush1.msra.mxu0 0.0
      %1324 = vmatprep.subr.mxu0 0.0
      %1325 = vmatpush1.msra.mxu0 0.0
      %1326 = vmatprep.subr.mxu0 0.0
      %1327 = vmatpush1.msra.mxu0 0.0
      %1328 = vmatprep.subr.mxu0 0.0
      %1329 = vmatpush1.msra.mxu0 0.0
      %1330 = vmatprep.subr.mxu0 0.0
      %1331 = vmatpush1.msra.mxu0 0.0
      %1332 = vmatprep.subr.mxu0 0.0
      %1333 = vmatpush1.msra.mxu0 0.0
      %1334 = vmatprep.subr.mxu0 0.0
      %1335 = vmatpush1.msra.mxu0 0.0
      %1336 = vmatprep.subr.mxu0 0.0
      %1337 = vmatpush1.msra.mxu0 0.0
      %1338 = vmatprep.subr.mxu0 0.0
      %1339 = vmatpush1.msra.mxu0 0.0
      %1340 = vmatprep.subr.mxu0 0.0
      %1341 = vmatpush1.msra.mxu0 0.0
      %1342 = vmatprep.subr.mxu0 0.0
      %1343 = vmatpush1.msra.mxu0 0.0
      %1344 = vmatprep.subr.mxu0 0.0
      %1345 = vmatpush1.msra.mxu0 0.0
      %1346 = vmatprep.subr.mxu0 0.0
      %1347 = vmatpush1.msra.mxu0 0.0
      %1348 = vmatprep.subr.mxu0 0.0
      %1349 = vmatpush1.msra.mxu0 0.0
      %1350 = vmatprep.mubr.f32.mxu0 0.0
      %1351 = vmatmul.mubr.f32.gmra.mrb[0].mxu0 %v1260
      %v1352 = vpop.f32.mrb[0].mxu0
      %v1353 = vadd.f32 0.0, %v1352
      %v1354 = vpop.f32.mrb[0].mxu0
      %1355 = vmatprep.mubr.f32.mxu0 0.0
      %1356 = vmatmul.mubr.f32.gmra.mrb[0].mxu0 %v1263
      %v1357 = vpop.f32.mrb[0].mxu0
      %v1358 = vadd.f32 0.0, %v1357
      %v1359 = vpop.f32.mrb[0].mxu0
      %1360 = vmatprep.mubr.f32.mxu0 0.0
      %1361 = vmatmul.mubr.f32.gmra.mrb[0].mxu0 %v1266
      %v1362 = vpop.f32.mrb[0].mxu0
      %v1363 = vadd.f32 0.0, %v1362
      %v1364 = vpop.f32.mrb[0].mxu0
      %1365 = vmatprep.mubr.f32.mxu0 0.0
      %1366 = vmatmul.mubr.f32.gmra.mrb[0].mxu0 %v1269
      %v1367 = vpop.f32.mrb[0].mxu0
      %v1368 = vadd.f32 0.0, %v1367
      %v1369 = vpop.f32.mrb[0].mxu0
      %1370 = vmatprep.mubr.f32.mxu0 0.0
      %1371 = vmatmul.mubr.f32.gmra.mrb[0].mxu0 %v1272
      %v1372 = vpop.f32.mrb[0].mxu0
      %v1373 = vadd.f32 0.0, %v1372
      %v1374 = vpop.f32.mrb[0].mxu0
      %1375 = vmatprep.mubr.f32.mxu0 0.0
      %1376 = vmatmul.mubr.f32.gmra.mrb[0].mxu0 %v1275
      %v1377 = vpop.f32.mrb[0].mxu0
      %v1378 = vadd.f32 0.0, %v1377
      %v1379 = vpop.f32.mrb[0].mxu0
      %1380 = vmatprep.mubr.f32.mxu0 0.0
      %1381 = vmatmul.mubr.f32.gmra.mrb[0].mxu0 %v1278
      %v1382 = vpop.f32.mrb[0].mxu0
      %v1383 = vadd.f32 0.0, %v1382
      %v1384 = vpop.f32.mrb[0].mxu0
      %1385 = vmatprep.mubr.f32.mxu0 0.0
      %1386 = vmatmul.mubr.f32.gmra.mrb[0].mxu0 %v1281
      %v1387 = vpop.f32.mrb[0].mxu0
      %v1388 = vadd.f32 0.0, %v1387
      %v1389 = vpop.f32.mrb[0].mxu0
      %1390 = vdwg.mxu0
      %v1391 = vadd.f32 %v1240, %v1353
      %v1392 = vadd.f32 %v1241, %v1358
      %v1393 = vadd.f32 %v1242, %v1363
      %v1394 = vadd.f32 %v1243, %v1368
      %v1395 = vadd.f32 %v1244, %v1373
      %v1396 = vadd.f32 %v1245, %v1378
      %v1397 = vadd.f32 %v1246, %v1383
      %v1398 = vadd.f32 %v1247, %v1388
      %s1399 = scalar_lea.vmem %s354, 160
      %v1400 = vld [vmem:[%s1399] sm:$0xff]
      %v1401 = vld [vmem:[%s1399 + $0x10] sm:$0xff]
      %v1402 = vld [vmem:[%s1399 + $0x20] sm:$0xff]
      %v1403 = vld [vmem:[%s1399 + $0x30] sm:$0xff]
      %v1404 = vld [vmem:[%s1399 + $0x40] sm:$0xff]
      %v1405 = vld [vmem:[%s1399 + $0x50] sm:$0xff]
      %v1406 = vld [vmem:[%s1399 + $0x60] sm:$0xff]
      %v1407 = vld [vmem:[%s1399 + $0x70] sm:$0xff]
      %s1408 = scalar_lea.vmem %s1, 28
      %v1409 = vld [vmem:[%s1408] sm:$0xf]
      %v1411 = vsel %vm380, %v1400, 0
      %v1414 = vsel %vm380, %v1401, 0
      %v1417 = vsel %vm380, %v1402, 0
      %v1420 = vsel %vm380, %v1403, 0
      %v1423 = vsel %vm380, %v1404, 0
      %v1426 = vsel %vm380, %v1405, 0
      %v1429 = vsel %vm380, %v1406, 0
      %v1432 = vsel %vm380, %v1407, 0
      %v1435 = vsel %vm405, %v1409, 0
      %1437 = vmatprep.subr.mxu0 0.0
      %1438 = vmatpush1.msra.mxu0 %v1435
      %1439 = vmatprep.subr.mxu0 0.0
      %1440 = vmatpush1.msra.mxu0 0.0
      %1441 = vmatprep.subr.mxu0 0.0
      %1442 = vmatpush1.msra.mxu0 0.0
      %1443 = vmatprep.subr.mxu0 0.0
      %1444 = vmatpush1.msra.mxu0 0.0
      %1445 = vmatprep.subr.mxu0 0.0
      %1446 = vmatpush1.msra.mxu0 0.0
      %1447 = vmatprep.subr.mxu0 0.0
      %1448 = vmatpush1.msra.mxu0 0.0
      %1449 = vmatprep.subr.mxu0 0.0
      %1450 = vmatpush1.msra.mxu0 0.0
      %1451 = vmatprep.subr.mxu0 0.0
      %1452 = vmatpush1.msra.mxu0 0.0
      %1453 = vmatprep.subr.mxu0 0.0
      %1454 = vmatpush1.msra.mxu0 0.0
      %1455 = vmatprep.subr.mxu0 0.0
      %1456 = vmatpush1.msra.mxu0 0.0
      %1457 = vmatprep.subr.mxu0 0.0
      %1458 = vmatpush1.msra.mxu0 0.0
      %1459 = vmatprep.subr.mxu0 0.0
      %1460 = vmatpush1.msra.mxu0 0.0
      %1461 = vmatprep.subr.mxu0 0.0
      %1462 = vmatpush1.msra.mxu0 0.0
      %1463 = vmatprep.subr.mxu0 0.0
      %1464 = vmatpush1.msra.mxu0 0.0
      %1465 = vmatprep.subr.mxu0 0.0
      %1466 = vmatpush1.msra.mxu0 0.0
      %1467 = vmatprep.subr.mxu0 0.0
      %1468 = vmatpush1.msra.mxu0 0.0
      %1469 = vmatprep.subr.mxu0 0.0
      %1470 = vmatpush1.msra.mxu0 0.0
      %1471 = vmatprep.subr.mxu0 0.0
      %1472 = vmatpush1.msra.mxu0 0.0
      %1473 = vmatprep.subr.mxu0 0.0
      %1474 = vmatpush1.msra.mxu0 0.0
      %1475 = vmatprep.subr.mxu0 0.0
      %1476 = vmatpush1.msra.mxu0 0.0
      %1477 = vmatprep.subr.mxu0 0.0
      %1478 = vmatpush1.msra.mxu0 0.0
      %1479 = vmatprep.subr.mxu0 0.0
      %1480 = vmatpush1.msra.mxu0 0.0
      %1481 = vmatprep.subr.mxu0 0.0
      %1482 = vmatpush1.msra.mxu0 0.0
      %1483 = vmatprep.subr.mxu0 0.0
      %1484 = vmatpush1.msra.mxu0 0.0
      %1485 = vmatprep.subr.mxu0 0.0
      %1486 = vmatpush1.msra.mxu0 0.0
      %1487 = vmatprep.subr.mxu0 0.0
      %1488 = vmatpush1.msra.mxu0 0.0
      %1489 = vmatprep.subr.mxu0 0.0
      %1490 = vmatpush1.msra.mxu0 0.0
      %1491 = vmatprep.subr.mxu0 0.0
      %1492 = vmatpush1.msra.mxu0 0.0
      %1493 = vmatprep.subr.mxu0 0.0
      %1494 = vmatpush1.msra.mxu0 0.0
      %1495 = vmatprep.subr.mxu0 0.0
      %1496 = vmatpush1.msra.mxu0 0.0
      %1497 = vmatprep.subr.mxu0 0.0
      %1498 = vmatpush1.msra.mxu0 0.0
      %1499 = vmatprep.subr.mxu0 0.0
      %1500 = vmatpush1.msra.mxu0 0.0
      %1501 = vmatprep.mubr.f32.mxu0 0.0
      %1502 = vmatmul.mubr.f32.gmra.mrb[0].mxu0 %v1411
      %v1503 = vpop.f32.mrb[0].mxu0
      %v1504 = vadd.f32 0.0, %v1503
      %v1505 = vpop.f32.mrb[0].mxu0
      %1506 = vmatprep.mubr.f32.mxu0 0.0
      %1507 = vmatmul.mubr.f32.gmra.mrb[0].mxu0 %v1414
      %v1508 = vpop.f32.mrb[0].mxu0
      %v1509 = vadd.f32 0.0, %v1508
      %v1510 = vpop.f32.mrb[0].mxu0
      %1511 = vmatprep.mubr.f32.mxu0 0.0
      %1512 = vmatmul.mubr.f32.gmra.mrb[0].mxu0 %v1417
      %v1513 = vpop.f32.mrb[0].mxu0
      %v1514 = vadd.f32 0.0, %v1513
      %v1515 = vpop.f32.mrb[0].mxu0
      %1516 = vmatprep.mubr.f32.mxu0 0.0
      %1517 = vmatmul.mubr.f32.gmra.mrb[0].mxu0 %v1420
      %v1518 = vpop.f32.mrb[0].mxu0
      %v1519 = vadd.f32 0.0, %v1518
      %v1520 = vpop.f32.mrb[0].mxu0
      %1521 = vmatprep.mubr.f32.mxu0 0.0
      %1522 = vmatmul.mubr.f32.gmra.mrb[0].mxu0 %v1423
      %v1523 = vpop.f32.mrb[0].mxu0
      %v1524 = vadd.f32 0.0, %v1523
      %v1525 = vpop.f32.mrb[0].mxu0
      %1526 = vmatprep.mubr.f32.mxu0 0.0
      %1527 = vmatmul.mubr.f32.gmra.mrb[0].mxu0 %v1426
      %v1528 = vpop.f32.mrb[0].mxu0
      %v1529 = vadd.f32 0.0, %v1528
      %v1530 = vpop.f32.mrb[0].mxu0
      %1531 = vmatprep.mubr.f32.mxu0 0.0
      %1532 = vmatmul.mubr.f32.gmra.mrb[0].mxu0 %v1429
      %v1533 = vpop.f32.mrb[0].mxu0
      %v1534 = vadd.f32 0.0, %v1533
      %v1535 = vpop.f32.mrb[0].mxu0
      %1536 = vmatprep.mubr.f32.mxu0 0.0
      %1537 = vmatmul.mubr.f32.gmra.mrb[0].mxu0 %v1432
      %v1538 = vpop.f32.mrb[0].mxu0
      %v1539 = vadd.f32 0.0, %v1538
      %v1540 = vpop.f32.mrb[0].mxu0
      %1541 = vdwg.mxu0
      %v1542 = vadd.f32 %v1391, %v1504
      %v1543 = vadd.f32 %v1392, %v1509
      %v1544 = vadd.f32 %v1393, %v1514
      %v1545 = vadd.f32 %v1394, %v1519
      %v1546 = vadd.f32 %v1395, %v1524
      %v1547 = vadd.f32 %v1396, %v1529
      %v1548 = vadd.f32 %v1397, %v1534
      %v1549 = vadd.f32 %v1398, %v1539
      %v1550 = vld [vmem:[%s1248 + $0x1] sm:$0xff]
      %v1551 = vld [vmem:[%s1248 + $0x11] sm:$0xff]
      %v1552 = vld [vmem:[%s1248 + $0x21] sm:$0xff]
      %v1553 = vld [vmem:[%s1248 + $0x31] sm:$0xff]
      %v1554 = vld [vmem:[%s1248 + $0x41] sm:$0xff]
      %v1555 = vld [vmem:[%s1248 + $0x51] sm:$0xff]
      %v1556 = vld [vmem:[%s1248 + $0x61] sm:$0xff]
      %v1557 = vld [vmem:[%s1248 + $0x71] sm:$0xff]
      %s1558 = scalar_lea.vmem %s1, 32
      %v1559 = vld [vmem:[%s1558] sm:$0xf]
      %v1561 = vsel %vm380, %v1550, 0
      %v1564 = vsel %vm380, %v1551, 0
      %v1567 = vsel %vm380, %v1552, 0
      %v1570 = vsel %vm380, %v1553, 0
      %v1573 = vsel %vm380, %v1554, 0
      %v1576 = vsel %vm380, %v1555, 0
      %v1579 = vsel %vm380, %v1556, 0
      %v1582 = vsel %vm380, %v1557, 0
      %v1585 = vsel %vm405, %v1559, 0
      %1587 = vmatprep.subr.mxu0 0.0
      %1588 = vmatpush1.msra.mxu0 %v1585
      %1589 = vmatprep.subr.mxu0 0.0
      %1590 = vmatpush1.msra.mxu0 0.0
      %1591 = vmatprep.subr.mxu0 0.0
      %1592 = vmatpush1.msra.mxu0 0.0
      %1593 = vmatprep.subr.mxu0 0.0
      %1594 = vmatpush1.msra.mxu0 0.0
      %1595 = vmatprep.subr.mxu0 0.0
      %1596 = vmatpush1.msra.mxu0 0.0
      %1597 = vmatprep.subr.mxu0 0.0
      %1598 = vmatpush1.msra.mxu0 0.0
      %1599 = vmatprep.subr.mxu0 0.0
      %1600 = vmatpush1.msra.mxu0 0.0
      %1601 = vmatprep.subr.mxu0 0.0
      %1602 = vmatpush1.msra.mxu0 0.0
      %1603 = vmatprep.subr.mxu0 0.0
      %1604 = vmatpush1.msra.mxu0 0.0
      %1605 = vmatprep.subr.mxu0 0.0
      %1606 = vmatpush1.msra.mxu0 0.0
      %1607 = vmatprep.subr.mxu0 0.0
      %1608 = vmatpush1.msra.mxu0 0.0
      %1609 = vmatprep.subr.mxu0 0.0
      %1610 = vmatpush1.msra.mxu0 0.0
      %1611 = vmatprep.subr.mxu0 0.0
      %1612 = vmatpush1.msra.mxu0 0.0
      %1613 = vmatprep.subr.mxu0 0.0
      %1614 = vmatpush1.msra.mxu0 0.0
      %1615 = vmatprep.subr.mxu0 0.0
      %1616 = vmatpush1.msra.mxu0 0.0
      %1617 = vmatprep.subr.mxu0 0.0
      %1618 = vmatpush1.msra.mxu0 0.0
      %1619 = vmatprep.subr.mxu0 0.0
      %1620 = vmatpush1.msra.mxu0 0.0
      %1621 = vmatprep.subr.mxu0 0.0
      %1622 = vmatpush1.msra.mxu0 0.0
      %1623 = vmatprep.subr.mxu0 0.0
      %1624 = vmatpush1.msra.mxu0 0.0
      %1625 = vmatprep.subr.mxu0 0.0
      %1626 = vmatpush1.msra.mxu0 0.0
      %1627 = vmatprep.subr.mxu0 0.0
      %1628 = vmatpush1.msra.mxu0 0.0
      %1629 = vmatprep.subr.mxu0 0.0
      %1630 = vmatpush1.msra.mxu0 0.0
      %1631 = vmatprep.subr.mxu0 0.0
      %1632 = vmatpush1.msra.mxu0 0.0
      %1633 = vmatprep.subr.mxu0 0.0
      %1634 = vmatpush1.msra.mxu0 0.0
      %1635 = vmatprep.subr.mxu0 0.0
      %1636 = vmatpush1.msra.mxu0 0.0
      %1637 = vmatprep.subr.mxu0 0.0
      %1638 = vmatpush1.msra.mxu0 0.0
      %1639 = vmatprep.subr.mxu0 0.0
      %1640 = vmatpush1.msra.mxu0 0.0
      %1641 = vmatprep.subr.mxu0 0.0
      %1642 = vmatpush1.msra.mxu0 0.0
      %1643 = vmatprep.subr.mxu0 0.0
      %1644 = vmatpush1.msra.mxu0 0.0
      %1645 = vmatprep.subr.mxu0 0.0
      %1646 = vmatpush1.msra.mxu0 0.0
      %1647 = vmatprep.subr.mxu0 0.0
      %1648 = vmatpush1.msra.mxu0 0.0
      %1649 = vmatprep.subr.mxu0 0.0
      %1650 = vmatpush1.msra.mxu0 0.0
      %1651 = vmatprep.mubr.f32.mxu0 0.0
      %1652 = vmatmul.mubr.f32.gmra.mrb[0].mxu0 %v1561
      %v1653 = vpop.f32.mrb[0].mxu0
      %v1654 = vadd.f32 0.0, %v1653
      %v1655 = vpop.f32.mrb[0].mxu0
      %1656 = vmatprep.mubr.f32.mxu0 0.0
      %1657 = vmatmul.mubr.f32.gmra.mrb[0].mxu0 %v1564
      %v1658 = vpop.f32.mrb[0].mxu0
      %v1659 = vadd.f32 0.0, %v1658
      %v1660 = vpop.f32.mrb[0].mxu0
      %1661 = vmatprep.mubr.f32.mxu0 0.0
      %1662 = vmatmul.mubr.f32.gmra.mrb[0].mxu0 %v1567
      %v1663 = vpop.f32.mrb[0].mxu0
      %v1664 = vadd.f32 0.0, %v1663
      %v1665 = vpop.f32.mrb[0].mxu0
      %1666 = vmatprep.mubr.f32.mxu0 0.0
      %1667 = vmatmul.mubr.f32.gmra.mrb[0].mxu0 %v1570
      %v1668 = vpop.f32.mrb[0].mxu0
      %v1669 = vadd.f32 0.0, %v1668
      %v1670 = vpop.f32.mrb[0].mxu0
      %1671 = vmatprep.mubr.f32.mxu0 0.0
      %1672 = vmatmul.mubr.f32.gmra.mrb[0].mxu0 %v1573
      %v1673 = vpop.f32.mrb[0].mxu0
      %v1674 = vadd.f32 0.0, %v1673
      %v1675 = vpop.f32.mrb[0].mxu0
      %1676 = vmatprep.mubr.f32.mxu0 0.0
      %1677 = vmatmul.mubr.f32.gmra.mrb[0].mxu0 %v1576
      %v1678 = vpop.f32.mrb[0].mxu0
      %v1679 = vadd.f32 0.0, %v1678
      %v1680 = vpop.f32.mrb[0].mxu0
      %1681 = vmatprep.mubr.f32.mxu0 0.0
      %1682 = vmatmul.mubr.f32.gmra.mrb[0].mxu0 %v1579
      %v1683 = vpop.f32.mrb[0].mxu0
      %v1684 = vadd.f32 0.0, %v1683
      %v1685 = vpop.f32.mrb[0].mxu0
      %1686 = vmatprep.mubr.f32.mxu0 0.0
      %1687 = vmatmul.mubr.f32.gmra.mrb[0].mxu0 %v1582
      %v1688 = vpop.f32.mrb[0].mxu0
      %v1689 = vadd.f32 0.0, %v1688
      %v1690 = vpop.f32.mrb[0].mxu0
      %1691 = vdwg.mxu0
      %v1692 = vadd.f32 %v1542, %v1654
      %v1693 = vadd.f32 %v1543, %v1659
      %v1694 = vadd.f32 %v1544, %v1664
      %v1695 = vadd.f32 %v1545, %v1669
      %v1696 = vadd.f32 %v1546, %v1674
      %v1697 = vadd.f32 %v1547, %v1679
      %v1698 = vadd.f32 %v1548, %v1684
      %v1699 = vadd.f32 %v1549, %v1689
      %v1700 = vld [vmem:[%s2] sm:$0x1]
      %v1702 = vlaneseq
      %v1703 = vshrl.u32 %v1702, 7
      %v1704 = vsub.s32 0, %v1703
      %v1705 = vrot.slane %v1700, %v1704
      %v1707 = vmul.f32 %v1692, %v1705
      %v1708 = vmul.f32 %v1693, %v1705
      %v1709 = vmul.f32 %v1694, %v1705
      %v1710 = vmul.f32 %v1695, %v1705
      %v1711 = vmul.f32 %v1696, %v1705
      %v1712 = vmul.f32 %v1697, %v1705
      %v1713 = vmul.f32 %v1698, %v1705
      %v1714 = vmul.f32 %v1699, %v1705
      %v1715 = vld [vmem:[%s3] sm:$0x1]
      %v1717 = vlaneseq
      %v1718 = vshrl.u32 %v1717, 7
      %v1719 = vsub.s32 0, %v1718
      %v1720 = vrot.slane %v1715, %v1719
      %v1722 = vadd.f32 %v1707, %v1720
      %v1723 = vadd.f32 %v1708, %v1720
      %v1724 = vadd.f32 %v1709, %v1720
      %v1725 = vadd.f32 %v1710, %v1720
      %v1726 = vadd.f32 %v1711, %v1720
      %v1727 = vadd.f32 %v1712, %v1720
      %v1728 = vadd.f32 %v1713, %v1720
      %v1729 = vadd.f32 %v1714, %v1720
      %v1730 = vmax.f32 %v1722, 0.0
      %v1731 = vmax.f32 %v1723, 0.0
      %v1732 = vmax.f32 %v1724, 0.0
      %v1733 = vmax.f32 %v1725, 0.0
      %v1734 = vmax.f32 %v1726, 0.0
      %v1735 = vmax.f32 %v1727, 0.0
      %v1736 = vmax.f32 %v1728, 0.0
      %v1737 = vmax.f32 %v1729, 0.0
      %vm1738 = vcmask 64512
      %1739 = vst.msk [vmem:[#allocation2] sm:$0xff] %vm1738, 0.0
      %vm1740 = vcmask 58368
      %1741 = vst.msk [vmem:[#allocation2 + $0x8] sm:$0x3] %vm1740, 0.0
      %1742 = vst.msk [vmem:[#allocation2 + $0x10] sm:$0xff] %vm1738, 0.0
      %1743 = vst.msk [vmem:[#allocation2 + $0x18] sm:$0x3] %vm1740, 0.0
      %1744 = vst.msk [vmem:[#allocation2 + $0x20] sm:$0xff] %vm1738, 0.0
      %1745 = vst.msk [vmem:[#allocation2 + $0x28] sm:$0x3] %vm1740, 0.0
      %1746 = vst.msk [vmem:[#allocation2 + $0x30] sm:$0xff] %vm1738, 0.0
      %1747 = vst.msk [vmem:[#allocation2 + $0x38] sm:$0x3] %vm1740, 0.0
      %1748 = vst.msk [vmem:[#allocation2 + $0x40] sm:$0xff] %vm1738, 0.0
      %1749 = vst.msk [vmem:[#allocation2 + $0x48] sm:$0x3] %vm1740, 0.0
      %1750 = vst.msk [vmem:[#allocation2 + $0x50] sm:$0xff] %vm1738, 0.0
      %1751 = vst.msk [vmem:[#allocation2 + $0x58] sm:$0x3] %vm1740, 0.0
      %1752 = vst.msk [vmem:[#allocation2 + $0x60] sm:$0xff] %vm1738, 0.0
      %1753 = vst.msk [vmem:[#allocation2 + $0x68] sm:$0x3] %vm1740, 0.0
      %1754 = vst.msk [vmem:[#allocation2 + $0x70] sm:$0xff] %vm1738, 0.0
      %1755 = vst.msk [vmem:[#allocation2 + $0x78] sm:$0x3] %vm1740, 0.0
      %1756 = vst.msk [vmem:[#allocation2 + $0x80] sm:$0xff] %vm1738, 0.0
      %1757 = vst.msk [vmem:[#allocation2 + $0x88] sm:$0x3] %vm1740, 0.0
      %1758 = vst.msk [vmem:[#allocation2 + $0x90] sm:$0xff] %vm1738, 0.0
      %1759 = vst.msk [vmem:[#allocation2 + $0x98] sm:$0x3] %vm1740, 0.0
      %s1760 = scalar_lea.vmem [#allocation2], 16
      %1761 = vst.msk [vmem:[%s1760 + $0x1] sm:$0xff] %vm1738, %v1730
      %1762 = vst.msk [vmem:[%s1760 + $0x11] sm:$0xff] %vm1738, %v1731
      %1763 = vst.msk [vmem:[%s1760 + $0x21] sm:$0xff] %vm1738, %v1732
      %1764 = vst.msk [vmem:[%s1760 + $0x31] sm:$0xff] %vm1738, %v1733
      %1765 = vst.msk [vmem:[%s1760 + $0x41] sm:$0xff] %vm1738, %v1734
      %1766 = vst.msk [vmem:[%s1760 + $0x51] sm:$0xff] %vm1738, %v1735
      %1767 = vst.msk [vmem:[%s1760 + $0x61] sm:$0xff] %vm1738, %v1736
      %1768 = vst.msk [vmem:[%s1760 + $0x71] sm:$0xff] %vm1738, %v1737
      %v1769 = vld [vmem:[#allocation2] sm:$0xff]
      %v1770 = vld [vmem:[#allocation2 + $0x10] sm:$0xff]
      %v1771 = vld [vmem:[#allocation2 + $0x20] sm:$0xff]
      %v1772 = vld [vmem:[#allocation2 + $0x30] sm:$0xff]
      %v1773 = vld [vmem:[#allocation2 + $0x40] sm:$0xff]
      %v1774 = vld [vmem:[#allocation2 + $0x50] sm:$0xff]
      %v1775 = vld [vmem:[#allocation2 + $0x60] sm:$0xff]
      %v1776 = vld [vmem:[#allocation2 + $0x70] sm:$0xff]
      %v1777 = vld [vmem:[%s4] sm:$0xff]
      %v1778 = vld [vmem:[#allocation2 + $0x1] sm:$0xff]
      %v1779 = vld [vmem:[#allocation2 + $0x11] sm:$0xff]
      %v1780 = vld [vmem:[#allocation2 + $0x21] sm:$0xff]
      %v1781 = vld [vmem:[#allocation2 + $0x31] sm:$0xff]
      %v1782 = vld [vmem:[#allocation2 + $0x41] sm:$0xff]
      %v1783 = vld [vmem:[#allocation2 + $0x51] sm:$0xff]
      %v1784 = vld [vmem:[#allocation2 + $0x61] sm:$0xff]
      %v1785 = vld [vmem:[#allocation2 + $0x71] sm:$0xff]
      %s1786 = scalar_lea.vmem %s4, 8
      %v1787 = vld [vmem:[%s1786] sm:$0xff]
      %v1789 = vsel %vm1738, %v1778, 0
      %v1792 = vsel %vm1738, %v1779, 0
      %v1795 = vsel %vm1738, %v1780, 0
      %v1798 = vsel %vm1738, %v1781, 0
      %v1801 = vsel %vm1738, %v1782, 0
      %v1804 = vsel %vm1738, %v1783, 0
      %v1807 = vsel %vm1738, %v1784, 0
      %v1810 = vsel %vm1738, %v1785, 0
      %1812 = vmatprep.subr.mxu0 0.0
      %1813 = vmatpush1.msra.mxu0 %v1787
      %1814 = vmatprep.subr.mxu0 0.0
      %1815 = vmatpush1.msra.mxu0 0.0
      %1816 = vmatprep.subr.mxu0 0.0
      %1817 = vmatpush1.msra.mxu0 0.0
      %1818 = vmatprep.subr.mxu0 0.0
      %1819 = vmatpush1.msra.mxu0 0.0
      %1820 = vmatprep.subr.mxu0 0.0
      %1821 = vmatpush1.msra.mxu0 0.0
      %1822 = vmatprep.subr.mxu0 0.0
      %1823 = vmatpush1.msra.mxu0 0.0
      %1824 = vmatprep.subr.mxu0 0.0
      %1825 = vmatpush1.msra.mxu0 0.0
      %1826 = vmatprep.subr.mxu0 0.0
      %1827 = vmatpush1.msra.mxu0 0.0
      %1828 = vmatprep.subr.mxu0 0.0
      %1829 = vmatpush1.msra.mxu0 0.0
      %1830 = vmatprep.subr.mxu0 0.0
      %1831 = vmatpush1.msra.mxu0 0.0
      %1832 = vmatprep.subr.mxu0 0.0
      %1833 = vmatpush1.msra.mxu0 0.0
      %1834 = vmatprep.subr.mxu0 0.0
      %1835 = vmatpush1.msra.mxu0 0.0
      %1836 = vmatprep.subr.mxu0 0.0
      %1837 = vmatpush1.msra.mxu0 0.0
      %1838 = vmatprep.subr.mxu0 0.0
      %1839 = vmatpush1.msra.mxu0 0.0
      %1840 = vmatprep.subr.mxu0 0.0
      %1841 = vmatpush1.msra.mxu0 0.0
      %1842 = vmatprep.subr.mxu0 0.0
      %1843 = vmatpush1.msra.mxu0 0.0
      %1844 = vmatprep.subr.mxu0 0.0
      %1845 = vmatpush1.msra.mxu0 0.0
      %1846 = vmatprep.subr.mxu0 0.0
      %1847 = vmatpush1.msra.mxu0 0.0
      %1848 = vmatprep.subr.mxu0 0.0
      %1849 = vmatpush1.msra.mxu0 0.0
      %1850 = vmatprep.subr.mxu0 0.0
      %1851 = vmatpush1.msra.mxu0 0.0
      %1852 = vmatprep.subr.mxu0 0.0
      %1853 = vmatpush1.msra.mxu0 0.0
      %1854 = vmatprep.subr.mxu0 0.0
      %1855 = vmatpush1.msra.mxu0 0.0
      %1856 = vmatprep.subr.mxu0 0.0
      %1857 = vmatpush1.msra.mxu0 0.0
      %1858 = vmatprep.subr.mxu0 0.0
      %1859 = vmatpush1.msra.mxu0 0.0
      %1860 = vmatprep.subr.mxu0 0.0
      %1861 = vmatpush1.msra.mxu0 0.0
      %1862 = vmatprep.subr.mxu0 0.0
      %1863 = vmatpush1.msra.mxu0 0.0
      %1864 = vmatprep.subr.mxu0 0.0
      %1865 = vmatpush1.msra.mxu0 0.0
      %1866 = vmatprep.subr.mxu0 0.0
      %1867 = vmatpush1.msra.mxu0 0.0
      %1868 = vmatprep.subr.mxu0 0.0
      %1869 = vmatpush1.msra.mxu0 0.0
      %1870 = vmatprep.subr.mxu0 0.0
      %1871 = vmatpush1.msra.mxu0 0.0
      %1872 = vmatprep.subr.mxu0 0.0
      %1873 = vmatpush1.msra.mxu0 0.0
      %1874 = vmatprep.subr.mxu0 0.0
      %1875 = vmatpush1.msra.mxu0 0.0
      %1876 = vmatprep.mubr.f32.mxu0 0.0
      %1877 = vmatmul.mubr.f32.gmra.mrb[0].mxu0 %v1789
      %v1878 = vpop.f32.mrb[0].mxu0
      %v1879 = vadd.f32 0.0, %v1878
      %v1880 = vpop.f32.mrb[0].mxu0
      %1881 = vmatprep.mubr.f32.mxu0 0.0
      %1882 = vmatmul.mubr.f32.gmra.mrb[0].mxu0 %v1792
      %v1883 = vpop.f32.mrb[0].mxu0
      %v1884 = vadd.f32 0.0, %v1883
      %v1885 = vpop.f32.mrb[0].mxu0
      %1886 = vmatprep.mubr.f32.mxu0 0.0
      %1887 = vmatmul.mubr.f32.gmra.mrb[0].mxu0 %v1795
      %v1888 = vpop.f32.mrb[0].mxu0
      %v1889 = vadd.f32 0.0, %v1888
      %v1890 = vpop.f32.mrb[0].mxu0
      %1891 = vmatprep.mubr.f32.mxu0 0.0
      %1892 = vmatmul.mubr.f32.gmra.mrb[0].mxu0 %v1798
      %v1893 = vpop.f32.mrb[0].mxu0
      %v1894 = vadd.f32 0.0, %v1893
      %v1895 = vpop.f32.mrb[0].mxu0
      %1896 = vmatprep.mubr.f32.mxu0 0.0
      %1897 = vmatmul.mubr.f32.gmra.mrb[0].mxu0 %v1801
      %v1898 = vpop.f32.mrb[0].mxu0
      %v1899 = vadd.f32 0.0, %v1898
      %v1900 = vpop.f32.mrb[0].mxu0
      %1901 = vmatprep.mubr.f32.mxu0 0.0
      %1902 = vmatmul.mubr.f32.gmra.mrb[0].mxu0 %v1804
      %v1903 = vpop.f32.mrb[0].mxu0
      %v1904 = vadd.f32 0.0, %v1903
      %v1905 = vpop.f32.mrb[0].mxu0
      %1906 = vmatprep.mubr.f32.mxu0 0.0
      %1907 = vmatmul.mubr.f32.gmra.mrb[0].mxu0 %v1807
      %v1908 = vpop.f32.mrb[0].mxu0
      %v1909 = vadd.f32 0.0, %v1908
      %v1910 = vpop.f32.mrb[0].mxu0
      %1911 = vmatprep.mubr.f32.mxu0 0.0
      %1912 = vmatmul.mubr.f32.gmra.mrb[0].mxu0 %v1810
      %v1913 = vpop.f32.mrb[0].mxu0
      %v1914 = vadd.f32 0.0, %v1913
      %v1915 = vpop.f32.mrb[0].mxu0
      %1916 = vdwg.mxu0
      %v1918 = vsel %vm1738, %v1769, 0
      %v1921 = vsel %vm1738, %v1770, 0
      %v1924 = vsel %vm1738, %v1771, 0
      %v1927 = vsel %vm1738, %v1772, 0
      %v1930 = vsel %vm1738, %v1773, 0
      %v1933 = vsel %vm1738, %v1774, 0
      %v1936 = vsel %vm1738, %v1775, 0
      %v1939 = vsel %vm1738, %v1776, 0
      %1941 = vmatprep.subr.mxu0 0.0
      %1942 = vmatpush1.msra.mxu0 %v1777
      %1943 = vmatprep.subr.mxu0 0.0
      %1944 = vmatpush1.msra.mxu0 0.0
      %1945 = vmatprep.subr.mxu0 0.0
      %1946 = vmatpush1.msra.mxu0 0.0
      %1947 = vmatprep.subr.mxu0 0.0
      %1948 = vmatpush1.msra.mxu0 0.0
      %1949 = vmatprep.subr.mxu0 0.0
      %1950 = vmatpush1.msra.mxu0 0.0
      %1951 = vmatprep.subr.mxu0 0.0
      %1952 = vmatpush1.msra.mxu0 0.0
      %1953 = vmatprep.subr.mxu0 0.0
      %1954 = vmatpush1.msra.mxu0 0.0
      %1955 = vmatprep.subr.mxu0 0.0
      %1956 = vmatpush1.msra.mxu0 0.0
      %1957 = vmatprep.subr.mxu0 0.0
      %1958 = vmatpush1.msra.mxu0 0.0
      %1959 = vmatprep.subr.mxu0 0.0
      %1960 = vmatpush1.msra.mxu0 0.0
      %1961 = vmatprep.subr.mxu0 0.0
      %1962 = vmatpush1.msra.mxu0 0.0
      %1963 = vmatprep.subr.mxu0 0.0
      %1964 = vmatpush1.msra.mxu0 0.0
      %1965 = vmatprep.subr.mxu0 0.0
      %1966 = vmatpush1.msra.mxu0 0.0
      %1967 = vmatprep.subr.mxu0 0.0
      %1968 = vmatpush1.msra.mxu0 0.0
      %1969 = vmatprep.subr.mxu0 0.0
      %1970 = vmatpush1.msra.mxu0 0.0
      %1971 = vmatprep.subr.mxu0 0.0
      %1972 = vmatpush1.msra.mxu0 0.0
      %1973 = vmatprep.subr.mxu0 0.0
      %1974 = vmatpush1.msra.mxu0 0.0
      %1975 = vmatprep.subr.mxu0 0.0
      %1976 = vmatpush1.msra.mxu0 0.0
      %1977 = vmatprep.subr.mxu0 0.0
      %1978 = vmatpush1.msra.mxu0 0.0
      %1979 = vmatprep.subr.mxu0 0.0
      %1980 = vmatpush1.msra.mxu0 0.0
      %1981 = vmatprep.subr.mxu0 0.0
      %1982 = vmatpush1.msra.mxu0 0.0
      %1983 = vmatprep.subr.mxu0 0.0
      %1984 = vmatpush1.msra.mxu0 0.0
      %1985 = vmatprep.subr.mxu0 0.0
      %1986 = vmatpush1.msra.mxu0 0.0
      %1987 = vmatprep.subr.mxu0 0.0
      %1988 = vmatpush1.msra.mxu0 0.0
      %1989 = vmatprep.subr.mxu0 0.0
      %1990 = vmatpush1.msra.mxu0 0.0
      %1991 = vmatprep.subr.mxu0 0.0
      %1992 = vmatpush1.msra.mxu0 0.0
      %1993 = vmatprep.subr.mxu0 0.0
      %1994 = vmatpush1.msra.mxu0 0.0
      %1995 = vmatprep.subr.mxu0 0.0
      %1996 = vmatpush1.msra.mxu0 0.0
      %1997 = vmatprep.subr.mxu0 0.0
      %1998 = vmatpush1.msra.mxu0 0.0
      %1999 = vmatprep.subr.mxu0 0.0
      %2000 = vmatpush1.msra.mxu0 0.0
      %2001 = vmatprep.subr.mxu0 0.0
      %2002 = vmatpush1.msra.mxu0 0.0
      %2003 = vmatprep.subr.mxu0 0.0
      %2004 = vmatpush1.msra.mxu0 0.0
      %2005 = vmatprep.mubr.f32.mxu0 0.0
      %2006 = vmatmul.mubr.f32.gmra.mrb[0].mxu0 %v1918
      %v2007 = vpop.f32.mrb[0].mxu0
      %v2008 = vadd.f32 %v1879, %v2007
      %v2009 = vpop.f32.mrb[0].mxu0
      %2010 = vmatprep.mubr.f32.mxu0 0.0
      %2011 = vmatmul.mubr.f32.gmra.mrb[0].mxu0 %v1921
      %v2012 = vpop.f32.mrb[0].mxu0
      %v2013 = vadd.f32 %v1884, %v2012
      %v2014 = vpop.f32.mrb[0].mxu0
      %2015 = vmatprep.mubr.f32.mxu0 0.0
      %2016 = vmatmul.mubr.f32.gmra.mrb[0].mxu0 %v1924
      %v2017 = vpop.f32.mrb[0].mxu0
      %v2018 = vadd.f32 %v1889, %v2017
      %v2019 = vpop.f32.mrb[0].mxu0
      %2020 = vmatprep.mubr.f32.mxu0 0.0
      %2021 = vmatmul.mubr.f32.gmra.mrb[0].mxu0 %v1927
      %v2022 = vpop.f32.mrb[0].mxu0
      %v2023 = vadd.f32 %v1894, %v2022
      %v2024 = vpop.f32.mrb[0].mxu0
      %2025 = vmatprep.mubr.f32.mxu0 0.0
      %2026 = vmatmul.mubr.f32.gmra.mrb[0].mxu0 %v1930
      %v2027 = vpop.f32.mrb[0].mxu0
      %v2028 = vadd.f32 %v1899, %v2027
      %v2029 = vpop.f32.mrb[0].mxu0
      %2030 = vmatprep.mubr.f32.mxu0 0.0
      %2031 = vmatmul.mubr.f32.gmra.mrb[0].mxu0 %v1933
      %v2032 = vpop.f32.mrb[0].mxu0
      %v2033 = vadd.f32 %v1904, %v2032
      %v2034 = vpop.f32.mrb[0].mxu0
      %2035 = vmatprep.mubr.f32.mxu0 0.0
      %2036 = vmatmul.mubr.f32.gmra.mrb[0].mxu0 %v1936
      %v2037 = vpop.f32.mrb[0].mxu0
      %v2038 = vadd.f32 %v1909, %v2037
      %v2039 = vpop.f32.mrb[0].mxu0
      %2040 = vmatprep.mubr.f32.mxu0 0.0
      %2041 = vmatmul.mubr.f32.gmra.mrb[0].mxu0 %v1939
      %v2042 = vpop.f32.mrb[0].mxu0
      %v2043 = vadd.f32 %v1914, %v2042
      %v2044 = vpop.f32.mrb[0].mxu0
      %2045 = vdwg.mxu0
      %v2046 = vld [vmem:[#allocation2 + $0x2] sm:$0xff]
      %v2047 = vld [vmem:[#allocation2 + $0x12] sm:$0xff]
      %v2048 = vld [vmem:[#allocation2 + $0x22] sm:$0xff]
      %v2049 = vld [vmem:[#allocation2 + $0x32] sm:$0xff]
      %v2050 = vld [vmem:[#allocation2 + $0x42] sm:$0xff]
      %v2051 = vld [vmem:[#allocation2 + $0x52] sm:$0xff]
      %v2052 = vld [vmem:[#allocation2 + $0x62] sm:$0xff]
      %v2053 = vld [vmem:[#allocation2 + $0x72] sm:$0xff]
      %s2054 = scalar_lea.vmem %s4, 16
      %v2055 = vld [vmem:[%s2054] sm:$0xff]
      %v2057 = vsel %vm1738, %v2046, 0
      %v2060 = vsel %vm1738, %v2047, 0
      %v2063 = vsel %vm1738, %v2048, 0
      %v2066 = vsel %vm1738, %v2049, 0
      %v2069 = vsel %vm1738, %v2050, 0
      %v2072 = vsel %vm1738, %v2051, 0
      %v2075 = vsel %vm1738, %v2052, 0
      %v2078 = vsel %vm1738, %v2053, 0
      %2080 = vmatprep.subr.mxu0 0.0
      %2081 = vmatpush1.msra.mxu0 %v2055
      %2082 = vmatprep.subr.mxu0 0.0
      %2083 = vmatpush1.msra.mxu0 0.0
      %2084 = vmatprep.subr.mxu0 0.0
      %2085 = vmatpush1.msra.mxu0 0.0
      %2086 = vmatprep.subr.mxu0 0.0
      %2087 = vmatpush1.msra.mxu0 0.0
      %2088 = vmatprep.subr.mxu0 0.0
      %2089 = vmatpush1.msra.mxu0 0.0
      %2090 = vmatprep.subr.mxu0 0.0
      %2091 = vmatpush1.msra.mxu0 0.0
      %2092 = vmatprep.subr.mxu0 0.0
      %2093 = vmatpush1.msra.mxu0 0.0
      %2094 = vmatprep.subr.mxu0 0.0
      %2095 = vmatpush1.msra.mxu0 0.0
      %2096 = vmatprep.subr.mxu0 0.0
      %2097 = vmatpush1.msra.mxu0 0.0
      %2098 = vmatprep.subr.mxu0 0.0
      %2099 = vmatpush1.msra.mxu0 0.0
      %2100 = vmatprep.subr.mxu0 0.0
      %2101 = vmatpush1.msra.mxu0 0.0
      %2102 = vmatprep.subr.mxu0 0.0
      %2103 = vmatpush1.msra.mxu0 0.0
      %2104 = vmatprep.subr.mxu0 0.0
      %2105 = vmatpush1.msra.mxu0 0.0
      %2106 = vmatprep.subr.mxu0 0.0
      %2107 = vmatpush1.msra.mxu0 0.0
      %2108 = vmatprep.subr.mxu0 0.0
      %2109 = vmatpush1.msra.mxu0 0.0
      %2110 = vmatprep.subr.mxu0 0.0
      %2111 = vmatpush1.msra.mxu0 0.0
      %2112 = vmatprep.subr.mxu0 0.0
      %2113 = vmatpush1.msra.mxu0 0.0
      %2114 = vmatprep.subr.mxu0 0.0
      %2115 = vmatpush1.msra.mxu0 0.0
      %2116 = vmatprep.subr.mxu0 0.0
      %2117 = vmatpush1.msra.mxu0 0.0
      %2118 = vmatprep.subr.mxu0 0.0
      %2119 = vmatpush1.msra.mxu0 0.0
      %2120 = vmatprep.subr.mxu0 0.0
      %2121 = vmatpush1.msra.mxu0 0.0
      %2122 = vmatprep.subr.mxu0 0.0
      %2123 = vmatpush1.msra.mxu0 0.0
      %2124 = vmatprep.subr.mxu0 0.0
      %2125 = vmatpush1.msra.mxu0 0.0
      %2126 = vmatprep.subr.mxu0 0.0
      %2127 = vmatpush1.msra.mxu0 0.0
      %2128 = vmatprep.subr.mxu0 0.0
      %2129 = vmatpush1.msra.mxu0 0.0
      %2130 = vmatprep.subr.mxu0 0.0
      %2131 = vmatpush1.msra.mxu0 0.0
      %2132 = vmatprep.subr.mxu0 0.0
      %2133 = vmatpush1.msra.mxu0 0.0
      %2134 = vmatprep.subr.mxu0 0.0
      %2135 = vmatpush1.msra.mxu0 0.0
      %2136 = vmatprep.subr.mxu0 0.0
      %2137 = vmatpush1.msra.mxu0 0.0
      %2138 = vmatprep.subr.mxu0 0.0
      %2139 = vmatpush1.msra.mxu0 0.0
      %2140 = vmatprep.subr.mxu0 0.0
      %2141 = vmatpush1.msra.mxu0 0.0
      %2142 = vmatprep.subr.mxu0 0.0
      %2143 = vmatpush1.msra.mxu0 0.0
      %2144 = vmatprep.mubr.f32.mxu0 0.0
      %2145 = vmatmul.mubr.f32.gmra.mrb[0].mxu0 %v2057
      %v2146 = vpop.f32.mrb[0].mxu0
      %v2147 = vadd.f32 0.0, %v2146
      %v2148 = vpop.f32.mrb[0].mxu0
      %2149 = vmatprep.mubr.f32.mxu0 0.0
      %2150 = vmatmul.mubr.f32.gmra.mrb[0].mxu0 %v2060
      %v2151 = vpop.f32.mrb[0].mxu0
      %v2152 = vadd.f32 0.0, %v2151
      %v2153 = vpop.f32.mrb[0].mxu0
      %2154 = vmatprep.mubr.f32.mxu0 0.0
      %2155 = vmatmul.mubr.f32.gmra.mrb[0].mxu0 %v2063
      %v2156 = vpop.f32.mrb[0].mxu0
      %v2157 = vadd.f32 0.0, %v2156
      %v2158 = vpop.f32.mrb[0].mxu0
      %2159 = vmatprep.mubr.f32.mxu0 0.0
      %2160 = vmatmul.mubr.f32.gmra.mrb[0].mxu0 %v2066
      %v2161 = vpop.f32.mrb[0].mxu0
      %v2162 = vadd.f32 0.0, %v2161
      %v2163 = vpop.f32.mrb[0].mxu0
      %2164 = vmatprep.mubr.f32.mxu0 0.0
      %2165 = vmatmul.mubr.f32.gmra.mrb[0].mxu0 %v2069
      %v2166 = vpop.f32.mrb[0].mxu0
      %v2167 = vadd.f32 0.0, %v2166
      %v2168 = vpop.f32.mrb[0].mxu0
      %2169 = vmatprep.mubr.f32.mxu0 0.0
      %2170 = vmatmul.mubr.f32.gmra.mrb[0].mxu0 %v2072
      %v2171 = vpop.f32.mrb[0].mxu0
      %v2172 = vadd.f32 0.0, %v2171
      %v2173 = vpop.f32.mrb[0].mxu0
      %2174 = vmatprep.mubr.f32.mxu0 0.0
      %2175 = vmatmul.mubr.f32.gmra.mrb[0].mxu0 %v2075
      %v2176 = vpop.f32.mrb[0].mxu0
      %v2177 = vadd.f32 0.0, %v2176
      %v2178 = vpop.f32.mrb[0].mxu0
      %2179 = vmatprep.mubr.f32.mxu0 0.0
      %2180 = vmatmul.mubr.f32.gmra.mrb[0].mxu0 %v2078
      %v2181 = vpop.f32.mrb[0].mxu0
      %v2182 = vadd.f32 0.0, %v2181
      %v2183 = vpop.f32.mrb[0].mxu0
      %2184 = vdwg.mxu0
      %v2185 = vadd.f32 %v2008, %v2147
      %v2186 = vadd.f32 %v2013, %v2152
      %v2187 = vadd.f32 %v2018, %v2157
      %v2188 = vadd.f32 %v2023, %v2162
      %v2189 = vadd.f32 %v2028, %v2167
      %v2190 = vadd.f32 %v2033, %v2172
      %v2191 = vadd.f32 %v2038, %v2177
      %v2192 = vadd.f32 %v2043, %v2182
      %v2193 = vld [vmem:[%s1760] sm:$0xff]
      %v2194 = vld [vmem:[%s1760 + $0x10] sm:$0xff]
      %v2195 = vld [vmem:[%s1760 + $0x20] sm:$0xff]
      %v2196 = vld [vmem:[%s1760 + $0x30] sm:$0xff]
      %v2197 = vld [vmem:[%s1760 + $0x40] sm:$0xff]
      %v2198 = vld [vmem:[%s1760 + $0x50] sm:$0xff]
      %v2199 = vld [vmem:[%s1760 + $0x60] sm:$0xff]
      %v2200 = vld [vmem:[%s1760 + $0x70] sm:$0xff]
      %s2201 = scalar_lea.vmem %s4, 24
      %v2202 = vld [vmem:[%s2201] sm:$0xff]
      %v2204 = vsel %vm1738, %v2193, 0
      %v2207 = vsel %vm1738, %v2194, 0
      %v2210 = vsel %vm1738, %v2195, 0
      %v2213 = vsel %vm1738, %v2196, 0
      %v2216 = vsel %vm1738, %v2197, 0
      %v2219 = vsel %vm1738, %v2198, 0
      %v2222 = vsel %vm1738, %v2199, 0
      %v2225 = vsel %vm1738, %v2200, 0
      %2227 = vmatprep.subr.mxu0 0.0
      %2228 = vmatpush1.msra.mxu0 %v2202
      %2229 = vmatprep.subr.mxu0 0.0
      %2230 = vmatpush1.msra.mxu0 0.0
      %2231 = vmatprep.subr.mxu0 0.0
      %2232 = vmatpush1.msra.mxu0 0.0
      %2233 = vmatprep.subr.mxu0 0.0
      %2234 = vmatpush1.msra.mxu0 0.0
      %2235 = vmatprep.subr.mxu0 0.0
      %2236 = vmatpush1.msra.mxu0 0.0
      %2237 = vmatprep.subr.mxu0 0.0
      %2238 = vmatpush1.msra.mxu0 0.0
      %2239 = vmatprep.subr.mxu0 0.0
      %2240 = vmatpush1.msra.mxu0 0.0
      %2241 = vmatprep.subr.mxu0 0.0
      %2242 = vmatpush1.msra.mxu0 0.0
      %2243 = vmatprep.subr.mxu0 0.0
      %2244 = vmatpush1.msra.mxu0 0.0
      %2245 = vmatprep.subr.mxu0 0.0
      %2246 = vmatpush1.msra.mxu0 0.0
      %2247 = vmatprep.subr.mxu0 0.0
      %2248 = vmatpush1.msra.mxu0 0.0
      %2249 = vmatprep.subr.mxu0 0.0
      %2250 = vmatpush1.msra.mxu0 0.0
      %2251 = vmatprep.subr.mxu0 0.0
      %2252 = vmatpush1.msra.mxu0 0.0
      %2253 = vmatprep.subr.mxu0 0.0
      %2254 = vmatpush1.msra.mxu0 0.0
      %2255 = vmatprep.subr.mxu0 0.0
      %2256 = vmatpush1.msra.mxu0 0.0
      %2257 = vmatprep.subr.mxu0 0.0
      %2258 = vmatpush1.msra.mxu0 0.0
      %2259 = vmatprep.subr.mxu0 0.0
      %2260 = vmatpush1.msra.mxu0 0.0
      %2261 = vmatprep.subr.mxu0 0.0
      %2262 = vmatpush1.msra.mxu0 0.0
      %2263 = vmatprep.subr.mxu0 0.0
      %2264 = vmatpush1.msra.mxu0 0.0
      %2265 = vmatprep.subr.mxu0 0.0
      %2266 = vmatpush1.msra.mxu0 0.0
      %2267 = vmatprep.subr.mxu0 0.0
      %2268 = vmatpush1.msra.mxu0 0.0
      %2269 = vmatprep.subr.mxu0 0.0
      %2270 = vmatpush1.msra.mxu0 0.0
      %2271 = vmatprep.subr.mxu0 0.0
      %2272 = vmatpush1.msra.mxu0 0.0
      %2273 = vmatprep.subr.mxu0 0.0
      %2274 = vmatpush1.msra.mxu0 0.0
      %2275 = vmatprep.subr.mxu0 0.0
      %2276 = vmatpush1.msra.mxu0 0.0
      %2277 = vmatprep.subr.mxu0 0.0
      %2278 = vmatpush1.msra.mxu0 0.0
      %2279 = vmatprep.subr.mxu0 0.0
      %2280 = vmatpush1.msra.mxu0 0.0
      %2281 = vmatprep.subr.mxu0 0.0
      %2282 = vmatpush1.msra.mxu0 0.0
      %2283 = vmatprep.subr.mxu0 0.0
      %2284 = vmatpush1.msra.mxu0 0.0
      %2285 = vmatprep.subr.mxu0 0.0
      %2286 = vmatpush1.msra.mxu0 0.0
      %2287 = vmatprep.subr.mxu0 0.0
      %2288 = vmatpush1.msra.mxu0 0.0
      %2289 = vmatprep.subr.mxu0 0.0
      %2290 = vmatpush1.msra.mxu0 0.0
      %2291 = vmatprep.mubr.f32.mxu0 0.0
      %2292 = vmatmul.mubr.f32.gmra.mrb[0].mxu0 %v2204
      %v2293 = vpop.f32.mrb[0].mxu0
      %v2294 = vadd.f32 0.0, %v2293
      %v2295 = vpop.f32.mrb[0].mxu0
      %2296 = vmatprep.mubr.f32.mxu0 0.0
      %2297 = vmatmul.mubr.f32.gmra.mrb[0].mxu0 %v2207
      %v2298 = vpop.f32.mrb[0].mxu0
      %v2299 = vadd.f32 0.0, %v2298
      %v2300 = vpop.f32.mrb[0].mxu0
      %2301 = vmatprep.mubr.f32.mxu0 0.0
      %2302 = vmatmul.mubr.f32.gmra.mrb[0].mxu0 %v2210
      %v2303 = vpop.f32.mrb[0].mxu0
      %v2304 = vadd.f32 0.0, %v2303
      %v2305 = vpop.f32.mrb[0].mxu0
      %2306 = vmatprep.mubr.f32.mxu0 0.0
      %2307 = vmatmul.mubr.f32.gmra.mrb[0].mxu0 %v2213
      %v2308 = vpop.f32.mrb[0].mxu0
      %v2309 = vadd.f32 0.0, %v2308
      %v2310 = vpop.f32.mrb[0].mxu0
      %2311 = vmatprep.mubr.f32.mxu0 0.0
      %2312 = vmatmul.mubr.f32.gmra.mrb[0].mxu0 %v2216
      %v2313 = vpop.f32.mrb[0].mxu0
      %v2314 = vadd.f32 0.0, %v2313
      %v2315 = vpop.f32.mrb[0].mxu0
      %2316 = vmatprep.mubr.f32.mxu0 0.0
      %2317 = vmatmul.mubr.f32.gmra.mrb[0].mxu0 %v2219
      %v2318 = vpop.f32.mrb[0].mxu0
      %v2319 = vadd.f32 0.0, %v2318
      %v2320 = vpop.f32.mrb[0].mxu0
      %2321 = vmatprep.mubr.f32.mxu0 0.0
      %2322 = vmatmul.mubr.f32.gmra.mrb[0].mxu0 %v2222
      %v2323 = vpop.f32.mrb[0].mxu0
      %v2324 = vadd.f32 0.0, %v2323
      %v2325 = vpop.f32.mrb[0].mxu0
      %2326 = vmatprep.mubr.f32.mxu0 0.0
      %2327 = vmatmul.mubr.f32.gmra.mrb[0].mxu0 %v2225
      %v2328 = vpop.f32.mrb[0].mxu0
      %v2329 = vadd.f32 0.0, %v2328
      %v2330 = vpop.f32.mrb[0].mxu0
      %2331 = vdwg.mxu0
      %v2332 = vadd.f32 %v2185, %v2294
      %v2333 = vadd.f32 %v2186, %v2299
      %v2334 = vadd.f32 %v2187, %v2304
      %v2335 = vadd.f32 %v2188, %v2309
      %v2336 = vadd.f32 %v2189, %v2314
      %v2337 = vadd.f32 %v2190, %v2319
      %v2338 = vadd.f32 %v2191, %v2324
      %v2339 = vadd.f32 %v2192, %v2329
      %v2340 = vld [vmem:[%s1760 + $0x1] sm:$0xff]
      %v2341 = vld [vmem:[%s1760 + $0x11] sm:$0xff]
      %v2342 = vld [vmem:[%s1760 + $0x21] sm:$0xff]
      %v2343 = vld [vmem:[%s1760 + $0x31] sm:$0xff]
      %v2344 = vld [vmem:[%s1760 + $0x41] sm:$0xff]
      %v2345 = vld [vmem:[%s1760 + $0x51] sm:$0xff]
      %v2346 = vld [vmem:[%s1760 + $0x61] sm:$0xff]
      %v2347 = vld [vmem:[%s1760 + $0x71] sm:$0xff]
      %s2348 = scalar_lea.vmem %s4, 32
      %v2349 = vld [vmem:[%s2348] sm:$0xff]
      %v2351 = vsel %vm1738, %v2340, 0
      %v2354 = vsel %vm1738, %v2341, 0
      %v2357 = vsel %vm1738, %v2342, 0
      %v2360 = vsel %vm1738, %v2343, 0
      %v2363 = vsel %vm1738, %v2344, 0
      %v2366 = vsel %vm1738, %v2345, 0
      %v2369 = vsel %vm1738, %v2346, 0
      %v2372 = vsel %vm1738, %v2347, 0
      %2374 = vmatprep.subr.mxu0 0.0
      %2375 = vmatpush1.msra.mxu0 %v2349
      %2376 = vmatprep.subr.mxu0 0.0
      %2377 = vmatpush1.msra.mxu0 0.0
      %2378 = vmatprep.subr.mxu0 0.0
      %2379 = vmatpush1.msra.mxu0 0.0
      %2380 = vmatprep.subr.mxu0 0.0
      %2381 = vmatpush1.msra.mxu0 0.0
      %2382 = vmatprep.subr.mxu0 0.0
      %2383 = vmatpush1.msra.mxu0 0.0
      %2384 = vmatprep.subr.mxu0 0.0
      %2385 = vmatpush1.msra.mxu0 0.0
      %2386 = vmatprep.subr.mxu0 0.0
      %2387 = vmatpush1.msra.mxu0 0.0
      %2388 = vmatprep.subr.mxu0 0.0
      %2389 = vmatpush1.msra.mxu0 0.0
      %2390 = vmatprep.subr.mxu0 0.0
      %2391 = vmatpush1.msra.mxu0 0.0
      %2392 = vmatprep.subr.mxu0 0.0
      %2393 = vmatpush1.msra.mxu0 0.0
      %2394 = vmatprep.subr.mxu0 0.0
      %2395 = vmatpush1.msra.mxu0 0.0
      %2396 = vmatprep.subr.mxu0 0.0
      %2397 = vmatpush1.msra.mxu0 0.0
      %2398 = vmatprep.subr.mxu0 0.0
      %2399 = vmatpush1.msra.mxu0 0.0
      %2400 = vmatprep.subr.mxu0 0.0
      %2401 = vmatpush1.msra.mxu0 0.0
      %2402 = vmatprep.subr.mxu0 0.0
      %2403 = vmatpush1.msra.mxu0 0.0
      %2404 = vmatprep.subr.mxu0 0.0
      %2405 = vmatpush1.msra.mxu0 0.0
      %2406 = vmatprep.subr.mxu0 0.0
      %2407 = vmatpush1.msra.mxu0 0.0
      %2408 = vmatprep.subr.mxu0 0.0
      %2409 = vmatpush1.msra.mxu0 0.0
      %2410 = vmatprep.subr.mxu0 0.0
      %2411 = vmatpush1.msra.mxu0 0.0
      %2412 = vmatprep.subr.mxu0 0.0
      %2413 = vmatpush1.msra.mxu0 0.0
      %2414 = vmatprep.subr.mxu0 0.0
      %2415 = vmatpush1.msra.mxu0 0.0
      %2416 = vmatprep.subr.mxu0 0.0
      %2417 = vmatpush1.msra.mxu0 0.0
      %2418 = vmatprep.subr.mxu0 0.0
      %2419 = vmatpush1.msra.mxu0 0.0
      %2420 = vmatprep.subr.mxu0 0.0
      %2421 = vmatpush1.msra.mxu0 0.0
      %2422 = vmatprep.subr.mxu0 0.0
      %2423 = vmatpush1.msra.mxu0 0.0
      %2424 = vmatprep.subr.mxu0 0.0
      %2425 = vmatpush1.msra.mxu0 0.0
      %2426 = vmatprep.subr.mxu0 0.0
      %2427 = vmatpush1.msra.mxu0 0.0
      %2428 = vmatprep.subr.mxu0 0.0
      %2429 = vmatpush1.msra.mxu0 0.0
      %2430 = vmatprep.subr.mxu0 0.0
      %2431 = vmatpush1.msra.mxu0 0.0
      %2432 = vmatprep.subr.mxu0 0.0
      %2433 = vmatpush1.msra.mxu0 0.0
      %2434 = vmatprep.subr.mxu0 0.0
      %2435 = vmatpush1.msra.mxu0 0.0
      %2436 = vmatprep.subr.mxu0 0.0
      %2437 = vmatpush1.msra.mxu0 0.0
      %2438 = vmatprep.mubr.f32.mxu0 0.0
      %2439 = vmatmul.mubr.f32.gmra.mrb[0].mxu0 %v2351
      %v2440 = vpop.f32.mrb[0].mxu0
      %v2441 = vadd.f32 0.0, %v2440
      %v2442 = vpop.f32.mrb[0].mxu0
      %2443 = vmatprep.mubr.f32.mxu0 0.0
      %2444 = vmatmul.mubr.f32.gmra.mrb[0].mxu0 %v2354
      %v2445 = vpop.f32.mrb[0].mxu0
      %v2446 = vadd.f32 0.0, %v2445
      %v2447 = vpop.f32.mrb[0].mxu0
      %2448 = vmatprep.mubr.f32.mxu0 0.0
      %2449 = vmatmul.mubr.f32.gmra.mrb[0].mxu0 %v2357
      %v2450 = vpop.f32.mrb[0].mxu0
      %v2451 = vadd.f32 0.0, %v2450
      %v2452 = vpop.f32.mrb[0].mxu0
      %2453 = vmatprep.mubr.f32.mxu0 0.0
      %2454 = vmatmul.mubr.f32.gmra.mrb[0].mxu0 %v2360
      %v2455 = vpop.f32.mrb[0].mxu0
      %v2456 = vadd.f32 0.0, %v2455
      %v2457 = vpop.f32.mrb[0].mxu0
      %2458 = vmatprep.mubr.f32.mxu0 0.0
      %2459 = vmatmul.mubr.f32.gmra.mrb[0].mxu0 %v2363
      %v2460 = vpop.f32.mrb[0].mxu0
      %v2461 = vadd.f32 0.0, %v2460
      %v2462 = vpop.f32.mrb[0].mxu0
      %2463 = vmatprep.mubr.f32.mxu0 0.0
      %2464 = vmatmul.mubr.f32.gmra.mrb[0].mxu0 %v2366
      %v2465 = vpop.f32.mrb[0].mxu0
      %v2466 = vadd.f32 0.0, %v2465
      %v2467 = vpop.f32.mrb[0].mxu0
      %2468 = vmatprep.mubr.f32.mxu0 0.0
      %2469 = vmatmul.mubr.f32.gmra.mrb[0].mxu0 %v2369
      %v2470 = vpop.f32.mrb[0].mxu0
      %v2471 = vadd.f32 0.0, %v2470
      %v2472 = vpop.f32.mrb[0].mxu0
      %2473 = vmatprep.mubr.f32.mxu0 0.0
      %2474 = vmatmul.mubr.f32.gmra.mrb[0].mxu0 %v2372
      %v2475 = vpop.f32.mrb[0].mxu0
      %v2476 = vadd.f32 0.0, %v2475
      %v2477 = vpop.f32.mrb[0].mxu0
      %2478 = vdwg.mxu0
      %v2479 = vadd.f32 %v2332, %v2441
      %v2480 = vadd.f32 %v2333, %v2446
      %v2481 = vadd.f32 %v2334, %v2451
      %v2482 = vadd.f32 %v2335, %v2456
      %v2483 = vadd.f32 %v2336, %v2461
      %v2484 = vadd.f32 %v2337, %v2466
      %v2485 = vadd.f32 %v2338, %v2471
      %v2486 = vadd.f32 %v2339, %v2476
      %v2487 = vld [vmem:[%s1760 + $0x2] sm:$0xff]
      %v2488 = vld [vmem:[%s1760 + $0x12] sm:$0xff]
      %v2489 = vld [vmem:[%s1760 + $0x22] sm:$0xff]
      %v2490 = vld [vmem:[%s1760 + $0x32] sm:$0xff]
      %v2491 = vld [vmem:[%s1760 + $0x42] sm:$0xff]
      %v2492 = vld [vmem:[%s1760 + $0x52] sm:$0xff]
      %v2493 = vld [vmem:[%s1760 + $0x62] sm:$0xff]
      %v2494 = vld [vmem:[%s1760 + $0x72] sm:$0xff]
      %s2495 = scalar_lea.vmem %s4, 40
      %v2496 = vld [vmem:[%s2495] sm:$0xff]
      %v2498 = vsel %vm1738, %v2487, 0
      %v2501 = vsel %vm1738, %v2488, 0
      %v2504 = vsel %vm1738, %v2489, 0
      %v2507 = vsel %vm1738, %v2490, 0
      %v2510 = vsel %vm1738, %v2491, 0
      %v2513 = vsel %vm1738, %v2492, 0
      %v2516 = vsel %vm1738, %v2493, 0
      %v2519 = vsel %vm1738, %v2494, 0
      %2521 = vmatprep.subr.mxu0 0.0
      %2522 = vmatpush1.msra.mxu0 %v2496
      %2523 = vmatprep.subr.mxu0 0.0
      %2524 = vmatpush1.msra.mxu0 0.0
      %2525 = vmatprep.subr.mxu0 0.0
      %2526 = vmatpush1.msra.mxu0 0.0
      %2527 = vmatprep.subr.mxu0 0.0
      %2528 = vmatpush1.msra.mxu0 0.0
      %2529 = vmatprep.subr.mxu0 0.0
      %2530 = vmatpush1.msra.mxu0 0.0
      %2531 = vmatprep.subr.mxu0 0.0
      %2532 = vmatpush1.msra.mxu0 0.0
      %2533 = vmatprep.subr.mxu0 0.0
      %2534 = vmatpush1.msra.mxu0 0.0
      %2535 = vmatprep.subr.mxu0 0.0
      %2536 = vmatpush1.msra.mxu0 0.0
      %2537 = vmatprep.subr.mxu0 0.0
      %2538 = vmatpush1.msra.mxu0 0.0
      %2539 = vmatprep.subr.mxu0 0.0
      %2540 = vmatpush1.msra.mxu0 0.0
      %2541 = vmatprep.subr.mxu0 0.0
      %2542 = vmatpush1.msra.mxu0 0.0
      %2543 = vmatprep.subr.mxu0 0.0
      %2544 = vmatpush1.msra.mxu0 0.0
      %2545 = vmatprep.subr.mxu0 0.0
      %2546 = vmatpush1.msra.mxu0 0.0
      %2547 = vmatprep.subr.mxu0 0.0
      %2548 = vmatpush1.msra.mxu0 0.0
      %2549 = vmatprep.subr.mxu0 0.0
      %2550 = vmatpush1.msra.mxu0 0.0
      %2551 = vmatprep.subr.mxu0 0.0
      %2552 = vmatpush1.msra.mxu0 0.0
      %2553 = vmatprep.subr.mxu0 0.0
      %2554 = vmatpush1.msra.mxu0 0.0
      %2555 = vmatprep.subr.mxu0 0.0
      %2556 = vmatpush1.msra.mxu0 0.0
      %2557 = vmatprep.subr.mxu0 0.0
      %2558 = vmatpush1.msra.mxu0 0.0
      %2559 = vmatprep.subr.mxu0 0.0
      %2560 = vmatpush1.msra.mxu0 0.0
      %2561 = vmatprep.subr.mxu0 0.0
      %2562 = vmatpush1.msra.mxu0 0.0
      %2563 = vmatprep.subr.mxu0 0.0
      %2564 = vmatpush1.msra.mxu0 0.0
      %2565 = vmatprep.subr.mxu0 0.0
      %2566 = vmatpush1.msra.mxu0 0.0
      %2567 = vmatprep.subr.mxu0 0.0
      %2568 = vmatpush1.msra.mxu0 0.0
      %2569 = vmatprep.subr.mxu0 0.0
      %2570 = vmatpush1.msra.mxu0 0.0
      %2571 = vmatprep.subr.mxu0 0.0
      %2572 = vmatpush1.msra.mxu0 0.0
      %2573 = vmatprep.subr.mxu0 0.0
      %2574 = vmatpush1.msra.mxu0 0.0
      %2575 = vmatprep.subr.mxu0 0.0
      %2576 = vmatpush1.msra.mxu0 0.0
      %2577 = vmatprep.subr.mxu0 0.0
      %2578 = vmatpush1.msra.mxu0 0.0
      %2579 = vmatprep.subr.mxu0 0.0
      %2580 = vmatpush1.msra.mxu0 0.0
      %2581 = vmatprep.subr.mxu0 0.0
      %2582 = vmatpush1.msra.mxu0 0.0
      %2583 = vmatprep.subr.mxu0 0.0
      %2584 = vmatpush1.msra.mxu0 0.0
      %2585 = vmatprep.mubr.f32.mxu0 0.0
      %2586 = vmatmul.mubr.f32.gmra.mrb[0].mxu0 %v2498
      %v2587 = vpop.f32.mrb[0].mxu0
      %v2588 = vadd.f32 0.0, %v2587
      %v2589 = vpop.f32.mrb[0].mxu0
      %2590 = vmatprep.mubr.f32.mxu0 0.0
      %2591 = vmatmul.mubr.f32.gmra.mrb[0].mxu0 %v2501
      %v2592 = vpop.f32.mrb[0].mxu0
      %v2593 = vadd.f32 0.0, %v2592
      %v2594 = vpop.f32.mrb[0].mxu0
      %2595 = vmatprep.mubr.f32.mxu0 0.0
      %2596 = vmatmul.mubr.f32.gmra.mrb[0].mxu0 %v2504
      %v2597 = vpop.f32.mrb[0].mxu0
      %v2598 = vadd.f32 0.0, %v2597
      %v2599 = vpop.f32.mrb[0].mxu0
      %2600 = vmatprep.mubr.f32.mxu0 0.0
      %2601 = vmatmul.mubr.f32.gmra.mrb[0].mxu0 %v2507
      %v2602 = vpop.f32.mrb[0].mxu0
      %v2603 = vadd.f32 0.0, %v2602
      %v2604 = vpop.f32.mrb[0].mxu0
      %2605 = vmatprep.mubr.f32.mxu0 0.0
      %2606 = vmatmul.mubr.f32.gmra.mrb[0].mxu0 %v2510
      %v2607 = vpop.f32.mrb[0].mxu0
      %v2608 = vadd.f32 0.0, %v2607
      %v2609 = vpop.f32.mrb[0].mxu0
      %2610 = vmatprep.mubr.f32.mxu0 0.0
      %2611 = vmatmul.mubr.f32.gmra.mrb[0].mxu0 %v2513
      %v2612 = vpop.f32.mrb[0].mxu0
      %v2613 = vadd.f32 0.0, %v2612
      %v2614 = vpop.f32.mrb[0].mxu0
      %2615 = vmatprep.mubr.f32.mxu0 0.0
      %2616 = vmatmul.mubr.f32.gmra.mrb[0].mxu0 %v2516
      %v2617 = vpop.f32.mrb[0].mxu0
      %v2618 = vadd.f32 0.0, %v2617
      %v2619 = vpop.f32.mrb[0].mxu0
      %2620 = vmatprep.mubr.f32.mxu0 0.0
      %2621 = vmatmul.mubr.f32.gmra.mrb[0].mxu0 %v2519
      %v2622 = vpop.f32.mrb[0].mxu0
      %v2623 = vadd.f32 0.0, %v2622
      %v2624 = vpop.f32.mrb[0].mxu0
      %2625 = vdwg.mxu0
      %v2626 = vadd.f32 %v2479, %v2588
      %v2627 = vadd.f32 %v2480, %v2593
      %v2628 = vadd.f32 %v2481, %v2598
      %v2629 = vadd.f32 %v2482, %v2603
      %v2630 = vadd.f32 %v2483, %v2608
      %v2631 = vadd.f32 %v2484, %v2613
      %v2632 = vadd.f32 %v2485, %v2618
      %v2633 = vadd.f32 %v2486, %v2623
      %s2634 = scalar_lea.vmem [#allocation2], 32
      %v2635 = vld [vmem:[%s2634] sm:$0xff]
      %v2636 = vld [vmem:[%s2634 + $0x10] sm:$0xff]
      %v2637 = vld [vmem:[%s2634 + $0x20] sm:$0xff]
      %v2638 = vld [vmem:[%s2634 + $0x30] sm:$0xff]
      %v2639 = vld [vmem:[%s2634 + $0x40] sm:$0xff]
      %v2640 = vld [vmem:[%s2634 + $0x50] sm:$0xff]
      %v2641 = vld [vmem:[%s2634 + $0x60] sm:$0xff]
      %v2642 = vld [vmem:[%s2634 + $0x70] sm:$0xff]
      %s2643 = scalar_lea.vmem %s4, 48
      %v2644 = vld [vmem:[%s2643] sm:$0xff]
      %v2646 = vsel %vm1738, %v2635, 0
      %v2649 = vsel %vm1738, %v2636, 0
      %v2652 = vsel %vm1738, %v2637, 0
      %v2655 = vsel %vm1738, %v2638, 0
      %v2658 = vsel %vm1738, %v2639, 0
      %v2661 = vsel %vm1738, %v2640, 0
      %v2664 = vsel %vm1738, %v2641, 0
      %v2667 = vsel %vm1738, %v2642, 0
      %2669 = vmatprep.subr.mxu0 0.0
      %2670 = vmatpush1.msra.mxu0 %v2644
      %2671 = vmatprep.subr.mxu0 0.0
      %2672 = vmatpush1.msra.mxu0 0.0
      %2673 = vmatprep.subr.mxu0 0.0
      %2674 = vmatpush1.msra.mxu0 0.0
      %2675 = vmatprep.subr.mxu0 0.0
      %2676 = vmatpush1.msra.mxu0 0.0
      %2677 = vmatprep.subr.mxu0 0.0
      %2678 = vmatpush1.msra.mxu0 0.0
      %2679 = vmatprep.subr.mxu0 0.0
      %2680 = vmatpush1.msra.mxu0 0.0
      %2681 = vmatprep.subr.mxu0 0.0
      %2682 = vmatpush1.msra.mxu0 0.0
      %2683 = vmatprep.subr.mxu0 0.0
      %2684 = vmatpush1.msra.mxu0 0.0
      %2685 = vmatprep.subr.mxu0 0.0
      %2686 = vmatpush1.msra.mxu0 0.0
      %2687 = vmatprep.subr.mxu0 0.0
      %2688 = vmatpush1.msra.mxu0 0.0
      %2689 = vmatprep.subr.mxu0 0.0
      %2690 = vmatpush1.msra.mxu0 0.0
      %2691 = vmatprep.subr.mxu0 0.0
      %2692 = vmatpush1.msra.mxu0 0.0
      %2693 = vmatprep.subr.mxu0 0.0
      %2694 = vmatpush1.msra.mxu0 0.0
      %2695 = vmatprep.subr.mxu0 0.0
      %2696 = vmatpush1.msra.mxu0 0.0
      %2697 = vmatprep.subr.mxu0 0.0
      %2698 = vmatpush1.msra.mxu0 0.0
      %2699 = vmatprep.subr.mxu0 0.0
      %2700 = vmatpush1.msra.mxu0 0.0
      %2701 = vmatprep.subr.mxu0 0.0
      %2702 = vmatpush1.msra.mxu0 0.0
      %2703 = vmatprep.subr.mxu0 0.0
      %2704 = vmatpush1.msra.mxu0 0.0
      %2705 = vmatprep.subr.mxu0 0.0
      %2706 = vmatpush1.msra.mxu0 0.0
      %2707 = vmatprep.subr.mxu0 0.0
      %2708 = vmatpush1.msra.mxu0 0.0
      %2709 = vmatprep.subr.mxu0 0.0
      %2710 = vmatpush1.msra.mxu0 0.0
      %2711 = vmatprep.subr.mxu0 0.0
      %2712 = vmatpush1.msra.mxu0 0.0
      %2713 = vmatprep.subr.mxu0 0.0
      %2714 = vmatpush1.msra.mxu0 0.0
      %2715 = vmatprep.subr.mxu0 0.0
      %2716 = vmatpush1.msra.mxu0 0.0
      %2717 = vmatprep.subr.mxu0 0.0
      %2718 = vmatpush1.msra.mxu0 0.0
      %2719 = vmatprep.subr.mxu0 0.0
      %2720 = vmatpush1.msra.mxu0 0.0
      %2721 = vmatprep.subr.mxu0 0.0
      %2722 = vmatpush1.msra.mxu0 0.0
      %2723 = vmatprep.subr.mxu0 0.0
      %2724 = vmatpush1.msra.mxu0 0.0
      %2725 = vmatprep.subr.mxu0 0.0
      %2726 = vmatpush1.msra.mxu0 0.0
      %2727 = vmatprep.subr.mxu0 0.0
      %2728 = vmatpush1.msra.mxu0 0.0
      %2729 = vmatprep.subr.mxu0 0.0
      %2730 = vmatpush1.msra.mxu0 0.0
      %2731 = vmatprep.subr.mxu0 0.0
      %2732 = vmatpush1.msra.mxu0 0.0
      %2733 = vmatprep.mubr.f32.mxu0 0.0
      %2734 = vmatmul.mubr.f32.gmra.mrb[0].mxu0 %v2646
      %v2735 = vpop.f32.mrb[0].mxu0
      %v2736 = vadd.f32 0.0, %v2735
      %v2737 = vpop.f32.mrb[0].mxu0
      %2738 = vmatprep.mubr.f32.mxu0 0.0
      %2739 = vmatmul.mubr.f32.gmra.mrb[0].mxu0 %v2649
      %v2740 = vpop.f32.mrb[0].mxu0
      %v2741 = vadd.f32 0.0, %v2740
      %v2742 = vpop.f32.mrb[0].mxu0
      %2743 = vmatprep.mubr.f32.mxu0 0.0
      %2744 = vmatmul.mubr.f32.gmra.mrb[0].mxu0 %v2652
      %v2745 = vpop.f32.mrb[0].mxu0
      %v2746 = vadd.f32 0.0, %v2745
      %v2747 = vpop.f32.mrb[0].mxu0
      %2748 = vmatprep.mubr.f32.mxu0 0.0
      %2749 = vmatmul.mubr.f32.gmra.mrb[0].mxu0 %v2655
      %v2750 = vpop.f32.mrb[0].mxu0
      %v2751 = vadd.f32 0.0, %v2750
      %v2752 = vpop.f32.mrb[0].mxu0
      %2753 = vmatprep.mubr.f32.mxu0 0.0
      %2754 = vmatmul.mubr.f32.gmra.mrb[0].mxu0 %v2658
      %v2755 = vpop.f32.mrb[0].mxu0
      %v2756 = vadd.f32 0.0, %v2755
      %v2757 = vpop.f32.mrb[0].mxu0
      %2758 = vmatprep.mubr.f32.mxu0 0.0
      %2759 = vmatmul.mubr.f32.gmra.mrb[0].mxu0 %v2661
      %v2760 = vpop.f32.mrb[0].mxu0
      %v2761 = vadd.f32 0.0, %v2760
      %v2762 = vpop.f32.mrb[0].mxu0
      %2763 = vmatprep.mubr.f32.mxu0 0.0
      %2764 = vmatmul.mubr.f32.gmra.mrb[0].mxu0 %v2664
      %v2765 = vpop.f32.mrb[0].mxu0
      %v2766 = vadd.f32 0.0, %v2765
      %v2767 = vpop.f32.mrb[0].mxu0
      %2768 = vmatprep.mubr.f32.mxu0 0.0
      %2769 = vmatmul.mubr.f32.gmra.mrb[0].mxu0 %v2667
      %v2770 = vpop.f32.mrb[0].mxu0
      %v2771 = vadd.f32 0.0, %v2770
      %v2772 = vpop.f32.mrb[0].mxu0
      %2773 = vdwg.mxu0
      %v2774 = vadd.f32 %v2626, %v2736
      %v2775 = vadd.f32 %v2627, %v2741
      %v2776 = vadd.f32 %v2628, %v2746
      %v2777 = vadd.f32 %v2629, %v2751
      %v2778 = vadd.f32 %v2630, %v2756
      %v2779 = vadd.f32 %v2631, %v2761
      %v2780 = vadd.f32 %v2632, %v2766
      %v2781 = vadd.f32 %v2633, %v2771
      %v2782 = vld [vmem:[%s2634 + $0x1] sm:$0xff]
      %v2783 = vld [vmem:[%s2634 + $0x11] sm:$0xff]
      %v2784 = vld [vmem:[%s2634 + $0x21] sm:$0xff]
      %v2785 = vld [vmem:[%s2634 + $0x31] sm:$0xff]
      %v2786 = vld [vmem:[%s2634 + $0x41] sm:$0xff]
      %v2787 = vld [vmem:[%s2634 + $0x51] sm:$0xff]
      %v2788 = vld [vmem:[%s2634 + $0x61] sm:$0xff]
      %v2789 = vld [vmem:[%s2634 + $0x71] sm:$0xff]
      %s2790 = scalar_lea.vmem %s4, 56
      %v2791 = vld [vmem:[%s2790] sm:$0xff]
      %v2793 = vsel %vm1738, %v2782, 0
      %v2796 = vsel %vm1738, %v2783, 0
      %v2799 = vsel %vm1738, %v2784, 0
      %v2802 = vsel %vm1738, %v2785, 0
      %v2805 = vsel %vm1738, %v2786, 0
      %v2808 = vsel %vm1738, %v2787, 0
      %v2811 = vsel %vm1738, %v2788, 0
      %v2814 = vsel %vm1738, %v2789, 0
      %2816 = vmatprep.subr.mxu0 0.0
      %2817 = vmatpush1.msra.mxu0 %v2791
      %2818 = vmatprep.subr.mxu0 0.0
      %2819 = vmatpush1.msra.mxu0 0.0
      %2820 = vmatprep.subr.mxu0 0.0
      %2821 = vmatpush1.msra.mxu0 0.0
      %2822 = vmatprep.subr.mxu0 0.0
      %2823 = vmatpush1.msra.mxu0 0.0
      %2824 = vmatprep.subr.mxu0 0.0
      %2825 = vmatpush1.msra.mxu0 0.0
      %2826 = vmatprep.subr.mxu0 0.0
      %2827 = vmatpush1.msra.mxu0 0.0
      %2828 = vmatprep.subr.mxu0 0.0
      %2829 = vmatpush1.msra.mxu0 0.0
      %2830 = vmatprep.subr.mxu0 0.0
      %2831 = vmatpush1.msra.mxu0 0.0
      %2832 = vmatprep.subr.mxu0 0.0
      %2833 = vmatpush1.msra.mxu0 0.0
      %2834 = vmatprep.subr.mxu0 0.0
      %2835 = vmatpush1.msra.mxu0 0.0
      %2836 = vmatprep.subr.mxu0 0.0
      %2837 = vmatpush1.msra.mxu0 0.0
      %2838 = vmatprep.subr.mxu0 0.0
      %2839 = vmatpush1.msra.mxu0 0.0
      %2840 = vmatprep.subr.mxu0 0.0
      %2841 = vmatpush1.msra.mxu0 0.0
      %2842 = vmatprep.subr.mxu0 0.0
      %2843 = vmatpush1.msra.mxu0 0.0
      %2844 = vmatprep.subr.mxu0 0.0
      %2845 = vmatpush1.msra.mxu0 0.0
      %2846 = vmatprep.subr.mxu0 0.0
      %2847 = vmatpush1.msra.mxu0 0.0
      %2848 = vmatprep.subr.mxu0 0.0
      %2849 = vmatpush1.msra.mxu0 0.0
      %2850 = vmatprep.subr.mxu0 0.0
      %2851 = vmatpush1.msra.mxu0 0.0
      %2852 = vmatprep.subr.mxu0 0.0
      %2853 = vmatpush1.msra.mxu0 0.0
      %2854 = vmatprep.subr.mxu0 0.0
      %2855 = vmatpush1.msra.mxu0 0.0
      %2856 = vmatprep.subr.mxu0 0.0
      %2857 = vmatpush1.msra.mxu0 0.0
      %2858 = vmatprep.subr.mxu0 0.0
      %2859 = vmatpush1.msra.mxu0 0.0
      %2860 = vmatprep.subr.mxu0 0.0
      %2861 = vmatpush1.msra.mxu0 0.0
      %2862 = vmatprep.subr.mxu0 0.0
      %2863 = vmatpush1.msra.mxu0 0.0
      %2864 = vmatprep.subr.mxu0 0.0
      %2865 = vmatpush1.msra.mxu0 0.0
      %2866 = vmatprep.subr.mxu0 0.0
      %2867 = vmatpush1.msra.mxu0 0.0
      %2868 = vmatprep.subr.mxu0 0.0
      %2869 = vmatpush1.msra.mxu0 0.0
      %2870 = vmatprep.subr.mxu0 0.0
      %2871 = vmatpush1.msra.mxu0 0.0
      %2872 = vmatprep.subr.mxu0 0.0
      %2873 = vmatpush1.msra.mxu0 0.0
      %2874 = vmatprep.subr.mxu0 0.0
      %2875 = vmatpush1.msra.mxu0 0.0
      %2876 = vmatprep.subr.mxu0 0.0
      %2877 = vmatpush1.msra.mxu0 0.0
      %2878 = vmatprep.subr.mxu0 0.0
      %2879 = vmatpush1.msra.mxu0 0.0
      %2880 = vmatprep.mubr.f32.mxu0 0.0
      %2881 = vmatmul.mubr.f32.gmra.mrb[0].mxu0 %v2793
      %v2882 = vpop.f32.mrb[0].mxu0
      %v2883 = vadd.f32 0.0, %v2882
      %v2884 = vpop.f32.mrb[0].mxu0
      %2885 = vmatprep.mubr.f32.mxu0 0.0
      %2886 = vmatmul.mubr.f32.gmra.mrb[0].mxu0 %v2796
      %v2887 = vpop.f32.mrb[0].mxu0
      %v2888 = vadd.f32 0.0, %v2887
      %v2889 = vpop.f32.mrb[0].mxu0
      %2890 = vmatprep.mubr.f32.mxu0 0.0
      %2891 = vmatmul.mubr.f32.gmra.mrb[0].mxu0 %v2799
      %v2892 = vpop.f32.mrb[0].mxu0
      %v2893 = vadd.f32 0.0, %v2892
      %v2894 = vpop.f32.mrb[0].mxu0
      %2895 = vmatprep.mubr.f32.mxu0 0.0
      %2896 = vmatmul.mubr.f32.gmra.mrb[0].mxu0 %v2802
      %v2897 = vpop.f32.mrb[0].mxu0
      %v2898 = vadd.f32 0.0, %v2897
      %v2899 = vpop.f32.mrb[0].mxu0
      %2900 = vmatprep.mubr.f32.mxu0 0.0
      %2901 = vmatmul.mubr.f32.gmra.mrb[0].mxu0 %v2805
      %v2902 = vpop.f32.mrb[0].mxu0
      %v2903 = vadd.f32 0.0, %v2902
      %v2904 = vpop.f32.mrb[0].mxu0
      %2905 = vmatprep.mubr.f32.mxu0 0.0
      %2906 = vmatmul.mubr.f32.gmra.mrb[0].mxu0 %v2808
      %v2907 = vpop.f32.mrb[0].mxu0
      %v2908 = vadd.f32 0.0, %v2907
      %v2909 = vpop.f32.mrb[0].mxu0
      %2910 = vmatprep.mubr.f32.mxu0 0.0
      %2911 = vmatmul.mubr.f32.gmra.mrb[0].mxu0 %v2811
      %v2912 = vpop.f32.mrb[0].mxu0
      %v2913 = vadd.f32 0.0, %v2912
      %v2914 = vpop.f32.mrb[0].mxu0
      %2915 = vmatprep.mubr.f32.mxu0 0.0
      %2916 = vmatmul.mubr.f32.gmra.mrb[0].mxu0 %v2814
      %v2917 = vpop.f32.mrb[0].mxu0
      %v2918 = vadd.f32 0.0, %v2917
      %v2919 = vpop.f32.mrb[0].mxu0
      %2920 = vdwg.mxu0
      %v2921 = vadd.f32 %v2774, %v2883
      %v2922 = vadd.f32 %v2775, %v2888
      %v2923 = vadd.f32 %v2776, %v2893
      %v2924 = vadd.f32 %v2777, %v2898
      %v2925 = vadd.f32 %v2778, %v2903
      %v2926 = vadd.f32 %v2779, %v2908
      %v2927 = vadd.f32 %v2780, %v2913
      %v2928 = vadd.f32 %v2781, %v2918
      %v2929 = vld [vmem:[%s2634 + $0x2] sm:$0xff]
      %v2930 = vld [vmem:[%s2634 + $0x12] sm:$0xff]
      %v2931 = vld [vmem:[%s2634 + $0x22] sm:$0xff]
      %v2932 = vld [vmem:[%s2634 + $0x32] sm:$0xff]
      %v2933 = vld [vmem:[%s2634 + $0x42] sm:$0xff]
      %v2934 = vld [vmem:[%s2634 + $0x52] sm:$0xff]
      %v2935 = vld [vmem:[%s2634 + $0x62] sm:$0xff]
      %v2936 = vld [vmem:[%s2634 + $0x72] sm:$0xff]
      %s2937 = scalar_lea.vmem %s4, 64
      %v2938 = vld [vmem:[%s2937] sm:$0xff]
      %v2940 = vsel %vm1738, %v2929, 0
      %v2943 = vsel %vm1738, %v2930, 0
      %v2946 = vsel %vm1738, %v2931, 0
      %v2949 = vsel %vm1738, %v2932, 0
      %v2952 = vsel %vm1738, %v2933, 0
      %v2955 = vsel %vm1738, %v2934, 0
      %v2958 = vsel %vm1738, %v2935, 0
      %v2961 = vsel %vm1738, %v2936, 0
      %2963 = vmatprep.subr.mxu0 0.0
      %2964 = vmatpush1.msra.mxu0 %v2938
      %2965 = vmatprep.subr.mxu0 0.0
      %2966 = vmatpush1.msra.mxu0 0.0
      %2967 = vmatprep.subr.mxu0 0.0
      %2968 = vmatpush1.msra.mxu0 0.0
      %2969 = vmatprep.subr.mxu0 0.0
      %2970 = vmatpush1.msra.mxu0 0.0
      %2971 = vmatprep.subr.mxu0 0.0
      %2972 = vmatpush1.msra.mxu0 0.0
      %2973 = vmatprep.subr.mxu0 0.0
      %2974 = vmatpush1.msra.mxu0 0.0
      %2975 = vmatprep.subr.mxu0 0.0
      %2976 = vmatpush1.msra.mxu0 0.0
      %2977 = vmatprep.subr.mxu0 0.0
      %2978 = vmatpush1.msra.mxu0 0.0
      %2979 = vmatprep.subr.mxu0 0.0
      %2980 = vmatpush1.msra.mxu0 0.0
      %2981 = vmatprep.subr.mxu0 0.0
      %2982 = vmatpush1.msra.mxu0 0.0
      %2983 = vmatprep.subr.mxu0 0.0
      %2984 = vmatpush1.msra.mxu0 0.0
      %2985 = vmatprep.subr.mxu0 0.0
      %2986 = vmatpush1.msra.mxu0 0.0
      %2987 = vmatprep.subr.mxu0 0.0
      %2988 = vmatpush1.msra.mxu0 0.0
      %2989 = vmatprep.subr.mxu0 0.0
      %2990 = vmatpush1.msra.mxu0 0.0
      %2991 = vmatprep.subr.mxu0 0.0
      %2992 = vmatpush1.msra.mxu0 0.0
      %2993 = vmatprep.subr.mxu0 0.0
      %2994 = vmatpush1.msra.mxu0 0.0
      %2995 = vmatprep.subr.mxu0 0.0
      %2996 = vmatpush1.msra.mxu0 0.0
      %2997 = vmatprep.subr.mxu0 0.0
      %2998 = vmatpush1.msra.mxu0 0.0
      %2999 = vmatprep.subr.mxu0 0.0
      %3000 = vmatpush1.msra.mxu0 0.0
      %3001 = vmatprep.subr.mxu0 0.0
      %3002 = vmatpush1.msra.mxu0 0.0
      %3003 = vmatprep.subr.mxu0 0.0
      %3004 = vmatpush1.msra.mxu0 0.0
      %3005 = vmatprep.subr.mxu0 0.0
      %3006 = vmatpush1.msra.mxu0 0.0
      %3007 = vmatprep.subr.mxu0 0.0
      %3008 = vmatpush1.msra.mxu0 0.0
      %3009 = vmatprep.subr.mxu0 0.0
      %3010 = vmatpush1.msra.mxu0 0.0
      %3011 = vmatprep.subr.mxu0 0.0
      %3012 = vmatpush1.msra.mxu0 0.0
      %3013 = vmatprep.subr.mxu0 0.0
      %3014 = vmatpush1.msra.mxu0 0.0
      %3015 = vmatprep.subr.mxu0 0.0
      %3016 = vmatpush1.msra.mxu0 0.0
      %3017 = vmatprep.subr.mxu0 0.0
      %3018 = vmatpush1.msra.mxu0 0.0
      %3019 = vmatprep.subr.mxu0 0.0
      %3020 = vmatpush1.msra.mxu0 0.0
      %3021 = vmatprep.subr.mxu0 0.0
      %3022 = vmatpush1.msra.mxu0 0.0
      %3023 = vmatprep.subr.mxu0 0.0
      %3024 = vmatpush1.msra.mxu0 0.0
      %3025 = vmatprep.subr.mxu0 0.0
      %3026 = vmatpush1.msra.mxu0 0.0
      %3027 = vmatprep.mubr.f32.mxu0 0.0
      %3028 = vmatmul.mubr.f32.gmra.mrb[0].mxu0 %v2940
      %v3029 = vpop.f32.mrb[0].mxu0
      %v3030 = vadd.f32 0.0, %v3029
      %v3031 = vpop.f32.mrb[0].mxu0
      %3032 = vmatprep.mubr.f32.mxu0 0.0
      %3033 = vmatmul.mubr.f32.gmra.mrb[0].mxu0 %v2943
      %v3034 = vpop.f32.mrb[0].mxu0
      %v3035 = vadd.f32 0.0, %v3034
      %v3036 = vpop.f32.mrb[0].mxu0
      %3037 = vmatprep.mubr.f32.mxu0 0.0
      %3038 = vmatmul.mubr.f32.gmra.mrb[0].mxu0 %v2946
      %v3039 = vpop.f32.mrb[0].mxu0
      %v3040 = vadd.f32 0.0, %v3039
      %v3041 = vpop.f32.mrb[0].mxu0
      %3042 = vmatprep.mubr.f32.mxu0 0.0
      %3043 = vmatmul.mubr.f32.gmra.mrb[0].mxu0 %v2949
      %v3044 = vpop.f32.mrb[0].mxu0
      %v3045 = vadd.f32 0.0, %v3044
      %v3046 = vpop.f32.mrb[0].mxu0
      %3047 = vmatprep.mubr.f32.mxu0 0.0
      %3048 = vmatmul.mubr.f32.gmra.mrb[0].mxu0 %v2952
      %v3049 = vpop.f32.mrb[0].mxu0
      %v3050 = vadd.f32 0.0, %v3049
      %v3051 = vpop.f32.mrb[0].mxu0
      %3052 = vmatprep.mubr.f32.mxu0 0.0
      %3053 = vmatmul.mubr.f32.gmra.mrb[0].mxu0 %v2955
      %v3054 = vpop.f32.mrb[0].mxu0
      %v3055 = vadd.f32 0.0, %v3054
      %v3056 = vpop.f32.mrb[0].mxu0
      %3057 = vmatprep.mubr.f32.mxu0 0.0
      %3058 = vmatmul.mubr.f32.gmra.mrb[0].mxu0 %v2958
      %v3059 = vpop.f32.mrb[0].mxu0
      %v3060 = vadd.f32 0.0, %v3059
      %v3061 = vpop.f32.mrb[0].mxu0
      %3062 = vmatprep.mubr.f32.mxu0 0.0
      %3063 = vmatmul.mubr.f32.gmra.mrb[0].mxu0 %v2961
      %v3064 = vpop.f32.mrb[0].mxu0
      %v3065 = vadd.f32 0.0, %v3064
      %v3066 = vpop.f32.mrb[0].mxu0
      %3067 = vdwg.mxu0
      %v3068 = vadd.f32 %v2921, %v3030
      %v3069 = vadd.f32 %v2922, %v3035
      %v3070 = vadd.f32 %v2923, %v3040
      %v3071 = vadd.f32 %v2924, %v3045
      %v3072 = vadd.f32 %v2925, %v3050
      %v3073 = vadd.f32 %v2926, %v3055
      %v3074 = vadd.f32 %v2927, %v3060
      %v3075 = vadd.f32 %v2928, %v3065
      %v3076 = vld [vmem:[%s5] sm:$0x1]
      %v3078 = vlaneseq
      %v3079 = vshrl.u32 %v3078, 7
      %v3080 = vsub.s32 0, %v3079
      %v3081 = vrot.slane %v3076, %v3080
      %v3083 = vmul.f32 %v3068, %v3081
      %v3084 = vmul.f32 %v3069, %v3081
      %v3085 = vmul.f32 %v3070, %v3081
      %v3086 = vmul.f32 %v3071, %v3081
      %v3087 = vmul.f32 %v3072, %v3081
      %v3088 = vmul.f32 %v3073, %v3081
      %v3089 = vmul.f32 %v3074, %v3081
      %v3090 = vmul.f32 %v3075, %v3081
      %v3091 = vld [vmem:[%s6] sm:$0x1]
      %v3093 = vlaneseq
      %v3094 = vshrl.u32 %v3093, 7
      %v3095 = vsub.s32 0, %v3094
      %v3096 = vrot.slane %v3091, %v3095
      %v3098 = vadd.f32 %v3083, %v3096
      %v3099 = vadd.f32 %v3084, %v3096
      %v3100 = vadd.f32 %v3085, %v3096
      %v3101 = vadd.f32 %v3086, %v3096
      %v3102 = vadd.f32 %v3087, %v3096
      %v3103 = vadd.f32 %v3088, %v3096
      %v3104 = vadd.f32 %v3089, %v3096
      %v3105 = vadd.f32 %v3090, %v3096
      %v3106 = vld [vmem:[%s947] sm:$0xff]
      %v3107 = vld [vmem:[%s947 + $0x10] sm:$0xff]
      %v3108 = vld [vmem:[%s947 + $0x20] sm:$0xff]
      %v3109 = vld [vmem:[%s947 + $0x30] sm:$0xff]
      %v3110 = vld [vmem:[%s947 + $0x40] sm:$0xff]
      %v3111 = vld [vmem:[%s947 + $0x50] sm:$0xff]
      %v3112 = vld [vmem:[%s947 + $0x60] sm:$0xff]
      %v3113 = vld [vmem:[%s947 + $0x70] sm:$0xff]
      %v3114 = vld [vmem:[%s7] sm:$0xf]
      %v3116 = vsel %vm380, %v3106, 0
      %v3119 = vsel %vm380, %v3107, 0
      %v3122 = vsel %vm380, %v3108, 0
      %v3125 = vsel %vm380, %v3109, 0
      %v3128 = vsel %vm380, %v3110, 0
      %v3131 = vsel %vm380, %v3111, 0
      %v3134 = vsel %vm380, %v3112, 0
      %v3137 = vsel %vm380, %v3113, 0
      %v3140 = vsel %vm405, %v3114, 0
      %3142 = vmatprep.subr.mxu0 0.0
      %3143 = vmatpush1.msra.mxu0 %v3140
      %3144 = vmatprep.subr.mxu0 0.0
      %3145 = vmatpush1.msra.mxu0 0.0
      %3146 = vmatprep.subr.mxu0 0.0
      %3147 = vmatpush1.msra.mxu0 0.0
      %3148 = vmatprep.subr.mxu0 0.0
      %3149 = vmatpush1.msra.mxu0 0.0
      %3150 = vmatprep.subr.mxu0 0.0
      %3151 = vmatpush1.msra.mxu0 0.0
      %3152 = vmatprep.subr.mxu0 0.0
      %3153 = vmatpush1.msra.mxu0 0.0
      %3154 = vmatprep.subr.mxu0 0.0
      %3155 = vmatpush1.msra.mxu0 0.0
      %3156 = vmatprep.subr.mxu0 0.0
      %3157 = vmatpush1.msra.mxu0 0.0
      %3158 = vmatprep.subr.mxu0 0.0
      %3159 = vmatpush1.msra.mxu0 0.0
      %3160 = vmatprep.subr.mxu0 0.0
      %3161 = vmatpush1.msra.mxu0 0.0
      %3162 = vmatprep.subr.mxu0 0.0
      %3163 = vmatpush1.msra.mxu0 0.0
      %3164 = vmatprep.subr.mxu0 0.0
      %3165 = vmatpush1.msra.mxu0 0.0
      %3166 = vmatprep.subr.mxu0 0.0
      %3167 = vmatpush1.msra.mxu0 0.0
      %3168 = vmatprep.subr.mxu0 0.0
      %3169 = vmatpush1.msra.mxu0 0.0
      %3170 = vmatprep.subr.mxu0 0.0
      %3171 = vmatpush1.msra.mxu0 0.0
      %3172 = vmatprep.subr.mxu0 0.0
      %3173 = vmatpush1.msra.mxu0 0.0
      %3174 = vmatprep.subr.mxu0 0.0
      %3175 = vmatpush1.msra.mxu0 0.0
      %3176 = vmatprep.subr.mxu0 0.0
      %3177 = vmatpush1.msra.mxu0 0.0
      %3178 = vmatprep.subr.mxu0 0.0
      %3179 = vmatpush1.msra.mxu0 0.0
      %3180 = vmatprep.subr.mxu0 0.0
      %3181 = vmatpush1.msra.mxu0 0.0
      %3182 = vmatprep.subr.mxu0 0.0
      %3183 = vmatpush1.msra.mxu0 0.0
      %3184 = vmatprep.subr.mxu0 0.0
      %3185 = vmatpush1.msra.mxu0 0.0
      %3186 = vmatprep.subr.mxu0 0.0
      %3187 = vmatpush1.msra.mxu0 0.0
      %3188 = vmatprep.subr.mxu0 0.0
      %3189 = vmatpush1.msra.mxu0 0.0
      %3190 = vmatprep.subr.mxu0 0.0
      %3191 = vmatpush1.msra.mxu0 0.0
      %3192 = vmatprep.subr.mxu0 0.0
      %3193 = vmatpush1.msra.mxu0 0.0
      %3194 = vmatprep.subr.mxu0 0.0
      %3195 = vmatpush1.msra.mxu0 0.0
      %3196 = vmatprep.subr.mxu0 0.0
      %3197 = vmatpush1.msra.mxu0 0.0
      %3198 = vmatprep.subr.mxu0 0.0
      %3199 = vmatpush1.msra.mxu0 0.0
      %3200 = vmatprep.subr.mxu0 0.0
      %3201 = vmatpush1.msra.mxu0 0.0
      %3202 = vmatprep.subr.mxu0 0.0
      %3203 = vmatpush1.msra.mxu0 0.0
      %3204 = vmatprep.subr.mxu0 0.0
      %3205 = vmatpush1.msra.mxu0 0.0
      %3206 = vmatprep.mubr.f32.mxu0 0.0
      %3207 = vmatmul.mubr.f32.gmra.mrb[0].mxu0 %v3116
      %v3208 = vpop.f32.mrb[0].mxu0
      %v3209 = vadd.f32 0.0, %v3208
      %v3210 = vpop.f32.mrb[0].mxu0
      %3211 = vmatprep.mubr.f32.mxu0 0.0
      %3212 = vmatmul.mubr.f32.gmra.mrb[0].mxu0 %v3119
      %v3213 = vpop.f32.mrb[0].mxu0
      %v3214 = vadd.f32 0.0, %v3213
      %v3215 = vpop.f32.mrb[0].mxu0
      %3216 = vmatprep.mubr.f32.mxu0 0.0
      %3217 = vmatmul.mubr.f32.gmra.mrb[0].mxu0 %v3122
      %v3218 = vpop.f32.mrb[0].mxu0
      %v3219 = vadd.f32 0.0, %v3218
      %v3220 = vpop.f32.mrb[0].mxu0
      %3221 = vmatprep.mubr.f32.mxu0 0.0
      %3222 = vmatmul.mubr.f32.gmra.mrb[0].mxu0 %v3125
      %v3223 = vpop.f32.mrb[0].mxu0
      %v3224 = vadd.f32 0.0, %v3223
      %v3225 = vpop.f32.mrb[0].mxu0
      %3226 = vmatprep.mubr.f32.mxu0 0.0
      %3227 = vmatmul.mubr.f32.gmra.mrb[0].mxu0 %v3128
      %v3228 = vpop.f32.mrb[0].mxu0
      %v3229 = vadd.f32 0.0, %v3228
      %v3230 = vpop.f32.mrb[0].mxu0
      %3231 = vmatprep.mubr.f32.mxu0 0.0
      %3232 = vmatmul.mubr.f32.gmra.mrb[0].mxu0 %v3131
      %v3233 = vpop.f32.mrb[0].mxu0
      %v3234 = vadd.f32 0.0, %v3233
      %v3235 = vpop.f32.mrb[0].mxu0
      %3236 = vmatprep.mubr.f32.mxu0 0.0
      %3237 = vmatmul.mubr.f32.gmra.mrb[0].mxu0 %v3134
      %v3238 = vpop.f32.mrb[0].mxu0
      %v3239 = vadd.f32 0.0, %v3238
      %v3240 = vpop.f32.mrb[0].mxu0
      %3241 = vmatprep.mubr.f32.mxu0 0.0
      %3242 = vmatmul.mubr.f32.gmra.mrb[0].mxu0 %v3137
      %v3243 = vpop.f32.mrb[0].mxu0
      %v3244 = vadd.f32 0.0, %v3243
      %v3245 = vpop.f32.mrb[0].mxu0
      %3246 = vdwg.mxu0
      %v3247 = vld [vmem:[%s8] sm:$0x1]
      %v3249 = vlaneseq
      %v3250 = vshrl.u32 %v3249, 7
      %v3251 = vsub.s32 0, %v3250
      %v3252 = vrot.slane %v3247, %v3251
      %v3254 = vmul.f32 %v3209, %v3252
      %v3255 = vmul.f32 %v3214, %v3252
      %v3256 = vmul.f32 %v3219, %v3252
      %v3257 = vmul.f32 %v3224, %v3252
      %v3258 = vmul.f32 %v3229, %v3252
      %v3259 = vmul.f32 %v3234, %v3252
      %v3260 = vmul.f32 %v3239, %v3252
      %v3261 = vmul.f32 %v3244, %v3252
      %v3262 = vld [vmem:[%s9] sm:$0x1]
      %v3264 = vlaneseq
      %v3265 = vshrl.u32 %v3264, 7
      %v3266 = vsub.s32 0, %v3265
      %v3267 = vrot.slane %v3262, %v3266
      %v3269 = vadd.f32 %v3254, %v3267
      %v3270 = vadd.f32 %v3255, %v3267
      %v3271 = vadd.f32 %v3256, %v3267
      %v3272 = vadd.f32 %v3257, %v3267
      %v3273 = vadd.f32 %v3258, %v3267
      %v3274 = vadd.f32 %v3259, %v3267
      %v3275 = vadd.f32 %v3260, %v3267
      %v3276 = vadd.f32 %v3261, %v3267
      %v3277 = vadd.f32 %v3098, %v3269
      %v3278 = vadd.f32 %v3099, %v3270
      %v3279 = vadd.f32 %v3100, %v3271
      %v3280 = vadd.f32 %v3101, %v3272
      %v3281 = vadd.f32 %v3102, %v3273
      %v3282 = vadd.f32 %v3103, %v3274
      %v3283 = vadd.f32 %v3104, %v3275
      %v3284 = vadd.f32 %v3105, %v3276
      %v3285 = vmax.f32 %v3277, 0.0
      %v3286 = vmax.f32 %v3278, 0.0
      %v3287 = vmax.f32 %v3279, 0.0
      %v3288 = vmax.f32 %v3280, 0.0
      %v3289 = vmax.f32 %v3281, 0.0
      %v3290 = vmax.f32 %v3282, 0.0
      %v3291 = vmax.f32 %v3283, 0.0
      %v3292 = vmax.f32 %v3284, 0.0
      %3293 = vst.msk [vmem:[%s359] sm:$0xff] %vm1738, %v3285
      %3294 = vst.msk [vmem:[%s359 + $0x8] sm:$0xff] %vm1738, %v3286
      %3295 = vst.msk [vmem:[%s359 + $0x10] sm:$0xff] %vm1738, %v3287
      %3296 = vst.msk [vmem:[%s359 + $0x18] sm:$0xff] %vm1738, %v3288
      %3297 = vst.msk [vmem:[%s359 + $0x20] sm:$0xff] %vm1738, %v3289
      %3298 = vst.msk [vmem:[%s359 + $0x28] sm:$0xff] %vm1738, %v3290
      %3299 = vst.msk [vmem:[%s359 + $0x30] sm:$0xff] %vm1738, %v3291
      %3300 = vst.msk [vmem:[%s359 + $0x38] sm:$0xff] %vm1738, %v3292
      %p3301 = scmp.lt.s32.totalorder %s21, 1
      %s3302 = scalar_select %p3301, %s21, 1
      %s3303 = smul.addr %s3302, 8
      %s3304 = smul.addr %s3303, 8
      %s3305 = scalar_lea.vmem %s10, %s3304
      // Predicated region
      $region61: #{tpu_custom_call.1} parent=59 // pred_check
        %p3306 = pneg %p254
      $region62: #{tpu_custom_call.1} parent=59 // pred_check_branch
        %3308 = sbr.rel (%p3306) target = $region64
      $region63: #{tpu_custom_call.1} parent=59 // pred_region
        _
      $region64: #{tpu_custom_call.1} parent=59 // pred_fallthru
        _
    $region60: #{tpu_custom_call.1} parent=5 // pred_fallthru
      _
    %p3309 = scmp.le.s32.totalorder 2, %s16
    // Predicated region
    $region65: #{tpu_custom_call.1} parent=5 // pred_check
      %p3310 = pneg %p3309
    $region66: #{tpu_custom_call.1} parent=5 // pred_check_branch
      %3312 = sbr.rel (%p3310) target = $region68
    $region67: #{tpu_custom_call.1} parent=5 // pred_region
      %s3313 = ssub.s32 %s16, 2
      // Predicated region
      $region69: #{tpu_custom_call.1} parent=67 // pred_check
        %p3314 = pneg %p260
      $region70: #{tpu_custom_call.1} parent=67 // pred_check_branch
        %3316 = sbr.rel (%p3314) target = $region72
      $region71: #{tpu_custom_call.1} parent=67 // pred_region
        %p3317 = scmp.lt.s32.totalorder %s22, 1
        %s3318 = scalar_select %p3317, %s22, 1
        %s3319 = smul.addr %s3318, 8
        %s3320 = smul.addr %s3319, 8
        %s3321 = scalar_lea.vmem %s10, %s3320
      $region72: #{tpu_custom_call.1} parent=67 // pred_fallthru
        _
    $region68: #{tpu_custom_call.1} parent=5 // pred_fallthru
      _
  $region6: #{tpu_custom_call.1} parent=0 // loop_footer
    %s20 = sadd.s32 1, %s16
  $region7: #{tpu_custom_call.1} parent=0 // loop_footer_branch
    %15 = sbr.rel target = $region3
  $region8: #{tpu_custom_call.1} parent=0 // loop_exit
    _

</llo_original>
